<compile_context>
chip_gen: v5e
topology: v5e:2x2
jax: 0.10.0
libtpu: 0.0.40
codegen_flags: <defaults>
</compile_context>

<pallas_src>
import math

import jax
import jax.numpy as jnp
from jax.experimental import pallas as pl
from jax.experimental.pallas import tpu as pltpu

# ----------------------------- configuration --------------------------------
D = 8            # data dimensionality (number of discrete positions)
S = 16           # cardinality of each discrete state  (D*S = 128, lane aligned)
T_DIM = 32       # time-encoder output dim
HIDDEN = 128     # hidden_dim
NUM_HIDDEN = 2   # num_hidden (len(linear_list)); kernel below is written for 2
STACK_TIME = True

OUTPUT_DIM = D * S


def _round_up(x, m):
    return -(-x // m) * m


# ------------------------------ Pallas kernel --------------------------------
def denoise_kernel(xt_ref, t_ref, freqs_ref, phase_ref,
                   w0x_ref, w0t_ref, b0_ref,
                   w1_ref, b1_ref,
                   wl_ref, bl_ref,
                   out_ref):
    TB = xt_ref.shape[0]

    # ---- one-hot encode xt in-kernel ----------------------------------------
    # oh[b, d*S + s] = (xt[b, d] == s); built as a single boolean mask via
    # OR-accumulated lane compares, converted to bf16 exactly once.
    xt = xt_ref[...]                                           # (TB, D) int32
    lane = jax.lax.broadcasted_iota(jnp.int32, (TB, D * S), 1)
    hot = lane == xt[:, 0:1]                                   # d = 0
    for d in range(1, D):                  # static unroll; mask OR on the VPU
        hot = hot | (lane == (xt[:, d:d + 1] + d * S))
    oh = jnp.where(hot, 1.0, 0.0).astype(jnp.bfloat16)         # one convert

    # ---- layer 0, x part: (TB, 128) @ (128, H), f32 accumulation ------------
    h = jnp.dot(oh, w0x_ref[...], preferred_element_type=jnp.float32)

    if STACK_TIME:
        # single EUP pass: [sin(t*f), cos(t*f)] == sin(t*f + phase),
        # phase = 0 for the first half of lanes, pi/2 for the second half.
        args = t_ref[...] * freqs_ref[...] + phase_ref[...]    # (TB, T_DIM)
        t_enc = jnp.sin(args).astype(jnp.bfloat16)
        h = h + jnp.dot(t_enc, w0t_ref[...],
                        preferred_element_type=jnp.float32)

    # dropout is identity at inference (eval mode)
    # TODO(synk): training-mode dropout (stochastic masking via pltpu PRNG).
    h = jnp.maximum(h + b0_ref[...], 0.0)

    # ---- hidden layer 1 ------------------------------------------------------
    h = jnp.dot(h.astype(jnp.bfloat16), w1_ref[...],
                preferred_element_type=jnp.float32) + b1_ref[...]
    h = jnp.maximum(h, 0.0)

    # ---- final layer (no activation); lane-dense (TB, 128) f32 output -------
    out_ref[...] = jnp.dot(h.astype(jnp.bfloat16), wl_ref[...],
                           preferred_element_type=jnp.float32) + bl_ref[...]


# ------------------------------ wrapper ---------------------------------------
def denoising_model_forward(xt, t, params):
    """xt: (B, D) int32, t: (B,) float32 -> logits (B, D, S) float32."""
    w0x, w0t, b0, w1, b1, wl, bl = params
    Bsz = xt.shape[0]

    # ---- batch-tile selection -------------------------------------------------
    # Big tiles amortize per-grid-step overhead; keep >= 2 grid steps when the
    # batch allows so both v7x TensorCores are used ("parallel" axis); cap at
    # 1024 rows so the working set stays well inside v5e's 16 MiB default
    # scoped VMEM (no vmem_limit_bytes override; never set 64 MiB on v7x).
    Bp8 = _round_up(max(Bsz, 1), 8)
    if Bp8 >= 16:
        TB = min(1024, max(8, _round_up(Bp8 // 2, 8)))
    else:
        TB = Bp8
    Bp = _round_up(Bsz, TB)
    nb = Bp // TB

    if Bp != Bsz:
        xt = jnp.pad(xt, ((0, Bp - Bsz), (0, 0)))
        t = jnp.pad(t, (0, Bp - Bsz))
    t2d = t.astype(jnp.float32).reshape(Bp, 1)

    # Time-encoder constants: duplicated freqs + a (0 | pi/2) phase so the
    # kernel needs a single sin() pass for the full [sin | cos] encoding.
    half = T_DIM // 2
    freqs = jnp.exp(-math.log(10000.0) *
                    jnp.arange(half, dtype=jnp.float32) / half)
    freqs_full = jnp.concatenate([freqs, freqs]).reshape(1, T_DIM)
    phase_full = jnp.concatenate(
        [jnp.zeros((half,), jnp.float32),
         jnp.full((half,), jnp.pi / 2.0, jnp.float32)]).reshape(1, T_DIM)

    # Constant-across-grid inputs: single-buffered (no pointless double-buffer).
    def const(shape):
        return pl.BlockSpec(shape, lambda i: (0, 0),
                            pipeline_mode=pl.Buffered(1))

    logits_flat = pl.pallas_call(
        denoise_kernel,
        out_shape=jax.ShapeDtypeStruct((Bp, OUTPUT_DIM), jnp.float32),
        grid=(nb,),
        in_specs=[
            pl.BlockSpec((TB, D), lambda i: (i, 0)),        # xt (int32)
            pl.BlockSpec((TB, 1), lambda i: (i, 0)),        # t
            const((1, T_DIM)),                              # freqs (sin|cos halves)
            const((1, T_DIM)),                              # phase (0 | pi/2)
            const((D * S, HIDDEN)),                         # w0 (x slice), bf16
            const((T_DIM, HIDDEN)),                         # w0 (time slice), bf16
            const((1, HIDDEN)),                             # b0, f32
            const((HIDDEN, HIDDEN)),                        # w1, bf16
            const((1, HIDDEN)),                             # b1, f32
            const((HIDDEN, OUTPUT_DIM)),                    # w_last, bf16
            const((1, OUTPUT_DIM)),                         # b_last, f32
        ],
        out_specs=pl.BlockSpec((TB, OUTPUT_DIM), lambda i: (i, 0)),
        compiler_params=pltpu.CompilerParams(
            dimension_semantics=("parallel",)),
    )(xt.astype(jnp.int32), t2d, freqs_full, phase_full,
      w0x, w0t, b0, w1, b1, wl, bl)

    return logits_flat[:Bsz].reshape(Bsz, D, S)


# ------------------------------ params ----------------------------------------
def init_params(key):
    """PyTorch-default-like uniform init; weights pre-transposed to (in, out),
    stored bf16; layer-0 weight split into x / time slices (split-K)."""
    def init_linear(k, fan_in, fan_out):
        kw, kb = jax.random.split(k)
        bound = 1.0 / math.sqrt(fan_in)
        w = jax.random.uniform(kw, (fan_in, fan_out), jnp.float32, -bound, bound)
        b = jax.random.uniform(kb, (1, fan_out), jnp.float32, -bound, bound)
        return w, b

    k0, k1, k2 = jax.random.split(key, 3)
    input_dim = D * S + (T_DIM if STACK_TIME else 0)
    w0, b0 = init_linear(k0, input_dim, HIDDEN)      # linear_list[0]
    w1, b1 = init_linear(k1, HIDDEN, HIDDEN)         # linear_list[1]
    wl, bl = init_linear(k2, HIDDEN, OUTPUT_DIM)     # linear_last
    w0x = w0[:D * S].astype(jnp.bfloat16)
    w0t = (w0[D * S:] if STACK_TIME
           else jnp.zeros((T_DIM, HIDDEN), jnp.float32)).astype(jnp.bfloat16)
    return (w0x, w0t, b0,
            w1.astype(jnp.bfloat16), b1,
            wl.astype(jnp.bfloat16), bl)


# ------------------------------ reference -------------------------------------
def reference_forward(xt, t, params):
    """Pure-JAX reference with the same dtype path (bf16 matmul, f32 accum)."""
    w0x, w0t, b0, w1, b1, wl, bl = params
    oh = jax.nn.one_hot(xt, S, dtype=jnp.float32).reshape(-1, D * S)
    h = jnp.dot(oh.astype(jnp.bfloat16), w0x, preferred_element_type=jnp.float32)
    if STACK_TIME:
        half = T_DIM // 2
        freqs = jnp.exp(-math.log(10000.0) *
                        jnp.arange(half, dtype=jnp.float32) / half)
        args = t.astype(jnp.float32)[:, None] * freqs[None, :]
        t_enc = jnp.concatenate([jnp.sin(args), jnp.cos(args)], axis=-1)
        h = h + jnp.dot(t_enc.astype(jnp.bfloat16), w0t,
                        preferred_element_type=jnp.float32)
    h = jnp.maximum(h + b0, 0.0)
    h = jnp.maximum(jnp.dot(h.astype(jnp.bfloat16), w1,
                            preferred_element_type=jnp.float32) + b1, 0.0)
    h = jnp.dot(h.astype(jnp.bfloat16), wl,
                preferred_element_type=jnp.float32) + bl
    return h.reshape(-1, D, S)


# ----------------------------------- main --------------------------------------
if __name__ == "__main__":
    key = jax.random.PRNGKey(0)
    k_params, k_xt, k_t = jax.random.split(key, 3)

    B = 256   # -> two 128-row tiles; exercises the "parallel" batch grid axis
    params = init_params(k_params)
    xt = jax.random.randint(k_xt, (B, D), 0, S, dtype=jnp.int32)
    t = jax.random.uniform(k_t, (B,), jnp.float32)

    logits = jax.block_until_ready(denoising_model_forward(xt, t, params))
    assert logits.shape == (B, D, S), logits.shape

    ref = reference_forward(xt, t, params)
    max_err = float(jnp.max(jnp.abs(logits - ref)))
    assert jnp.allclose(logits, ref, atol=2e-2, rtol=2e-2), max_err

    print("KERNEL_OK")
</pallas_src>

<mosaic_0001>
module attributes {stable_mosaic.version = 11 : i64} {
  func.func @denoise_kernel(%arg0: i32, %arg1: memref<128x8xi32, #tpu.memory_space<vmem>>, %arg2: memref<128x1xf32, #tpu.memory_space<vmem>>, %arg3: memref<1x32xf32, #tpu.memory_space<vmem>>, %arg4: memref<1x32xf32, #tpu.memory_space<vmem>>, %arg5: memref<128x128xbf16, #tpu.memory_space<vmem>>, %arg6: memref<32x128xbf16, #tpu.memory_space<vmem>>, %arg7: memref<1x128xf32, #tpu.memory_space<vmem>>, %arg8: memref<128x128xbf16, #tpu.memory_space<vmem>>, %arg9: memref<1x128xf32, #tpu.memory_space<vmem>>, %arg10: memref<128x128xbf16, #tpu.memory_space<vmem>>, %arg11: memref<1x128xf32, #tpu.memory_space<vmem>>, %arg12: memref<128x128xf32, #tpu.memory_space<vmem>>) attributes {dimension_semantics = [#tpu.dimension_semantics<parallel>], iteration_bounds = array<i64: 2>, scalar_prefetch = 0 : i64, scratch_operands = 0 : i64, tpu.core_type = #tpu.core_type<tc>, window_params = [{transform_indices = @transform_0, window_bounds = array<i64: 128, 8>}, {transform_indices = @transform_1, window_bounds = array<i64: 128, 1>}, {pipeline_mode = #tpu.pipeline_mode<synchronous>, transform_indices = @transform_2, window_bounds = array<i64: 1, 32>}, {pipeline_mode = #tpu.pipeline_mode<synchronous>, transform_indices = @transform_3, window_bounds = array<i64: 1, 32>}, {pipeline_mode = #tpu.pipeline_mode<synchronous>, transform_indices = @transform_4, window_bounds = array<i64: 128, 128>}, {pipeline_mode = #tpu.pipeline_mode<synchronous>, transform_indices = @transform_5, window_bounds = array<i64: 32, 128>}, {pipeline_mode = #tpu.pipeline_mode<synchronous>, transform_indices = @transform_6, window_bounds = array<i64: 1, 128>}, {pipeline_mode = #tpu.pipeline_mode<synchronous>, transform_indices = @transform_7, window_bounds = array<i64: 128, 128>}, {pipeline_mode = #tpu.pipeline_mode<synchronous>, transform_indices = @transform_8, window_bounds = array<i64: 1, 128>}, {pipeline_mode = #tpu.pipeline_mode<synchronous>, transform_indices = @transform_9, window_bounds = array<i64: 128, 128>}, {pipeline_mode = #tpu.pipeline_mode<synchronous>, transform_indices = @transform_10, window_bounds = array<i64: 1, 128>}, {transform_indices = @transform_11, window_bounds = array<i64: 128, 128>}]} {
    %c0 = arith.constant 0 : index
    %c0_0 = arith.constant 0 : index
    %0 = vector.load %arg1[%c0, %c0_0] : memref<128x8xi32, #tpu.memory_space<vmem>>, vector<128x8xi32>
    %1 = tpu.iota {dimensions = array<i32: 1>} : vector<128x128xi32>
    %2 = vector.extract_strided_slice %0 {offsets = [0, 0], sizes = [128, 1], strides = [1, 1]} : vector<128x8xi32> to vector<128x1xi32>
    %3 = vector.broadcast %2 : vector<128x1xi32> to vector<128x128xi32>
    %4 = arith.cmpi eq, %1, %3 : vector<128x128xi32>
    %5 = vector.extract_strided_slice %0 {offsets = [0, 1], sizes = [128, 1], strides = [1, 1]} : vector<128x8xi32> to vector<128x1xi32>
    %c16_i32 = arith.constant 16 : i32
    %6 = vector.broadcast %c16_i32 : i32 to vector<128x1xi32>
    %7 = arith.addi %5, %6 : vector<128x1xi32>
    %8 = vector.broadcast %7 : vector<128x1xi32> to vector<128x128xi32>
    %9 = arith.cmpi eq, %1, %8 : vector<128x128xi32>
    %10 = arith.ori %4, %9 : vector<128x128xi1>
    %11 = vector.extract_strided_slice %0 {offsets = [0, 2], sizes = [128, 1], strides = [1, 1]} : vector<128x8xi32> to vector<128x1xi32>
    %c32_i32 = arith.constant 32 : i32
    %12 = vector.broadcast %c32_i32 : i32 to vector<128x1xi32>
    %13 = arith.addi %11, %12 : vector<128x1xi32>
    %14 = vector.broadcast %13 : vector<128x1xi32> to vector<128x128xi32>
    %15 = arith.cmpi eq, %1, %14 : vector<128x128xi32>
    %16 = arith.ori %10, %15 : vector<128x128xi1>
    %17 = vector.extract_strided_slice %0 {offsets = [0, 3], sizes = [128, 1], strides = [1, 1]} : vector<128x8xi32> to vector<128x1xi32>
    %c48_i32 = arith.constant 48 : i32
    %18 = vector.broadcast %c48_i32 : i32 to vector<128x1xi32>
    %19 = arith.addi %17, %18 : vector<128x1xi32>
    %20 = vector.broadcast %19 : vector<128x1xi32> to vector<128x128xi32>
    %21 = arith.cmpi eq, %1, %20 : vector<128x128xi32>
    %22 = arith.ori %16, %21 : vector<128x128xi1>
    %23 = vector.extract_strided_slice %0 {offsets = [0, 4], sizes = [128, 1], strides = [1, 1]} : vector<128x8xi32> to vector<128x1xi32>
    %c64_i32 = arith.constant 64 : i32
    %24 = vector.broadcast %c64_i32 : i32 to vector<128x1xi32>
    %25 = arith.addi %23, %24 : vector<128x1xi32>
    %26 = vector.broadcast %25 : vector<128x1xi32> to vector<128x128xi32>
    %27 = arith.cmpi eq, %1, %26 : vector<128x128xi32>
    %28 = arith.ori %22, %27 : vector<128x128xi1>
    %29 = vector.extract_strided_slice %0 {offsets = [0, 5], sizes = [128, 1], strides = [1, 1]} : vector<128x8xi32> to vector<128x1xi32>
    %c80_i32 = arith.constant 80 : i32
    %30 = vector.broadcast %c80_i32 : i32 to vector<128x1xi32>
    %31 = arith.addi %29, %30 : vector<128x1xi32>
    %32 = vector.broadcast %31 : vector<128x1xi32> to vector<128x128xi32>
    %33 = arith.cmpi eq, %1, %32 : vector<128x128xi32>
    %34 = arith.ori %28, %33 : vector<128x128xi1>
    %35 = vector.extract_strided_slice %0 {offsets = [0, 6], sizes = [128, 1], strides = [1, 1]} : vector<128x8xi32> to vector<128x1xi32>
    %c96_i32 = arith.constant 96 : i32
    %36 = vector.broadcast %c96_i32 : i32 to vector<128x1xi32>
    %37 = arith.addi %35, %36 : vector<128x1xi32>
    %38 = vector.broadcast %37 : vector<128x1xi32> to vector<128x128xi32>
    %39 = arith.cmpi eq, %1, %38 : vector<128x128xi32>
    %40 = arith.ori %34, %39 : vector<128x128xi1>
    %41 = vector.extract_strided_slice %0 {offsets = [0, 7], sizes = [128, 1], strides = [1, 1]} : vector<128x8xi32> to vector<128x1xi32>
    %c112_i32 = arith.constant 112 : i32
    %42 = vector.broadcast %c112_i32 : i32 to vector<128x1xi32>
    %43 = arith.addi %41, %42 : vector<128x1xi32>
    %44 = vector.broadcast %43 : vector<128x1xi32> to vector<128x128xi32>
    %45 = arith.cmpi eq, %1, %44 : vector<128x128xi32>
    %46 = arith.ori %40, %45 : vector<128x128xi1>
    %cst = arith.constant 1.000000e+00 : f32
    %cst_1 = arith.constant 0.000000e+00 : f32
    %47 = vector.broadcast %cst : f32 to vector<128x128xf32>
    %48 = vector.broadcast %cst_1 : f32 to vector<128x128xf32>
    %49 = arith.select %46, %47, %48 : vector<128x128xi1>, vector<128x128xf32>
    %50 = arith.truncf %49 : vector<128x128xf32> to vector<128x128xbf16>
    %c0_2 = arith.constant 0 : index
    %c0_3 = arith.constant 0 : index
    %51 = vector.load %arg5[%c0_2, %c0_3] : memref<128x128xbf16, #tpu.memory_space<vmem>>, vector<128x128xbf16>
    %cst_4 = arith.constant dense<0.000000e+00> : vector<128x128xf32>
    %52 = tpu.matmul %50, %51, %cst_4 {dimension_numbers = #tpu.dot_dimension_numbers<[1], [0], [0], [1], [0, 0, 1, 1], [], []>} : vector<128x128xbf16>, vector<128x128xbf16>, vector<128x128xf32> -> vector<128x128xf32>
    %c0_5 = arith.constant 0 : index
    %c0_6 = arith.constant 0 : index
    %53 = vector.load %arg2[%c0_5, %c0_6] : memref<128x1xf32, #tpu.memory_space<vmem>>, vector<128x1xf32>
    %c0_7 = arith.constant 0 : index
    %c0_8 = arith.constant 0 : index
    %54 = vector.load %arg3[%c0_7, %c0_8] : memref<1x32xf32, #tpu.memory_space<vmem>>, vector<1x32xf32>
    %55 = vector.broadcast %53 : vector<128x1xf32> to vector<128x32xf32>
    %56 = vector.broadcast %54 : vector<1x32xf32> to vector<128x32xf32>
    %57 = arith.mulf %55, %56 : vector<128x32xf32>
    %c0_9 = arith.constant 0 : index
    %c0_10 = arith.constant 0 : index
    %58 = vector.load %arg4[%c0_9, %c0_10] : memref<1x32xf32, #tpu.memory_space<vmem>>, vector<1x32xf32>
    %59 = vector.broadcast %58 : vector<1x32xf32> to vector<128x32xf32>
    %60 = arith.addf %57, %59 : vector<128x32xf32>
    %61 = math.sin %60 : vector<128x32xf32>
    %62 = arith.truncf %61 : vector<128x32xf32> to vector<128x32xbf16>
    %c0_11 = arith.constant 0 : index
    %c0_12 = arith.constant 0 : index
    %63 = vector.load %arg6[%c0_11, %c0_12] : memref<32x128xbf16, #tpu.memory_space<vmem>>, vector<32x128xbf16>
    %cst_13 = arith.constant dense<0.000000e+00> : vector<128x128xf32>
    %64 = tpu.matmul %62, %63, %cst_13 {dimension_numbers = #tpu.dot_dimension_numbers<[1], [0], [0], [1], [0, 0, 1, 1], [], []>} : vector<128x32xbf16>, vector<32x128xbf16>, vector<128x128xf32> -> vector<128x128xf32>
    %65 = arith.addf %52, %64 : vector<128x128xf32>
    %c0_14 = arith.constant 0 : index
    %c0_15 = arith.constant 0 : index
    %66 = vector.load %arg7[%c0_14, %c0_15] : memref<1x128xf32, #tpu.memory_space<vmem>>, vector<1x128xf32>
    %67 = vector.broadcast %66 : vector<1x128xf32> to vector<128x128xf32>
    %68 = arith.addf %65, %67 : vector<128x128xf32>
    %cst_16 = arith.constant 0.000000e+00 : f32
    %69 = vector.broadcast %cst_16 : f32 to vector<128x128xf32>
    %70 = arith.maximumf %68, %69 : vector<128x128xf32>
    %71 = arith.truncf %70 : vector<128x128xf32> to vector<128x128xbf16>
    %c0_17 = arith.constant 0 : index
    %c0_18 = arith.constant 0 : index
    %72 = vector.load %arg8[%c0_17, %c0_18] : memref<128x128xbf16, #tpu.memory_space<vmem>>, vector<128x128xbf16>
    %cst_19 = arith.constant dense<0.000000e+00> : vector<128x128xf32>
    %73 = tpu.matmul %71, %72, %cst_19 {dimension_numbers = #tpu.dot_dimension_numbers<[1], [0], [0], [1], [0, 0, 1, 1], [], []>} : vector<128x128xbf16>, vector<128x128xbf16>, vector<128x128xf32> -> vector<128x128xf32>
    %c0_20 = arith.constant 0 : index
    %c0_21 = arith.constant 0 : index
    %74 = vector.load %arg9[%c0_20, %c0_21] : memref<1x128xf32, #tpu.memory_space<vmem>>, vector<1x128xf32>
    %75 = vector.broadcast %74 : vector<1x128xf32> to vector<128x128xf32>
    %76 = arith.addf %73, %75 : vector<128x128xf32>
    %cst_22 = arith.constant 0.000000e+00 : f32
    %77 = vector.broadcast %cst_22 : f32 to vector<128x128xf32>
    %78 = arith.maximumf %76, %77 : vector<128x128xf32>
    %79 = arith.truncf %78 : vector<128x128xf32> to vector<128x128xbf16>
    %c0_23 = arith.constant 0 : index
    %c0_24 = arith.constant 0 : index
    %80 = vector.load %arg10[%c0_23, %c0_24] : memref<128x128xbf16, #tpu.memory_space<vmem>>, vector<128x128xbf16>
    %cst_25 = arith.constant dense<0.000000e+00> : vector<128x128xf32>
    %81 = tpu.matmul %79, %80, %cst_25 {dimension_numbers = #tpu.dot_dimension_numbers<[1], [0], [0], [1], [0, 0, 1, 1], [], []>} : vector<128x128xbf16>, vector<128x128xbf16>, vector<128x128xf32> -> vector<128x128xf32>
    %c0_26 = arith.constant 0 : index
    %c0_27 = arith.constant 0 : index
    %82 = vector.load %arg11[%c0_26, %c0_27] : memref<1x128xf32, #tpu.memory_space<vmem>>, vector<1x128xf32>
    %83 = vector.broadcast %82 : vector<1x128xf32> to vector<128x128xf32>
    %84 = arith.addf %81, %83 : vector<128x128xf32>
    %c0_28 = arith.constant 0 : index
    %c0_29 = arith.constant 0 : index
    %85 = vector.load %arg12[%c0_28, %c0_29] : memref<128x128xf32, #tpu.memory_space<vmem>>, vector<128x128xf32>
    tpu.vector_store %arg12[%c0_28, %c0_29], %84 {strides = array<i32>} : memref<128x128xf32, #tpu.memory_space<vmem>>, vector<128x128xf32>,
    return
  }
  func.func @transform_0(%arg0: i32) -> (i32, i32) {
    %c0_i32 = arith.constant 0 : i32
    %c0_i32_0 = arith.constant 0 : i32
    return %arg0, %c0_i32 : i32, i32
  }
  func.func @transform_1(%arg0: i32) -> (i32, i32) {
    %c0_i32 = arith.constant 0 : i32
    %c0_i32_0 = arith.constant 0 : i32
    return %arg0, %c0_i32 : i32, i32
  }
  func.func @transform_2(%arg0: i32) -> (i32, i32) {
    %c0_i32 = arith.constant 0 : i32
    %c0_i32_0 = arith.constant 0 : i32
    %c0_i32_1 = arith.constant 0 : i32
    return %c0_i32, %c0_i32_0 : i32, i32
  }
  func.func @transform_3(%arg0: i32) -> (i32, i32) {
    %c0_i32 = arith.constant 0 : i32
    %c0_i32_0 = arith.constant 0 : i32
    %c0_i32_1 = arith.constant 0 : i32
    return %c0_i32, %c0_i32_0 : i32, i32
  }
  func.func @transform_4(%arg0: i32) -> (i32, i32) {
    %c0_i32 = arith.constant 0 : i32
    %c0_i32_0 = arith.constant 0 : i32
    %c0_i32_1 = arith.constant 0 : i32
    return %c0_i32, %c0_i32_0 : i32, i32
  }
  func.func @transform_5(%arg0: i32) -> (i32, i32) {
    %c0_i32 = arith.constant 0 : i32
    %c0_i32_0 = arith.constant 0 : i32
    %c0_i32_1 = arith.constant 0 : i32
    return %c0_i32, %c0_i32_0 : i32, i32
  }
  func.func @transform_6(%arg0: i32) -> (i32, i32) {
    %c0_i32 = arith.constant 0 : i32
    %c0_i32_0 = arith.constant 0 : i32
    %c0_i32_1 = arith.constant 0 : i32
    return %c0_i32, %c0_i32_0 : i32, i32
  }
  func.func @transform_7(%arg0: i32) -> (i32, i32) {
    %c0_i32 = arith.constant 0 : i32
    %c0_i32_0 = arith.constant 0 : i32
    %c0_i32_1 = arith.constant 0 : i32
    return %c0_i32, %c0_i32_0 : i32, i32
  }
  func.func @transform_8(%arg0: i32) -> (i32, i32) {
    %c0_i32 = arith.constant 0 : i32
    %c0_i32_0 = arith.constant 0 : i32
    %c0_i32_1 = arith.constant 0 : i32
    return %c0_i32, %c0_i32_0 : i32, i32
  }
  func.func @transform_9(%arg0: i32) -> (i32, i32) {
    %c0_i32 = arith.constant 0 : i32
    %c0_i32_0 = arith.constant 0 : i32
    %c0_i32_1 = arith.constant 0 : i32
    return %c0_i32, %c0_i32_0 : i32, i32
  }
  func.func @transform_10(%arg0: i32) -> (i32, i32) {
    %c0_i32 = arith.constant 0 : i32
    %c0_i32_0 = arith.constant 0 : i32
    %c0_i32_1 = arith.constant 0 : i32
    return %c0_i32, %c0_i32_0 : i32, i32
  }
  func.func @transform_11(%arg0: i32) -> (i32, i32) {
    %c0_i32 = arith.constant 0 : i32
    %c0_i32_0 = arith.constant 0 : i32
    return %arg0, %c0_i32 : i32, i32
  }
}

</mosaic_0001>

<llo_original>
// kernel: tpu_custom_call.1
$region0: #{tpu_custom_call.1}
  #allocation0 [shape = 'u32[]', space=smem, size = 0x4, offset = 0x4, fixed_abs, tag = 'smem constant byte address 0x4 - core index']
  #allocation1 [shape = 'u32[72,128]{1,0:T(1,128)}', space=vmem, size = 0x9000, scoped, tag = 'internal scratch']
  %s0 = inlined_call_operand.vmem [shape: s32[256,8], index: 0, kind: input, shape index: {}]
  %s1 = inlined_call_operand.vmem [shape: f32[256,1], index: 1, kind: input, shape index: {}]
  %s2 = inlined_call_operand.vmem [shape: f32[1,32], index: 2, kind: input, shape index: {}]
  %s3 = inlined_call_operand.vmem [shape: f32[1,32], index: 3, kind: input, shape index: {}]
  %s4 = inlined_call_operand.vmem [shape: bf16[128,128], index: 4, kind: input, shape index: {}]
  %s5 = inlined_call_operand.vmem [shape: bf16[32,128], index: 5, kind: input, shape index: {}]
  %s6 = inlined_call_operand.vmem [shape: f32[1,128], index: 6, kind: input, shape index: {}]
  %s7 = inlined_call_operand.vmem [shape: bf16[128,128], index: 7, kind: input, shape index: {}]
  %s8 = inlined_call_operand.vmem [shape: f32[1,128], index: 8, kind: input, shape index: {}]
  %s9 = inlined_call_operand.vmem [shape: bf16[128,128], index: 9, kind: input, shape index: {}]
  %s10 = inlined_call_operand.vmem [shape: f32[1,128], index: 10, kind: input, shape index: {}]
  %s11 = inlined_call_operand.hbm [shape: f32[256,128], index: 11, kind: output, shape index: {}]
  %s12 = sld [smem:[#allocation0]]
  $region77: #{tpu_custom_call.1} parent=0
    _
  %s14 = ssub.s32 1, %s12
  %s15 = scalar_select 0, %s14, %s12
  $region1: #{tpu_custom_call.1} parent=0
    #allocation2 [shape = 'u8[131072]{0}', space=vmem, size = 0x20000, scoped, tag = 'output window, operand 0']
    #allocation3 [shape = 's32[2]{0}', space=sflag, size = 0x8, scoped, tag = 'scoped memory for tpu_custom_call.1']
    %16 = vsyncpa [#allocation3], 0
    %s17 = scalar_lea.sflag [#allocation3], 1
    %18 = vsyncpa %s17, 0
    loop: start=0, step=1, limit=4
    $region2: #{tpu_custom_call.1} parent=1 // loop_pre_header
      _
    $region3: #{tpu_custom_call.1} parent=1 // loop_header
      %s20 = sphi 0, %s24
      %p21 = scmp.ge.s32.totalorder %s20, 4
      %s30 = sphi 0, %s32
      %s33 = sphi 0, %s30
      %s34 = sphi 0, %s33
      %s50 = sphi 0, %s34
      %s56 = sphi 0, %s58
      %s59 = sphi 0, %s56
      %s60 = sphi 0, %s59
      %s76 = sphi 0, %s60
      %s80 = sphi 0, %s80
      %s82 = sphi 0, %s80
      %s83 = sphi 0, %s82
      %s97 = sphi 0, %s83
      %s101 = sphi 0, %s101
      %s103 = sphi 0, %s101
      %s104 = sphi 0, %s103
      %s118 = sphi 0, %s104
      %s122 = sphi 0, %s122
      %s124 = sphi 0, %s122
      %s125 = sphi 0, %s124
      %s139 = sphi 0, %s125
      %s143 = sphi 0, %s143
      %s145 = sphi 0, %s143
      %s146 = sphi 0, %s145
      %s160 = sphi 0, %s146
      %s164 = sphi 0, %s164
      %s166 = sphi 0, %s164
      %s167 = sphi 0, %s166
      %s181 = sphi 0, %s167
      %s185 = sphi 0, %s185
      %s187 = sphi 0, %s185
      %s188 = sphi 0, %s187
      %s202 = sphi 0, %s188
      %s206 = sphi 0, %s206
      %s208 = sphi 0, %s206
      %s209 = sphi 0, %s208
      %s223 = sphi 0, %s209
      %s227 = sphi 0, %s227
      %s229 = sphi 0, %s227
      %s230 = sphi 0, %s229
      %s244 = sphi 0, %s230
      %s248 = sphi 0, %s248
      %s250 = sphi 0, %s248
      %s251 = sphi 0, %s250
      %s265 = sphi 0, %s251
      %s271 = sphi 0, %s273
      %s274 = sphi 0, %s271
      %s275 = sphi 0, %s274
      %s291 = sphi 0, %s275
    $region4: #{tpu_custom_call.1} parent=1 // loop_header_branch
      %23 = sbr.rel (%p21) target = $region8
    $region5: #{tpu_custom_call.1} parent=1 // loop_body
      %s25 = ssub.s32 %s20, 1
      %s26 = ssub.s32 %s20, 2
      %s27 = sadd.s32 %s20, 1
      %s28 = ssub.s32 %s20, %s27
      %p29 = scmp.eq.s32.totalorder %s28, 0
      %s31 = sadd.s32 %s30, 1
      %s32 = scalar_select %p29, %s30, %s31
      %p35 = pneg %p29
      %p36 = scmp.eq.s32.totalorder %s20, 1
      %p37 = por %p35, %p36
      %p38 = scmp.ne.s32.totalorder %s30, %s33
      %p39 = scmp.eq.s32.totalorder %s20, 0
      %p40 = por %p38, %p39
      %p41 = scmp.ne.s32.totalorder %s30, %s33
      %p42 = scmp.eq.s32.totalorder %s25, 1
      %p43 = por %p41, %p42
      %p44 = scmp.ne.s32.totalorder %s33, %s34
      %p45 = scmp.eq.s32.totalorder %s25, 0
      %p46 = por %p44, %p45
      %p47 = scmp.ne.s32.totalorder %s33, %s34
      %p48 = scmp.eq.s32.totalorder %s26, 1
      %p49 = por %p47, %p48
      %p51 = scmp.ne.s32.totalorder %s34, %s50
      %p52 = scmp.eq.s32.totalorder %s26, 0
      %p53 = por %p51, %p52
      %s54 = ssub.s32 %s20, %s27
      %p55 = scmp.eq.s32.totalorder %s54, 0
      %s57 = sadd.s32 %s56, 1
      %s58 = scalar_select %p55, %s56, %s57
      %p61 = pneg %p55
      %p62 = scmp.eq.s32.totalorder %s20, 1
      %p63 = por %p61, %p62
      %p64 = scmp.ne.s32.totalorder %s56, %s59
      %p65 = scmp.eq.s32.totalorder %s20, 0
      %p66 = por %p64, %p65
      %p67 = scmp.ne.s32.totalorder %s56, %s59
      %p68 = scmp.eq.s32.totalorder %s25, 1
      %p69 = por %p67, %p68
      %p70 = scmp.ne.s32.totalorder %s59, %s60
      %p71 = scmp.eq.s32.totalorder %s25, 0
      %p72 = por %p70, %p71
      %p73 = scmp.ne.s32.totalorder %s59, %s60
      %p74 = scmp.eq.s32.totalorder %s26, 1
      %p75 = por %p73, %p74
      %p77 = scmp.ne.s32.totalorder %s60, %s76
      %p78 = scmp.eq.s32.totalorder %s26, 0
      %p79 = por %p77, %p78
      %s81 = sadd.s32 %s80, 1
      %p84 = scmp.eq.s32.totalorder %s20, 1
      %p85 = scmp.ne.s32.totalorder %s80, %s82
      %p86 = scmp.eq.s32.totalorder %s20, 0
      %p87 = por %p85, %p86
      %p88 = scmp.ne.s32.totalorder %s80, %s82
      %p89 = scmp.eq.s32.totalorder %s25, 1
      %p90 = por %p88, %p89
      %p91 = scmp.ne.s32.totalorder %s82, %s83
      %p92 = scmp.eq.s32.totalorder %s25, 0
      %p93 = por %p91, %p92
      %p94 = scmp.ne.s32.totalorder %s82, %s83
      %p95 = scmp.eq.s32.totalorder %s26, 1
      %p96 = por %p94, %p95
      %p98 = scmp.ne.s32.totalorder %s83, %s97
      %p99 = scmp.eq.s32.totalorder %s26, 0
      %p100 = por %p98, %p99
      %s102 = sadd.s32 %s101, 1
      %p105 = scmp.eq.s32.totalorder %s20, 1
      %p106 = scmp.ne.s32.totalorder %s101, %s103
      %p107 = scmp.eq.s32.totalorder %s20, 0
      %p108 = por %p106, %p107
      %p109 = scmp.ne.s32.totalorder %s101, %s103
      %p110 = scmp.eq.s32.totalorder %s25, 1
      %p111 = por %p109, %p110
      %p112 = scmp.ne.s32.totalorder %s103, %s104
      %p113 = scmp.eq.s32.totalorder %s25, 0
      %p114 = por %p112, %p113
      %p115 = scmp.ne.s32.totalorder %s103, %s104
      %p116 = scmp.eq.s32.totalorder %s26, 1
      %p117 = por %p115, %p116
      %p119 = scmp.ne.s32.totalorder %s104, %s118
      %p120 = scmp.eq.s32.totalorder %s26, 0
      %p121 = por %p119, %p120
      %s123 = sadd.s32 %s122, 1
      %p126 = scmp.eq.s32.totalorder %s20, 1
      %p127 = scmp.ne.s32.totalorder %s122, %s124
      %p128 = scmp.eq.s32.totalorder %s20, 0
      %p129 = por %p127, %p128
      %p130 = scmp.ne.s32.totalorder %s122, %s124
      %p131 = scmp.eq.s32.totalorder %s25, 1
      %p132 = por %p130, %p131
      %p133 = scmp.ne.s32.totalorder %s124, %s125
      %p134 = scmp.eq.s32.totalorder %s25, 0
      %p135 = por %p133, %p134
      %p136 = scmp.ne.s32.totalorder %s124, %s125
      %p137 = scmp.eq.s32.totalorder %s26, 1
      %p138 = por %p136, %p137
      %p140 = scmp.ne.s32.totalorder %s125, %s139
      %p141 = scmp.eq.s32.totalorder %s26, 0
      %p142 = por %p140, %p141
      %s144 = sadd.s32 %s143, 1
      %p147 = scmp.eq.s32.totalorder %s20, 1
      %p148 = scmp.ne.s32.totalorder %s143, %s145
      %p149 = scmp.eq.s32.totalorder %s20, 0
      %p150 = por %p148, %p149
      %p151 = scmp.ne.s32.totalorder %s143, %s145
      %p152 = scmp.eq.s32.totalorder %s25, 1
      %p153 = por %p151, %p152
      %p154 = scmp.ne.s32.totalorder %s145, %s146
      %p155 = scmp.eq.s32.totalorder %s25, 0
      %p156 = por %p154, %p155
      %p157 = scmp.ne.s32.totalorder %s145, %s146
      %p158 = scmp.eq.s32.totalorder %s26, 1
      %p159 = por %p157, %p158
      %p161 = scmp.ne.s32.totalorder %s146, %s160
      %p162 = scmp.eq.s32.totalorder %s26, 0
      %p163 = por %p161, %p162
      %s165 = sadd.s32 %s164, 1
      %p168 = scmp.eq.s32.totalorder %s20, 1
      %p169 = scmp.ne.s32.totalorder %s164, %s166
      %p170 = scmp.eq.s32.totalorder %s20, 0
      %p171 = por %p169, %p170
      %p172 = scmp.ne.s32.totalorder %s164, %s166
      %p173 = scmp.eq.s32.totalorder %s25, 1
      %p174 = por %p172, %p173
      %p175 = scmp.ne.s32.totalorder %s166, %s167
      %p176 = scmp.eq.s32.totalorder %s25, 0
      %p177 = por %p175, %p176
      %p178 = scmp.ne.s32.totalorder %s166, %s167
      %p179 = scmp.eq.s32.totalorder %s26, 1
      %p180 = por %p178, %p179
      %p182 = scmp.ne.s32.totalorder %s167, %s181
      %p183 = scmp.eq.s32.totalorder %s26, 0
      %p184 = por %p182, %p183
      %s186 = sadd.s32 %s185, 1
      %p189 = scmp.eq.s32.totalorder %s20, 1
      %p190 = scmp.ne.s32.totalorder %s185, %s187
      %p191 = scmp.eq.s32.totalorder %s20, 0
      %p192 = por %p190, %p191
      %p193 = scmp.ne.s32.totalorder %s185, %s187
      %p194 = scmp.eq.s32.totalorder %s25, 1
      %p195 = por %p193, %p194
      %p196 = scmp.ne.s32.totalorder %s187, %s188
      %p197 = scmp.eq.s32.totalorder %s25, 0
      %p198 = por %p196, %p197
      %p199 = scmp.ne.s32.totalorder %s187, %s188
      %p200 = scmp.eq.s32.totalorder %s26, 1
      %p201 = por %p199, %p200
      %p203 = scmp.ne.s32.totalorder %s188, %s202
      %p204 = scmp.eq.s32.totalorder %s26, 0
      %p205 = por %p203, %p204
      %s207 = sadd.s32 %s206, 1
      %p210 = scmp.eq.s32.totalorder %s20, 1
      %p211 = scmp.ne.s32.totalorder %s206, %s208
      %p212 = scmp.eq.s32.totalorder %s20, 0
      %p213 = por %p211, %p212
      %p214 = scmp.ne.s32.totalorder %s206, %s208
      %p215 = scmp.eq.s32.totalorder %s25, 1
      %p216 = por %p214, %p215
      %p217 = scmp.ne.s32.totalorder %s208, %s209
      %p218 = scmp.eq.s32.totalorder %s25, 0
      %p219 = por %p217, %p218
      %p220 = scmp.ne.s32.totalorder %s208, %s209
      %p221 = scmp.eq.s32.totalorder %s26, 1
      %p222 = por %p220, %p221
      %p224 = scmp.ne.s32.totalorder %s209, %s223
      %p225 = scmp.eq.s32.totalorder %s26, 0
      %p226 = por %p224, %p225
      %s228 = sadd.s32 %s227, 1
      %p231 = scmp.eq.s32.totalorder %s20, 1
      %p232 = scmp.ne.s32.totalorder %s227, %s229
      %p233 = scmp.eq.s32.totalorder %s20, 0
      %p234 = por %p232, %p233
      %p235 = scmp.ne.s32.totalorder %s227, %s229
      %p236 = scmp.eq.s32.totalorder %s25, 1
      %p237 = por %p235, %p236
      %p238 = scmp.ne.s32.totalorder %s229, %s230
      %p239 = scmp.eq.s32.totalorder %s25, 0
      %p240 = por %p238, %p239
      %p241 = scmp.ne.s32.totalorder %s229, %s230
      %p242 = scmp.eq.s32.totalorder %s26, 1
      %p243 = por %p241, %p242
      %p245 = scmp.ne.s32.totalorder %s230, %s244
      %p246 = scmp.eq.s32.totalorder %s26, 0
      %p247 = por %p245, %p246
      %s249 = sadd.s32 %s248, 1
      %p252 = scmp.eq.s32.totalorder %s20, 1
      %p253 = scmp.ne.s32.totalorder %s248, %s250
      %p254 = scmp.eq.s32.totalorder %s20, 0
      %p255 = por %p253, %p254
      %p256 = scmp.ne.s32.totalorder %s248, %s250
      %p257 = scmp.eq.s32.totalorder %s25, 1
      %p258 = por %p256, %p257
      %p259 = scmp.ne.s32.totalorder %s250, %s251
      %p260 = scmp.eq.s32.totalorder %s25, 0
      %p261 = por %p259, %p260
      %p262 = scmp.ne.s32.totalorder %s250, %s251
      %p263 = scmp.eq.s32.totalorder %s26, 1
      %p264 = por %p262, %p263
      %p266 = scmp.ne.s32.totalorder %s251, %s265
      %p267 = scmp.eq.s32.totalorder %s26, 0
      %p268 = por %p266, %p267
      %s269 = ssub.s32 %s20, %s27
      %p270 = scmp.eq.s32.totalorder %s269, 0
      %s272 = sadd.s32 %s271, 1
      %s273 = scalar_select %p270, %s271, %s272
      %p276 = pneg %p270
      %p277 = scmp.eq.s32.totalorder %s20, 1
      %p278 = por %p276, %p277
      %p279 = scmp.ne.s32.totalorder %s271, %s274
      %p280 = scmp.eq.s32.totalorder %s20, 0
      %p281 = por %p279, %p280
      %p282 = scmp.ne.s32.totalorder %s271, %s274
      %p283 = scmp.eq.s32.totalorder %s25, 1
      %p284 = por %p282, %p283
      %p285 = scmp.ne.s32.totalorder %s274, %s275
      %p286 = scmp.eq.s32.totalorder %s25, 0
      %p287 = por %p285, %p286
      %p288 = scmp.ne.s32.totalorder %s274, %s275
      %p289 = scmp.eq.s32.totalorder %s26, 1
      %p290 = por %p288, %p289
      %p292 = scmp.ne.s32.totalorder %s275, %s291
      %p293 = scmp.eq.s32.totalorder %s26, 0
      %p294 = por %p292, %p293
      %p295 = scmp.le.s32.totalorder 1, %s20
      %p296 = scmp.lt.s32.totalorder %s20, 3
      %p297 = pnand %p295, %p296
      %p298 = pneg %p297
      // Predicated region
      $region9: #{tpu_custom_call.1} parent=5 // pred_check
        _
      $region10: #{tpu_custom_call.1} parent=5 // pred_check_branch
        %300 = sbr.rel (%p297) target = $region12
      $region11: #{tpu_custom_call.1} parent=5 // pred_region
        %s301 = ssub.s32 %s20, 1
        // Predicated region
        $region13: #{tpu_custom_call.1} parent=11 // pred_check
          %p302 = pneg %p93
        $region14: #{tpu_custom_call.1} parent=11 // pred_check_branch
          %304 = sbr.rel (%p302) target = $region16
        $region15: #{tpu_custom_call.1} parent=11 // pred_region
          _
        $region16: #{tpu_custom_call.1} parent=11 // pred_fallthru
          _
        // Predicated region
        $region17: #{tpu_custom_call.1} parent=11 // pred_check
          %p305 = pneg %p114
        $region18: #{tpu_custom_call.1} parent=11 // pred_check_branch
          %307 = sbr.rel (%p305) target = $region20
        $region19: #{tpu_custom_call.1} parent=11 // pred_region
          _
        $region20: #{tpu_custom_call.1} parent=11 // pred_fallthru
          _
        // Predicated region
        $region21: #{tpu_custom_call.1} parent=11 // pred_check
          %p308 = pneg %p135
        $region22: #{tpu_custom_call.1} parent=11 // pred_check_branch
          %310 = sbr.rel (%p308) target = $region24
        $region23: #{tpu_custom_call.1} parent=11 // pred_region
          _
        $region24: #{tpu_custom_call.1} parent=11 // pred_fallthru
          _
        // Predicated region
        $region25: #{tpu_custom_call.1} parent=11 // pred_check
          %p311 = pneg %p156
        $region26: #{tpu_custom_call.1} parent=11 // pred_check_branch
          %313 = sbr.rel (%p311) target = $region28
        $region27: #{tpu_custom_call.1} parent=11 // pred_region
          _
        $region28: #{tpu_custom_call.1} parent=11 // pred_fallthru
          _
        // Predicated region
        $region29: #{tpu_custom_call.1} parent=11 // pred_check
          %p314 = pneg %p177
        $region30: #{tpu_custom_call.1} parent=11 // pred_check_branch
          %316 = sbr.rel (%p314) target = $region32
        $region31: #{tpu_custom_call.1} parent=11 // pred_region
          _
        $region32: #{tpu_custom_call.1} parent=11 // pred_fallthru
          _
        // Predicated region
        $region33: #{tpu_custom_call.1} parent=11 // pred_check
          %p317 = pneg %p198
        $region34: #{tpu_custom_call.1} parent=11 // pred_check_branch
          %319 = sbr.rel (%p317) target = $region36
        $region35: #{tpu_custom_call.1} parent=11 // pred_region
          _
        $region36: #{tpu_custom_call.1} parent=11 // pred_fallthru
          _
        // Predicated region
        $region37: #{tpu_custom_call.1} parent=11 // pred_check
          %p320 = pneg %p219
        $region38: #{tpu_custom_call.1} parent=11 // pred_check_branch
          %322 = sbr.rel (%p320) target = $region40
        $region39: #{tpu_custom_call.1} parent=11 // pred_region
          _
        $region40: #{tpu_custom_call.1} parent=11 // pred_fallthru
          _
        // Predicated region
        $region41: #{tpu_custom_call.1} parent=11 // pred_check
          %p323 = pneg %p240
        $region42: #{tpu_custom_call.1} parent=11 // pred_check_branch
          %325 = sbr.rel (%p323) target = $region44
        $region43: #{tpu_custom_call.1} parent=11 // pred_region
          _
        $region44: #{tpu_custom_call.1} parent=11 // pred_fallthru
          _
        // Predicated region
        $region45: #{tpu_custom_call.1} parent=11 // pred_check
          %p326 = pneg %p261
        $region46: #{tpu_custom_call.1} parent=11 // pred_check_branch
          %328 = sbr.rel (%p326) target = $region48
        $region47: #{tpu_custom_call.1} parent=11 // pred_region
          _
        $region48: #{tpu_custom_call.1} parent=11 // pred_fallthru
          _
      $region12: #{tpu_custom_call.1} parent=5 // pred_fallthru
        _
      %p329 = scmp.lt.s32.totalorder %s20, 2
      // Predicated region
      $region49: #{tpu_custom_call.1} parent=5 // pred_check
        %p330 = pneg %p329
      $region50: #{tpu_custom_call.1} parent=5 // pred_check_branch
        %332 = sbr.rel (%p330) target = $region52
      $region51: #{tpu_custom_call.1} parent=5 // pred_region
        // Predicated region
        $region53: #{tpu_custom_call.1} parent=51 // pred_check
          %p333 = pneg %p40
        $region54: #{tpu_custom_call.1} parent=51 // pred_check_branch
          %335 = sbr.rel (%p333) target = $region56
        $region55: #{tpu_custom_call.1} parent=51 // pred_region
          %s336 = smul.u32 16, %s20
          %p337 = scmp.lt.s32.totalorder %s336, 31
          %s338 = scalar_select %p337, %s336, 31
          %s339 = smul.addr %s338, 8
          %s340 = scalar_lea.vmem %s0, %s339
          %s341 = smul.u32 16, %s20
        $region56: #{tpu_custom_call.1} parent=51 // pred_fallthru
          _
        // Predicated region
        $region57: #{tpu_custom_call.1} parent=51 // pred_check
          %p342 = pneg %p66
        $region58: #{tpu_custom_call.1} parent=51 // pred_check_branch
          %344 = sbr.rel (%p342) target = $region60
        $region59: #{tpu_custom_call.1} parent=51 // pred_region
          %s345 = smul.u32 16, %s20
          %p346 = scmp.lt.s32.totalorder %s345, 31
          %s347 = scalar_select %p346, %s345, 31
          %s348 = smul.addr %s347, 8
          %s349 = scalar_lea.vmem %s1, %s348
          %s350 = smul.u32 16, %s20
        $region60: #{tpu_custom_call.1} parent=51 // pred_fallthru
          _
      $region52: #{tpu_custom_call.1} parent=5 // pred_fallthru
        _
      %p351 = scmp.le.s32.totalorder 1, %s20
      %p352 = scmp.lt.s32.totalorder %s20, 3
      %p353 = pnand %p351, %p352
      %p354 = pneg %p353
      // Predicated region
      $region61: #{tpu_custom_call.1} parent=5 // pred_check
        _
      $region62: #{tpu_custom_call.1} parent=5 // pred_check_branch
        %356 = sbr.rel (%p353) target = $region64
      $region63: #{tpu_custom_call.1} parent=5 // pred_region
        %s357 = ssub.s32 %s20, 1
        %s358 = smul.u32 16, %s25
        %p359 = scmp.lt.s32.totalorder %s358, 31
        %s360 = scalar_select %p359, %s358, 31
        %s361 = smul.addr %s360, 8
        %s362 = scalar_lea.vmem %s0, %s361
        %p363 = pneg %p46
        %p364 = pneg %p43
        %s365 = smul.u32 16, %s25
        %p366 = scmp.lt.s32.totalorder %s365, 31
        %s367 = scalar_select %p366, %s365, 31
        %s368 = smul.addr %s367, 8
        %s369 = scalar_lea.vmem %s1, %s368
        %p370 = pneg %p72
        %p371 = pneg %p69
        %p372 = pneg %p93
        %p373 = pneg %p90
        %p374 = pneg %p114
        %p375 = pneg %p111
        %p376 = pneg %p135
        %p377 = pneg %p132
        %p378 = pneg %p156
        %p379 = pneg %p153
        %p380 = pneg %p177
        %p381 = pneg %p174
        %p382 = pneg %p198
        %p383 = pneg %p195
        %p384 = pneg %p219
        %p385 = pneg %p216
        %p386 = pneg %p240
        %p387 = pneg %p237
        %p388 = pneg %p261
        %p389 = pneg %p258
        %p390 = pneg %p287
        %p391 = pneg %p284
        %s392 = sand.u32 %s274, 1
        %s393 = scalar_lea.sflag [#allocation3], %s392
        %s394 = sand.u32 %s274, 1
        %s395 = smul.addr %s394, 128
        %s396 = scalar_lea.vmem [#allocation2], %s395
        %s397 = smul.u32 16, %s25
        %p398 = scmp.lt.s32.totalorder %s397, 31
        %s399 = scalar_select %p398, %s397, 31
        %s400 = smul.addr %s399, 8
        %s401 = scalar_lea.vmem %s0, %s400
        %s402 = smul.u32 16, %s25
        %s403 = smul.u32 16, %s25
        %p404 = scmp.lt.s32.totalorder %s403, 31
        %s405 = scalar_select %p404, %s403, 31
        %s406 = smul.addr %s405, 8
        %s407 = scalar_lea.vmem %s1, %s406
        %s408 = smul.u32 16, %s25
        %s409 = smul.u32 16, %s25
        %v411 = vld [vmem:[%s401] sm:$0xff]
        %v412 = vld [vmem:[%s401 + $0x8] sm:$0xff]
        %v413 = vld [vmem:[%s401 + $0x10] sm:$0xff]
        %v414 = vld [vmem:[%s401 + $0x18] sm:$0xff]
        %v415 = vld [vmem:[%s401 + $0x20] sm:$0xff]
        %v416 = vld [vmem:[%s401 + $0x28] sm:$0xff]
        %v417 = vld [vmem:[%s401 + $0x30] sm:$0xff]
        %v418 = vld [vmem:[%s401 + $0x38] sm:$0xff]
        %v419 = vld [vmem:[%s401 + $0x40] sm:$0xff]
        %v420 = vld [vmem:[%s401 + $0x48] sm:$0xff]
        %v421 = vld [vmem:[%s401 + $0x50] sm:$0xff]
        %v422 = vld [vmem:[%s401 + $0x58] sm:$0xff]
        %v423 = vld [vmem:[%s401 + $0x60] sm:$0xff]
        %v424 = vld [vmem:[%s401 + $0x68] sm:$0xff]
        %v425 = vld [vmem:[%s401 + $0x70] sm:$0xff]
        %v426 = vld [vmem:[%s401 + $0x78] sm:$0xff]
        %v427 = vlaneseq
        %v428 = vand.u32 %v427, 127
        %429 = vset.pattern.permute.xlu0 0
        %430 = vperm.xlu0 %429, %v411
        %v431 = vpop.permute.xlu0 %430
        %432 = vset.pattern.permute.xlu0 0
        %433 = vperm.xlu0 %432, %v412
        %v434 = vpop.permute.xlu0 %433
        %435 = vset.pattern.permute.xlu0 0
        %436 = vperm.xlu0 %435, %v413
        %v437 = vpop.permute.xlu0 %436
        %438 = vset.pattern.permute.xlu0 0
        %439 = vperm.xlu0 %438, %v414
        %v440 = vpop.permute.xlu0 %439
        %441 = vset.pattern.permute.xlu0 0
        %442 = vperm.xlu0 %441, %v415
        %v443 = vpop.permute.xlu0 %442
        %444 = vset.pattern.permute.xlu0 0
        %445 = vperm.xlu0 %444, %v416
        %v446 = vpop.permute.xlu0 %445
        %447 = vset.pattern.permute.xlu0 0
        %448 = vperm.xlu0 %447, %v417
        %v449 = vpop.permute.xlu0 %448
        %450 = vset.pattern.permute.xlu0 0
        %451 = vperm.xlu0 %450, %v418
        %v452 = vpop.permute.xlu0 %451
        %453 = vset.pattern.permute.xlu0 0
        %454 = vperm.xlu0 %453, %v419
        %v455 = vpop.permute.xlu0 %454
        %456 = vset.pattern.permute.xlu0 0
        %457 = vperm.xlu0 %456, %v420
        %v458 = vpop.permute.xlu0 %457
        %459 = vset.pattern.permute.xlu0 0
        %460 = vperm.xlu0 %459, %v421
        %v461 = vpop.permute.xlu0 %460
        %462 = vset.pattern.permute.xlu0 0
        %463 = vperm.xlu0 %462, %v422
        %v464 = vpop.permute.xlu0 %463
        %465 = vset.pattern.permute.xlu0 0
        %466 = vperm.xlu0 %465, %v423
        %v467 = vpop.permute.xlu0 %466
        %468 = vset.pattern.permute.xlu0 0
        %469 = vperm.xlu0 %468, %v424
        %v470 = vpop.permute.xlu0 %469
        %471 = vset.pattern.permute.xlu0 0
        %472 = vperm.xlu0 %471, %v425
        %v473 = vpop.permute.xlu0 %472
        %474 = vset.pattern.permute.xlu0 0
        %475 = vperm.xlu0 %474, %v426
        %v476 = vpop.permute.xlu0 %475
        %vm477 = vcmp.eq.s32.totalorder %v428, %v431
        %vm478 = vcmp.eq.s32.totalorder %v428, %v434
        %vm479 = vcmp.eq.s32.totalorder %v428, %v437
        %vm480 = vcmp.eq.s32.totalorder %v428, %v440
        %vm481 = vcmp.eq.s32.totalorder %v428, %v443
        %vm482 = vcmp.eq.s32.totalorder %v428, %v446
        %vm483 = vcmp.eq.s32.totalorder %v428, %v449
        %vm484 = vcmp.eq.s32.totalorder %v428, %v452
        %vm485 = vcmp.eq.s32.totalorder %v428, %v455
        %vm486 = vcmp.eq.s32.totalorder %v428, %v458
        %vm487 = vcmp.eq.s32.totalorder %v428, %v461
        %vm488 = vcmp.eq.s32.totalorder %v428, %v464
        %vm489 = vcmp.eq.s32.totalorder %v428, %v467
        %vm490 = vcmp.eq.s32.totalorder %v428, %v470
        %vm491 = vcmp.eq.s32.totalorder %v428, %v473
        %vm492 = vcmp.eq.s32.totalorder %v428, %v476
        %v493 = vadd.s32 %v411, 16
        %v494 = vadd.s32 %v412, 16
        %v495 = vadd.s32 %v413, 16
        %v496 = vadd.s32 %v414, 16
        %v497 = vadd.s32 %v415, 16
        %v498 = vadd.s32 %v416, 16
        %v499 = vadd.s32 %v417, 16
        %v500 = vadd.s32 %v418, 16
        %v501 = vadd.s32 %v419, 16
        %v502 = vadd.s32 %v420, 16
        %v503 = vadd.s32 %v421, 16
        %v504 = vadd.s32 %v422, 16
        %v505 = vadd.s32 %v423, 16
        %v506 = vadd.s32 %v424, 16
        %v507 = vadd.s32 %v425, 16
        %v508 = vadd.s32 %v426, 16
        %509 = vset.pattern.permute.xlu0 1
        %510 = vperm.xlu0 %509, %v493
        %v511 = vpop.permute.xlu0 %510
        %512 = vset.pattern.permute.xlu0 1
        %513 = vperm.xlu0 %512, %v494
        %v514 = vpop.permute.xlu0 %513
        %515 = vset.pattern.permute.xlu0 1
        %516 = vperm.xlu0 %515, %v495
        %v517 = vpop.permute.xlu0 %516
        %518 = vset.pattern.permute.xlu0 1
        %519 = vperm.xlu0 %518, %v496
        %v520 = vpop.permute.xlu0 %519
        %521 = vset.pattern.permute.xlu0 1
        %522 = vperm.xlu0 %521, %v497
        %v523 = vpop.permute.xlu0 %522
        %524 = vset.pattern.permute.xlu0 1
        %525 = vperm.xlu0 %524, %v498
        %v526 = vpop.permute.xlu0 %525
        %527 = vset.pattern.permute.xlu0 1
        %528 = vperm.xlu0 %527, %v499
        %v529 = vpop.permute.xlu0 %528
        %530 = vset.pattern.permute.xlu0 1
        %531 = vperm.xlu0 %530, %v500
        %v532 = vpop.permute.xlu0 %531
        %533 = vset.pattern.permute.xlu0 1
        %534 = vperm.xlu0 %533, %v501
        %v535 = vpop.permute.xlu0 %534
        %536 = vset.pattern.permute.xlu0 1
        %537 = vperm.xlu0 %536, %v502
        %v538 = vpop.permute.xlu0 %537
        %539 = vset.pattern.permute.xlu0 1
        %540 = vperm.xlu0 %539, %v503
        %v541 = vpop.permute.xlu0 %540
        %542 = vset.pattern.permute.xlu0 1
        %543 = vperm.xlu0 %542, %v504
        %v544 = vpop.permute.xlu0 %543
        %545 = vset.pattern.permute.xlu0 1
        %546 = vperm.xlu0 %545, %v505
        %v547 = vpop.permute.xlu0 %546
        %548 = vset.pattern.permute.xlu0 1
        %549 = vperm.xlu0 %548, %v506
        %v550 = vpop.permute.xlu0 %549
        %551 = vset.pattern.permute.xlu0 1
        %552 = vperm.xlu0 %551, %v507
        %v553 = vpop.permute.xlu0 %552
        %554 = vset.pattern.permute.xlu0 1
        %555 = vperm.xlu0 %554, %v508
        %v556 = vpop.permute.xlu0 %555
        %vm557 = vcmp.eq.s32.totalorder %v428, %v511
        %vm558 = vcmp.eq.s32.totalorder %v428, %v514
        %vm559 = vcmp.eq.s32.totalorder %v428, %v517
        %vm560 = vcmp.eq.s32.totalorder %v428, %v520
        %vm561 = vcmp.eq.s32.totalorder %v428, %v523
        %vm562 = vcmp.eq.s32.totalorder %v428, %v526
        %vm563 = vcmp.eq.s32.totalorder %v428, %v529
        %vm564 = vcmp.eq.s32.totalorder %v428, %v532
        %vm565 = vcmp.eq.s32.totalorder %v428, %v535
        %vm566 = vcmp.eq.s32.totalorder %v428, %v538
        %vm567 = vcmp.eq.s32.totalorder %v428, %v541
        %vm568 = vcmp.eq.s32.totalorder %v428, %v544
        %vm569 = vcmp.eq.s32.totalorder %v428, %v547
        %vm570 = vcmp.eq.s32.totalorder %v428, %v550
        %vm571 = vcmp.eq.s32.totalorder %v428, %v553
        %vm572 = vcmp.eq.s32.totalorder %v428, %v556
        %vm573 = vmor %vm477, %vm557
        %vm574 = vmor %vm478, %vm558
        %vm575 = vmor %vm479, %vm559
        %vm576 = vmor %vm480, %vm560
        %vm577 = vmor %vm481, %vm561
        %vm578 = vmor %vm482, %vm562
        %vm579 = vmor %vm483, %vm563
        %vm580 = vmor %vm484, %vm564
        %vm581 = vmor %vm485, %vm565
        %vm582 = vmor %vm486, %vm566
        %vm583 = vmor %vm487, %vm567
        %vm584 = vmor %vm488, %vm568
        %vm585 = vmor %vm489, %vm569
        %vm586 = vmor %vm490, %vm570
        %vm587 = vmor %vm491, %vm571
        %vm588 = vmor %vm492, %vm572
        %v589 = vadd.s32 %v411, 32
        %v590 = vadd.s32 %v412, 32
        %v591 = vadd.s32 %v413, 32
        %v592 = vadd.s32 %v414, 32
        %v593 = vadd.s32 %v415, 32
        %v594 = vadd.s32 %v416, 32
        %v595 = vadd.s32 %v417, 32
        %v596 = vadd.s32 %v418, 32
        %v597 = vadd.s32 %v419, 32
        %v598 = vadd.s32 %v420, 32
        %v599 = vadd.s32 %v421, 32
        %v600 = vadd.s32 %v422, 32
        %v601 = vadd.s32 %v423, 32
        %v602 = vadd.s32 %v424, 32
        %v603 = vadd.s32 %v425, 32
        %v604 = vadd.s32 %v426, 32
        %605 = vset.pattern.permute.xlu0 2
        %606 = vperm.xlu0 %605, %v589
        %v607 = vpop.permute.xlu0 %606
        %608 = vset.pattern.permute.xlu0 2
        %609 = vperm.xlu0 %608, %v590
        %v610 = vpop.permute.xlu0 %609
        %611 = vset.pattern.permute.xlu0 2
        %612 = vperm.xlu0 %611, %v591
        %v613 = vpop.permute.xlu0 %612
        %614 = vset.pattern.permute.xlu0 2
        %615 = vperm.xlu0 %614, %v592
        %v616 = vpop.permute.xlu0 %615
        %617 = vset.pattern.permute.xlu0 2
        %618 = vperm.xlu0 %617, %v593
        %v619 = vpop.permute.xlu0 %618
        %620 = vset.pattern.permute.xlu0 2
        %621 = vperm.xlu0 %620, %v594
        %v622 = vpop.permute.xlu0 %621
        %623 = vset.pattern.permute.xlu0 2
        %624 = vperm.xlu0 %623, %v595
        %v625 = vpop.permute.xlu0 %624
        %626 = vset.pattern.permute.xlu0 2
        %627 = vperm.xlu0 %626, %v596
        %v628 = vpop.permute.xlu0 %627
        %629 = vset.pattern.permute.xlu0 2
        %630 = vperm.xlu0 %629, %v597
        %v631 = vpop.permute.xlu0 %630
        %632 = vset.pattern.permute.xlu0 2
        %633 = vperm.xlu0 %632, %v598
        %v634 = vpop.permute.xlu0 %633
        %635 = vset.pattern.permute.xlu0 2
        %636 = vperm.xlu0 %635, %v599
        %v637 = vpop.permute.xlu0 %636
        %638 = vset.pattern.permute.xlu0 2
        %639 = vperm.xlu0 %638, %v600
        %v640 = vpop.permute.xlu0 %639
        %641 = vset.pattern.permute.xlu0 2
        %642 = vperm.xlu0 %641, %v601
        %v643 = vpop.permute.xlu0 %642
        %644 = vset.pattern.permute.xlu0 2
        %645 = vperm.xlu0 %644, %v602
        %v646 = vpop.permute.xlu0 %645
        %647 = vset.pattern.permute.xlu0 2
        %648 = vperm.xlu0 %647, %v603
        %v649 = vpop.permute.xlu0 %648
        %650 = vset.pattern.permute.xlu0 2
        %651 = vperm.xlu0 %650, %v604
        %v652 = vpop.permute.xlu0 %651
        %vm653 = vcmp.eq.s32.totalorder %v428, %v607
        %vm654 = vcmp.eq.s32.totalorder %v428, %v610
        %vm655 = vcmp.eq.s32.totalorder %v428, %v613
        %vm656 = vcmp.eq.s32.totalorder %v428, %v616
        %vm657 = vcmp.eq.s32.totalorder %v428, %v619
        %vm658 = vcmp.eq.s32.totalorder %v428, %v622
        %vm659 = vcmp.eq.s32.totalorder %v428, %v625
        %vm660 = vcmp.eq.s32.totalorder %v428, %v628
        %vm661 = vcmp.eq.s32.totalorder %v428, %v631
        %vm662 = vcmp.eq.s32.totalorder %v428, %v634
        %vm663 = vcmp.eq.s32.totalorder %v428, %v637
        %vm664 = vcmp.eq.s32.totalorder %v428, %v640
        %vm665 = vcmp.eq.s32.totalorder %v428, %v643
        %vm666 = vcmp.eq.s32.totalorder %v428, %v646
        %vm667 = vcmp.eq.s32.totalorder %v428, %v649
        %vm668 = vcmp.eq.s32.totalorder %v428, %v652
        %vm669 = vmor %vm573, %vm653
        %vm670 = vmor %vm574, %vm654
        %vm671 = vmor %vm575, %vm655
        %vm672 = vmor %vm576, %vm656
        %vm673 = vmor %vm577, %vm657
        %vm674 = vmor %vm578, %vm658
        %vm675 = vmor %vm579, %vm659
        %vm676 = vmor %vm580, %vm660
        %vm677 = vmor %vm581, %vm661
        %vm678 = vmor %vm582, %vm662
        %vm679 = vmor %vm583, %vm663
        %vm680 = vmor %vm584, %vm664
        %vm681 = vmor %vm585, %vm665
        %vm682 = vmor %vm586, %vm666
        %vm683 = vmor %vm587, %vm667
        %vm684 = vmor %vm588, %vm668
        %v685 = vadd.s32 %v411, 48
        %v686 = vadd.s32 %v412, 48
        %v687 = vadd.s32 %v413, 48
        %v688 = vadd.s32 %v414, 48
        %v689 = vadd.s32 %v415, 48
        %v690 = vadd.s32 %v416, 48
        %v691 = vadd.s32 %v417, 48
        %v692 = vadd.s32 %v418, 48
        %v693 = vadd.s32 %v419, 48
        %v694 = vadd.s32 %v420, 48
        %v695 = vadd.s32 %v421, 48
        %v696 = vadd.s32 %v422, 48
        %v697 = vadd.s32 %v423, 48
        %v698 = vadd.s32 %v424, 48
        %v699 = vadd.s32 %v425, 48
        %v700 = vadd.s32 %v426, 48
        %701 = vset.pattern.permute.xlu0 3
        %702 = vperm.xlu0 %701, %v685
        %v703 = vpop.permute.xlu0 %702
        %704 = vset.pattern.permute.xlu0 3
        %705 = vperm.xlu0 %704, %v686
        %v706 = vpop.permute.xlu0 %705
        %707 = vset.pattern.permute.xlu0 3
        %708 = vperm.xlu0 %707, %v687
        %v709 = vpop.permute.xlu0 %708
        %710 = vset.pattern.permute.xlu0 3
        %711 = vperm.xlu0 %710, %v688
        %v712 = vpop.permute.xlu0 %711
        %713 = vset.pattern.permute.xlu0 3
        %714 = vperm.xlu0 %713, %v689
        %v715 = vpop.permute.xlu0 %714
        %716 = vset.pattern.permute.xlu0 3
        %717 = vperm.xlu0 %716, %v690
        %v718 = vpop.permute.xlu0 %717
        %719 = vset.pattern.permute.xlu0 3
        %720 = vperm.xlu0 %719, %v691
        %v721 = vpop.permute.xlu0 %720
        %722 = vset.pattern.permute.xlu0 3
        %723 = vperm.xlu0 %722, %v692
        %v724 = vpop.permute.xlu0 %723
        %725 = vset.pattern.permute.xlu0 3
        %726 = vperm.xlu0 %725, %v693
        %v727 = vpop.permute.xlu0 %726
        %728 = vset.pattern.permute.xlu0 3
        %729 = vperm.xlu0 %728, %v694
        %v730 = vpop.permute.xlu0 %729
        %731 = vset.pattern.permute.xlu0 3
        %732 = vperm.xlu0 %731, %v695
        %v733 = vpop.permute.xlu0 %732
        %734 = vset.pattern.permute.xlu0 3
        %735 = vperm.xlu0 %734, %v696
        %v736 = vpop.permute.xlu0 %735
        %737 = vset.pattern.permute.xlu0 3
        %738 = vperm.xlu0 %737, %v697
        %v739 = vpop.permute.xlu0 %738
        %740 = vset.pattern.permute.xlu0 3
        %741 = vperm.xlu0 %740, %v698
        %v742 = vpop.permute.xlu0 %741
        %743 = vset.pattern.permute.xlu0 3
        %744 = vperm.xlu0 %743, %v699
        %v745 = vpop.permute.xlu0 %744
        %746 = vset.pattern.permute.xlu0 3
        %747 = vperm.xlu0 %746, %v700
        %v748 = vpop.permute.xlu0 %747
        %vm749 = vcmp.eq.s32.totalorder %v428, %v703
        %vm750 = vcmp.eq.s32.totalorder %v428, %v706
        %vm751 = vcmp.eq.s32.totalorder %v428, %v709
        %vm752 = vcmp.eq.s32.totalorder %v428, %v712
        %vm753 = vcmp.eq.s32.totalorder %v428, %v715
        %vm754 = vcmp.eq.s32.totalorder %v428, %v718
        %vm755 = vcmp.eq.s32.totalorder %v428, %v721
        %vm756 = vcmp.eq.s32.totalorder %v428, %v724
        %vm757 = vcmp.eq.s32.totalorder %v428, %v727
        %vm758 = vcmp.eq.s32.totalorder %v428, %v730
        %vm759 = vcmp.eq.s32.totalorder %v428, %v733
        %vm760 = vcmp.eq.s32.totalorder %v428, %v736
        %vm761 = vcmp.eq.s32.totalorder %v428, %v739
        %vm762 = vcmp.eq.s32.totalorder %v428, %v742
        %vm763 = vcmp.eq.s32.totalorder %v428, %v745
        %vm764 = vcmp.eq.s32.totalorder %v428, %v748
        %vm765 = vmor %vm669, %vm749
        %vm766 = vmor %vm670, %vm750
        %vm767 = vmor %vm671, %vm751
        %vm768 = vmor %vm672, %vm752
        %vm769 = vmor %vm673, %vm753
        %vm770 = vmor %vm674, %vm754
        %vm771 = vmor %vm675, %vm755
        %vm772 = vmor %vm676, %vm756
        %vm773 = vmor %vm677, %vm757
        %vm774 = vmor %vm678, %vm758
        %vm775 = vmor %vm679, %vm759
        %vm776 = vmor %vm680, %vm760
        %vm777 = vmor %vm681, %vm761
        %vm778 = vmor %vm682, %vm762
        %vm779 = vmor %vm683, %vm763
        %vm780 = vmor %vm684, %vm764
        %v781 = vadd.s32 %v411, 64
        %v782 = vadd.s32 %v412, 64
        %v783 = vadd.s32 %v413, 64
        %v784 = vadd.s32 %v414, 64
        %v785 = vadd.s32 %v415, 64
        %v786 = vadd.s32 %v416, 64
        %v787 = vadd.s32 %v417, 64
        %v788 = vadd.s32 %v418, 64
        %v789 = vadd.s32 %v419, 64
        %v790 = vadd.s32 %v420, 64
        %v791 = vadd.s32 %v421, 64
        %v792 = vadd.s32 %v422, 64
        %v793 = vadd.s32 %v423, 64
        %v794 = vadd.s32 %v424, 64
        %v795 = vadd.s32 %v425, 64
        %v796 = vadd.s32 %v426, 64
        %797 = vset.pattern.permute.xlu0 4
        %798 = vperm.xlu0 %797, %v781
        %v799 = vpop.permute.xlu0 %798
        %800 = vset.pattern.permute.xlu0 4
        %801 = vperm.xlu0 %800, %v782
        %v802 = vpop.permute.xlu0 %801
        %803 = vset.pattern.permute.xlu0 4
        %804 = vperm.xlu0 %803, %v783
        %v805 = vpop.permute.xlu0 %804
        %806 = vset.pattern.permute.xlu0 4
        %807 = vperm.xlu0 %806, %v784
        %v808 = vpop.permute.xlu0 %807
        %809 = vset.pattern.permute.xlu0 4
        %810 = vperm.xlu0 %809, %v785
        %v811 = vpop.permute.xlu0 %810
        %812 = vset.pattern.permute.xlu0 4
        %813 = vperm.xlu0 %812, %v786
        %v814 = vpop.permute.xlu0 %813
        %815 = vset.pattern.permute.xlu0 4
        %816 = vperm.xlu0 %815, %v787
        %v817 = vpop.permute.xlu0 %816
        %818 = vset.pattern.permute.xlu0 4
        %819 = vperm.xlu0 %818, %v788
        %v820 = vpop.permute.xlu0 %819
        %821 = vset.pattern.permute.xlu0 4
        %822 = vperm.xlu0 %821, %v789
        %v823 = vpop.permute.xlu0 %822
        %824 = vset.pattern.permute.xlu0 4
        %825 = vperm.xlu0 %824, %v790
        %v826 = vpop.permute.xlu0 %825
        %827 = vset.pattern.permute.xlu0 4
        %828 = vperm.xlu0 %827, %v791
        %v829 = vpop.permute.xlu0 %828
        %830 = vset.pattern.permute.xlu0 4
        %831 = vperm.xlu0 %830, %v792
        %v832 = vpop.permute.xlu0 %831
        %833 = vset.pattern.permute.xlu0 4
        %834 = vperm.xlu0 %833, %v793
        %v835 = vpop.permute.xlu0 %834
        %836 = vset.pattern.permute.xlu0 4
        %837 = vperm.xlu0 %836, %v794
        %v838 = vpop.permute.xlu0 %837
        %839 = vset.pattern.permute.xlu0 4
        %840 = vperm.xlu0 %839, %v795
        %v841 = vpop.permute.xlu0 %840
        %842 = vset.pattern.permute.xlu0 4
        %843 = vperm.xlu0 %842, %v796
        %v844 = vpop.permute.xlu0 %843
        %vm845 = vcmp.eq.s32.totalorder %v428, %v799
        %vm846 = vcmp.eq.s32.totalorder %v428, %v802
        %vm847 = vcmp.eq.s32.totalorder %v428, %v805
        %vm848 = vcmp.eq.s32.totalorder %v428, %v808
        %vm849 = vcmp.eq.s32.totalorder %v428, %v811
        %vm850 = vcmp.eq.s32.totalorder %v428, %v814
        %vm851 = vcmp.eq.s32.totalorder %v428, %v817
        %vm852 = vcmp.eq.s32.totalorder %v428, %v820
        %vm853 = vcmp.eq.s32.totalorder %v428, %v823
        %vm854 = vcmp.eq.s32.totalorder %v428, %v826
        %vm855 = vcmp.eq.s32.totalorder %v428, %v829
        %vm856 = vcmp.eq.s32.totalorder %v428, %v832
        %vm857 = vcmp.eq.s32.totalorder %v428, %v835
        %vm858 = vcmp.eq.s32.totalorder %v428, %v838
        %vm859 = vcmp.eq.s32.totalorder %v428, %v841
        %vm860 = vcmp.eq.s32.totalorder %v428, %v844
        %vm861 = vmor %vm765, %vm845
        %vm862 = vmor %vm766, %vm846
        %vm863 = vmor %vm767, %vm847
        %vm864 = vmor %vm768, %vm848
        %vm865 = vmor %vm769, %vm849
        %vm866 = vmor %vm770, %vm850
        %vm867 = vmor %vm771, %vm851
        %vm868 = vmor %vm772, %vm852
        %vm869 = vmor %vm773, %vm853
        %vm870 = vmor %vm774, %vm854
        %vm871 = vmor %vm775, %vm855
        %vm872 = vmor %vm776, %vm856
        %vm873 = vmor %vm777, %vm857
        %vm874 = vmor %vm778, %vm858
        %vm875 = vmor %vm779, %vm859
        %vm876 = vmor %vm780, %vm860
        %v877 = vadd.s32 %v411, 80
        %v878 = vadd.s32 %v412, 80
        %v879 = vadd.s32 %v413, 80
        %v880 = vadd.s32 %v414, 80
        %v881 = vadd.s32 %v415, 80
        %v882 = vadd.s32 %v416, 80
        %v883 = vadd.s32 %v417, 80
        %v884 = vadd.s32 %v418, 80
        %v885 = vadd.s32 %v419, 80
        %v886 = vadd.s32 %v420, 80
        %v887 = vadd.s32 %v421, 80
        %v888 = vadd.s32 %v422, 80
        %v889 = vadd.s32 %v423, 80
        %v890 = vadd.s32 %v424, 80
        %v891 = vadd.s32 %v425, 80
        %v892 = vadd.s32 %v426, 80
        %893 = vset.pattern.permute.xlu0 5
        %894 = vperm.xlu0 %893, %v877
        %v895 = vpop.permute.xlu0 %894
        %896 = vset.pattern.permute.xlu0 5
        %897 = vperm.xlu0 %896, %v878
        %v898 = vpop.permute.xlu0 %897
        %899 = vset.pattern.permute.xlu0 5
        %900 = vperm.xlu0 %899, %v879
        %v901 = vpop.permute.xlu0 %900
        %902 = vset.pattern.permute.xlu0 5
        %903 = vperm.xlu0 %902, %v880
        %v904 = vpop.permute.xlu0 %903
        %905 = vset.pattern.permute.xlu0 5
        %906 = vperm.xlu0 %905, %v881
        %v907 = vpop.permute.xlu0 %906
        %908 = vset.pattern.permute.xlu0 5
        %909 = vperm.xlu0 %908, %v882
        %v910 = vpop.permute.xlu0 %909
        %911 = vset.pattern.permute.xlu0 5
        %912 = vperm.xlu0 %911, %v883
        %v913 = vpop.permute.xlu0 %912
        %914 = vset.pattern.permute.xlu0 5
        %915 = vperm.xlu0 %914, %v884
        %v916 = vpop.permute.xlu0 %915
        %917 = vset.pattern.permute.xlu0 5
        %918 = vperm.xlu0 %917, %v885
        %v919 = vpop.permute.xlu0 %918
        %920 = vset.pattern.permute.xlu0 5
        %921 = vperm.xlu0 %920, %v886
        %v922 = vpop.permute.xlu0 %921
        %923 = vset.pattern.permute.xlu0 5
        %924 = vperm.xlu0 %923, %v887
        %v925 = vpop.permute.xlu0 %924
        %926 = vset.pattern.permute.xlu0 5
        %927 = vperm.xlu0 %926, %v888
        %v928 = vpop.permute.xlu0 %927
        %929 = vset.pattern.permute.xlu0 5
        %930 = vperm.xlu0 %929, %v889
        %v931 = vpop.permute.xlu0 %930
        %932 = vset.pattern.permute.xlu0 5
        %933 = vperm.xlu0 %932, %v890
        %v934 = vpop.permute.xlu0 %933
        %935 = vset.pattern.permute.xlu0 5
        %936 = vperm.xlu0 %935, %v891
        %v937 = vpop.permute.xlu0 %936
        %938 = vset.pattern.permute.xlu0 5
        %939 = vperm.xlu0 %938, %v892
        %v940 = vpop.permute.xlu0 %939
        %vm941 = vcmp.eq.s32.totalorder %v428, %v895
        %vm942 = vcmp.eq.s32.totalorder %v428, %v898
        %vm943 = vcmp.eq.s32.totalorder %v428, %v901
        %vm944 = vcmp.eq.s32.totalorder %v428, %v904
        %vm945 = vcmp.eq.s32.totalorder %v428, %v907
        %vm946 = vcmp.eq.s32.totalorder %v428, %v910
        %vm947 = vcmp.eq.s32.totalorder %v428, %v913
        %vm948 = vcmp.eq.s32.totalorder %v428, %v916
        %vm949 = vcmp.eq.s32.totalorder %v428, %v919
        %vm950 = vcmp.eq.s32.totalorder %v428, %v922
        %vm951 = vcmp.eq.s32.totalorder %v428, %v925
        %vm952 = vcmp.eq.s32.totalorder %v428, %v928
        %vm953 = vcmp.eq.s32.totalorder %v428, %v931
        %vm954 = vcmp.eq.s32.totalorder %v428, %v934
        %vm955 = vcmp.eq.s32.totalorder %v428, %v937
        %vm956 = vcmp.eq.s32.totalorder %v428, %v940
        %vm957 = vmor %vm861, %vm941
        %vm958 = vmor %vm862, %vm942
        %vm959 = vmor %vm863, %vm943
        %vm960 = vmor %vm864, %vm944
        %vm961 = vmor %vm865, %vm945
        %vm962 = vmor %vm866, %vm946
        %vm963 = vmor %vm867, %vm947
        %vm964 = vmor %vm868, %vm948
        %vm965 = vmor %vm869, %vm949
        %vm966 = vmor %vm870, %vm950
        %vm967 = vmor %vm871, %vm951
        %vm968 = vmor %vm872, %vm952
        %vm969 = vmor %vm873, %vm953
        %vm970 = vmor %vm874, %vm954
        %vm971 = vmor %vm875, %vm955
        %vm972 = vmor %vm876, %vm956
        %v973 = vadd.s32 %v411, 96
        %v974 = vadd.s32 %v412, 96
        %v975 = vadd.s32 %v413, 96
        %v976 = vadd.s32 %v414, 96
        %v977 = vadd.s32 %v415, 96
        %v978 = vadd.s32 %v416, 96
        %v979 = vadd.s32 %v417, 96
        %v980 = vadd.s32 %v418, 96
        %v981 = vadd.s32 %v419, 96
        %v982 = vadd.s32 %v420, 96
        %v983 = vadd.s32 %v421, 96
        %v984 = vadd.s32 %v422, 96
        %v985 = vadd.s32 %v423, 96
        %v986 = vadd.s32 %v424, 96
        %v987 = vadd.s32 %v425, 96
        %v988 = vadd.s32 %v426, 96
        %989 = vset.pattern.permute.xlu0 6
        %990 = vperm.xlu0 %989, %v973
        %v991 = vpop.permute.xlu0 %990
        %992 = vset.pattern.permute.xlu0 6
        %993 = vperm.xlu0 %992, %v974
        %v994 = vpop.permute.xlu0 %993
        %995 = vset.pattern.permute.xlu0 6
        %996 = vperm.xlu0 %995, %v975
        %v997 = vpop.permute.xlu0 %996
        %998 = vset.pattern.permute.xlu0 6
        %999 = vperm.xlu0 %998, %v976
        %v1000 = vpop.permute.xlu0 %999
        %1001 = vset.pattern.permute.xlu0 6
        %1002 = vperm.xlu0 %1001, %v977
        %v1003 = vpop.permute.xlu0 %1002
        %1004 = vset.pattern.permute.xlu0 6
        %1005 = vperm.xlu0 %1004, %v978
        %v1006 = vpop.permute.xlu0 %1005
        %1007 = vset.pattern.permute.xlu0 6
        %1008 = vperm.xlu0 %1007, %v979
        %v1009 = vpop.permute.xlu0 %1008
        %1010 = vset.pattern.permute.xlu0 6
        %1011 = vperm.xlu0 %1010, %v980
        %v1012 = vpop.permute.xlu0 %1011
        %1013 = vset.pattern.permute.xlu0 6
        %1014 = vperm.xlu0 %1013, %v981
        %v1015 = vpop.permute.xlu0 %1014
        %1016 = vset.pattern.permute.xlu0 6
        %1017 = vperm.xlu0 %1016, %v982
        %v1018 = vpop.permute.xlu0 %1017
        %1019 = vset.pattern.permute.xlu0 6
        %1020 = vperm.xlu0 %1019, %v983
        %v1021 = vpop.permute.xlu0 %1020
        %1022 = vset.pattern.permute.xlu0 6
        %1023 = vperm.xlu0 %1022, %v984
        %v1024 = vpop.permute.xlu0 %1023
        %1025 = vset.pattern.permute.xlu0 6
        %1026 = vperm.xlu0 %1025, %v985
        %v1027 = vpop.permute.xlu0 %1026
        %1028 = vset.pattern.permute.xlu0 6
        %1029 = vperm.xlu0 %1028, %v986
        %v1030 = vpop.permute.xlu0 %1029
        %1031 = vset.pattern.permute.xlu0 6
        %1032 = vperm.xlu0 %1031, %v987
        %v1033 = vpop.permute.xlu0 %1032
        %1034 = vset.pattern.permute.xlu0 6
        %1035 = vperm.xlu0 %1034, %v988
        %v1036 = vpop.permute.xlu0 %1035
        %vm1037 = vcmp.eq.s32.totalorder %v428, %v991
        %vm1038 = vcmp.eq.s32.totalorder %v428, %v994
        %vm1039 = vcmp.eq.s32.totalorder %v428, %v997
        %vm1040 = vcmp.eq.s32.totalorder %v428, %v1000
        %vm1041 = vcmp.eq.s32.totalorder %v428, %v1003
        %vm1042 = vcmp.eq.s32.totalorder %v428, %v1006
        %vm1043 = vcmp.eq.s32.totalorder %v428, %v1009
        %vm1044 = vcmp.eq.s32.totalorder %v428, %v1012
        %vm1045 = vcmp.eq.s32.totalorder %v428, %v1015
        %vm1046 = vcmp.eq.s32.totalorder %v428, %v1018
        %vm1047 = vcmp.eq.s32.totalorder %v428, %v1021
        %vm1048 = vcmp.eq.s32.totalorder %v428, %v1024
        %vm1049 = vcmp.eq.s32.totalorder %v428, %v1027
        %vm1050 = vcmp.eq.s32.totalorder %v428, %v1030
        %vm1051 = vcmp.eq.s32.totalorder %v428, %v1033
        %vm1052 = vcmp.eq.s32.totalorder %v428, %v1036
        %vm1053 = vmor %vm957, %vm1037
        %vm1054 = vmor %vm958, %vm1038
        %vm1055 = vmor %vm959, %vm1039
        %vm1056 = vmor %vm960, %vm1040
        %vm1057 = vmor %vm961, %vm1041
        %vm1058 = vmor %vm962, %vm1042
        %vm1059 = vmor %vm963, %vm1043
        %vm1060 = vmor %vm964, %vm1044
        %vm1061 = vmor %vm965, %vm1045
        %vm1062 = vmor %vm966, %vm1046
        %vm1063 = vmor %vm967, %vm1047
        %vm1064 = vmor %vm968, %vm1048
        %vm1065 = vmor %vm969, %vm1049
        %vm1066 = vmor %vm970, %vm1050
        %vm1067 = vmor %vm971, %vm1051
        %vm1068 = vmor %vm972, %vm1052
        %v1069 = vadd.s32 %v411, 112
        %v1070 = vadd.s32 %v412, 112
        %v1071 = vadd.s32 %v413, 112
        %v1072 = vadd.s32 %v414, 112
        %v1073 = vadd.s32 %v415, 112
        %v1074 = vadd.s32 %v416, 112
        %v1075 = vadd.s32 %v417, 112
        %v1076 = vadd.s32 %v418, 112
        %v1077 = vadd.s32 %v419, 112
        %v1078 = vadd.s32 %v420, 112
        %v1079 = vadd.s32 %v421, 112
        %v1080 = vadd.s32 %v422, 112
        %v1081 = vadd.s32 %v423, 112
        %v1082 = vadd.s32 %v424, 112
        %v1083 = vadd.s32 %v425, 112
        %v1084 = vadd.s32 %v426, 112
        %1085 = vset.pattern.permute.xlu0 7
        %1086 = vperm.xlu0 %1085, %v1069
        %v1087 = vpop.permute.xlu0 %1086
        %1088 = vset.pattern.permute.xlu0 7
        %1089 = vperm.xlu0 %1088, %v1070
        %v1090 = vpop.permute.xlu0 %1089
        %1091 = vset.pattern.permute.xlu0 7
        %1092 = vperm.xlu0 %1091, %v1071
        %v1093 = vpop.permute.xlu0 %1092
        %1094 = vset.pattern.permute.xlu0 7
        %1095 = vperm.xlu0 %1094, %v1072
        %v1096 = vpop.permute.xlu0 %1095
        %1097 = vset.pattern.permute.xlu0 7
        %1098 = vperm.xlu0 %1097, %v1073
        %v1099 = vpop.permute.xlu0 %1098
        %1100 = vset.pattern.permute.xlu0 7
        %1101 = vperm.xlu0 %1100, %v1074
        %v1102 = vpop.permute.xlu0 %1101
        %1103 = vset.pattern.permute.xlu0 7
        %1104 = vperm.xlu0 %1103, %v1075
        %v1105 = vpop.permute.xlu0 %1104
        %1106 = vset.pattern.permute.xlu0 7
        %1107 = vperm.xlu0 %1106, %v1076
        %v1108 = vpop.permute.xlu0 %1107
        %1109 = vset.pattern.permute.xlu0 7
        %1110 = vperm.xlu0 %1109, %v1077
        %v1111 = vpop.permute.xlu0 %1110
        %1112 = vset.pattern.permute.xlu0 7
        %1113 = vperm.xlu0 %1112, %v1078
        %v1114 = vpop.permute.xlu0 %1113
        %1115 = vset.pattern.permute.xlu0 7
        %1116 = vperm.xlu0 %1115, %v1079
        %v1117 = vpop.permute.xlu0 %1116
        %1118 = vset.pattern.permute.xlu0 7
        %1119 = vperm.xlu0 %1118, %v1080
        %v1120 = vpop.permute.xlu0 %1119
        %1121 = vset.pattern.permute.xlu0 7
        %1122 = vperm.xlu0 %1121, %v1081
        %v1123 = vpop.permute.xlu0 %1122
        %1124 = vset.pattern.permute.xlu0 7
        %1125 = vperm.xlu0 %1124, %v1082
        %v1126 = vpop.permute.xlu0 %1125
        %1127 = vset.pattern.permute.xlu0 7
        %1128 = vperm.xlu0 %1127, %v1083
        %v1129 = vpop.permute.xlu0 %1128
        %1130 = vset.pattern.permute.xlu0 7
        %1131 = vperm.xlu0 %1130, %v1084
        %v1132 = vpop.permute.xlu0 %1131
        %vm1133 = vcmp.eq.s32.totalorder %v428, %v1087
        %vm1134 = vcmp.eq.s32.totalorder %v428, %v1090
        %vm1135 = vcmp.eq.s32.totalorder %v428, %v1093
        %vm1136 = vcmp.eq.s32.totalorder %v428, %v1096
        %vm1137 = vcmp.eq.s32.totalorder %v428, %v1099
        %vm1138 = vcmp.eq.s32.totalorder %v428, %v1102
        %vm1139 = vcmp.eq.s32.totalorder %v428, %v1105
        %vm1140 = vcmp.eq.s32.totalorder %v428, %v1108
        %vm1141 = vcmp.eq.s32.totalorder %v428, %v1111
        %vm1142 = vcmp.eq.s32.totalorder %v428, %v1114
        %vm1143 = vcmp.eq.s32.totalorder %v428, %v1117
        %vm1144 = vcmp.eq.s32.totalorder %v428, %v1120
        %vm1145 = vcmp.eq.s32.totalorder %v428, %v1123
        %vm1146 = vcmp.eq.s32.totalorder %v428, %v1126
        %vm1147 = vcmp.eq.s32.totalorder %v428, %v1129
        %vm1148 = vcmp.eq.s32.totalorder %v428, %v1132
        %vm1149 = vmor %vm1053, %vm1133
        %vm1150 = vmor %vm1054, %vm1134
        %vm1151 = vmor %vm1055, %vm1135
        %vm1152 = vmor %vm1056, %vm1136
        %vm1153 = vmor %vm1057, %vm1137
        %vm1154 = vmor %vm1058, %vm1138
        %vm1155 = vmor %vm1059, %vm1139
        %vm1156 = vmor %vm1060, %vm1140
        %vm1157 = vmor %vm1061, %vm1141
        %vm1158 = vmor %vm1062, %vm1142
        %vm1159 = vmor %vm1063, %vm1143
        %vm1160 = vmor %vm1064, %vm1144
        %vm1161 = vmor %vm1065, %vm1145
        %vm1162 = vmor %vm1066, %vm1146
        %vm1163 = vmor %vm1067, %vm1147
        %vm1164 = vmor %vm1068, %vm1148
        %v1165 = vsel %vm1149, 1.0, 0.0
        %v1166 = vsel %vm1150, 1.0, 0.0
        %v1167 = vsel %vm1151, 1.0, 0.0
        %v1168 = vsel %vm1152, 1.0, 0.0
        %v1169 = vsel %vm1153, 1.0, 0.0
        %v1170 = vsel %vm1154, 1.0, 0.0
        %v1171 = vsel %vm1155, 1.0, 0.0
        %v1172 = vsel %vm1156, 1.0, 0.0
        %v1173 = vsel %vm1157, 1.0, 0.0
        %v1174 = vsel %vm1158, 1.0, 0.0
        %v1175 = vsel %vm1159, 1.0, 0.0
        %v1176 = vsel %vm1160, 1.0, 0.0
        %v1177 = vsel %vm1161, 1.0, 0.0
        %v1178 = vsel %vm1162, 1.0, 0.0
        %v1179 = vsel %vm1163, 1.0, 0.0
        %v1180 = vsel %vm1164, 1.0, 0.0
        %v1181 = vpack.c.bf16 %v1166, %v1165
        %v1182 = vpack.c.bf16 %v1168, %v1167
        %v1183 = vpack.c.bf16 %v1170, %v1169
        %v1184 = vpack.c.bf16 %v1172, %v1171
        %v1185 = vpack.c.bf16 %v1174, %v1173
        %v1186 = vpack.c.bf16 %v1176, %v1175
        %v1187 = vpack.c.bf16 %v1178, %v1177
        %v1188 = vpack.c.bf16 %v1180, %v1179
        %v1189 = vld [vmem:[%s4] sm:$0xf]
        %v1190 = vld [vmem:[%s4 + $0x4] sm:$0xf]
        %v1191 = vld [vmem:[%s4 + $0x8] sm:$0xf]
        %v1192 = vld [vmem:[%s4 + $0xc] sm:$0xf]
        %v1193 = vld [vmem:[%s4 + $0x10] sm:$0xf]
        %v1194 = vld [vmem:[%s4 + $0x14] sm:$0xf]
        %v1195 = vld [vmem:[%s4 + $0x18] sm:$0xf]
        %v1196 = vld [vmem:[%s4 + $0x1c] sm:$0xf]
        %v1197 = vld [vmem:[%s4 + $0x20] sm:$0xf]
        %v1198 = vld [vmem:[%s4 + $0x24] sm:$0xf]
        %v1199 = vld [vmem:[%s4 + $0x28] sm:$0xf]
        %v1200 = vld [vmem:[%s4 + $0x2c] sm:$0xf]
        %v1201 = vld [vmem:[%s4 + $0x30] sm:$0xf]
        %v1202 = vld [vmem:[%s4 + $0x34] sm:$0xf]
        %v1203 = vld [vmem:[%s4 + $0x38] sm:$0xf]
        %v1204 = vld [vmem:[%s4 + $0x3c] sm:$0xf]
        %v1205 = vld [vmem:[%s407] sm:$0xff]
        %v1206 = vld [vmem:[%s407 + $0x8] sm:$0xff]
        %v1207 = vld [vmem:[%s407 + $0x10] sm:$0xff]
        %v1208 = vld [vmem:[%s407 + $0x18] sm:$0xff]
        %v1209 = vld [vmem:[%s407 + $0x20] sm:$0xff]
        %v1210 = vld [vmem:[%s407 + $0x28] sm:$0xff]
        %v1211 = vld [vmem:[%s407 + $0x30] sm:$0xff]
        %v1212 = vld [vmem:[%s407 + $0x38] sm:$0xff]
        %v1213 = vld [vmem:[%s407 + $0x40] sm:$0xff]
        %v1214 = vld [vmem:[%s407 + $0x48] sm:$0xff]
        %v1215 = vld [vmem:[%s407 + $0x50] sm:$0xff]
        %v1216 = vld [vmem:[%s407 + $0x58] sm:$0xff]
        %v1217 = vld [vmem:[%s407 + $0x60] sm:$0xff]
        %v1218 = vld [vmem:[%s407 + $0x68] sm:$0xff]
        %v1219 = vld [vmem:[%s407 + $0x70] sm:$0xff]
        %v1220 = vld [vmem:[%s407 + $0x78] sm:$0xff]
        %v1221 = vld [vmem:[%s2] sm:$0x1]
        %1223 = vset.pattern.permute.xlu0 0
        %1224 = vperm.xlu0 %1223, %v1205
        %v1225 = vpop.permute.xlu0 %1224
        %1228 = vset.pattern.permute.xlu0 0
        %1229 = vperm.xlu0 %1228, %v1206
        %v1230 = vpop.permute.xlu0 %1229
        %1233 = vset.pattern.permute.xlu0 0
        %1234 = vperm.xlu0 %1233, %v1207
        %v1235 = vpop.permute.xlu0 %1234
        %1238 = vset.pattern.permute.xlu0 0
        %1239 = vperm.xlu0 %1238, %v1208
        %v1240 = vpop.permute.xlu0 %1239
        %1243 = vset.pattern.permute.xlu0 0
        %1244 = vperm.xlu0 %1243, %v1209
        %v1245 = vpop.permute.xlu0 %1244
        %1248 = vset.pattern.permute.xlu0 0
        %1249 = vperm.xlu0 %1248, %v1210
        %v1250 = vpop.permute.xlu0 %1249
        %1253 = vset.pattern.permute.xlu0 0
        %1254 = vperm.xlu0 %1253, %v1211
        %v1255 = vpop.permute.xlu0 %1254
        %1258 = vset.pattern.permute.xlu0 0
        %1259 = vperm.xlu0 %1258, %v1212
        %v1260 = vpop.permute.xlu0 %1259
        %1263 = vset.pattern.permute.xlu0 0
        %1264 = vperm.xlu0 %1263, %v1213
        %v1265 = vpop.permute.xlu0 %1264
        %1268 = vset.pattern.permute.xlu0 0
        %1269 = vperm.xlu0 %1268, %v1214
        %v1270 = vpop.permute.xlu0 %1269
        %1273 = vset.pattern.permute.xlu0 0
        %1274 = vperm.xlu0 %1273, %v1215
        %v1275 = vpop.permute.xlu0 %1274
        %1278 = vset.pattern.permute.xlu0 0
        %1279 = vperm.xlu0 %1278, %v1216
        %v1280 = vpop.permute.xlu0 %1279
        %1283 = vset.pattern.permute.xlu0 0
        %1284 = vperm.xlu0 %1283, %v1217
        %v1285 = vpop.permute.xlu0 %1284
        %1288 = vset.pattern.permute.xlu0 0
        %1289 = vperm.xlu0 %1288, %v1218
        %v1290 = vpop.permute.xlu0 %1289
        %1293 = vset.pattern.permute.xlu0 0
        %1294 = vperm.xlu0 %1293, %v1219
        %v1295 = vpop.permute.xlu0 %1294
        %1298 = vset.pattern.permute.xlu0 0
        %1299 = vperm.xlu0 %1298, %v1220
        %v1300 = vpop.permute.xlu0 %1299
        %v1303 = vperm.slane %v1221, 0
        %v1305 = vmul.f32 %v1225, %v1303
        %v1306 = vmul.f32 %v1230, %v1303
        %v1307 = vmul.f32 %v1235, %v1303
        %v1308 = vmul.f32 %v1240, %v1303
        %v1309 = vmul.f32 %v1245, %v1303
        %v1310 = vmul.f32 %v1250, %v1303
        %v1311 = vmul.f32 %v1255, %v1303
        %v1312 = vmul.f32 %v1260, %v1303
        %v1313 = vmul.f32 %v1265, %v1303
        %v1314 = vmul.f32 %v1270, %v1303
        %v1315 = vmul.f32 %v1275, %v1303
        %v1316 = vmul.f32 %v1280, %v1303
        %v1317 = vmul.f32 %v1285, %v1303
        %v1318 = vmul.f32 %v1290, %v1303
        %v1319 = vmul.f32 %v1295, %v1303
        %v1320 = vmul.f32 %v1300, %v1303
        %v1321 = vld [vmem:[%s3] sm:$0x1]
        %v1323 = vperm.slane %v1321, 0
        %v1325 = vadd.f32 %v1305, %v1323
        %v1326 = vadd.f32 %v1306, %v1323
        %v1327 = vadd.f32 %v1307, %v1323
        %v1328 = vadd.f32 %v1308, %v1323
        %v1329 = vadd.f32 %v1309, %v1323
        %v1330 = vadd.f32 %v1310, %v1323
        %v1331 = vadd.f32 %v1311, %v1323
        %v1332 = vadd.f32 %v1312, %v1323
        %v1333 = vadd.f32 %v1313, %v1323
        %v1334 = vadd.f32 %v1314, %v1323
        %v1335 = vadd.f32 %v1315, %v1323
        %v1336 = vadd.f32 %v1316, %v1323
        %v1337 = vadd.f32 %v1317, %v1323
        %v1338 = vadd.f32 %v1318, %v1323
        %v1339 = vadd.f32 %v1319, %v1323
        %v1340 = vadd.f32 %v1320, %v1323
        %v1341 = vand.u32 2147483647, %v1325
        %vm1342 = vcmp.le.f32.partialorder %v1341, 0.7853982
        %vm1343 = vcmp.lt.s32.totalorder %v1325, 0
        %v1344 = vand.u32 %v1325, 2139095040
        %v1345 = vshrl.u32 %v1344, 23
        %v1346 = vsub.s32 %v1345, 127
        %v1347 = vand.u32 2147483647, %v1325
        %v1348 = vand.u32 %v1347, 8388607
        %v1349 = vor.u32 %v1348, 8388608
        %v1350 = vsub.s32 0, %v1349
        %v1351 = vadd.s32 %v1346, 1
        %vm1352 = vcmp.gt.s32.totalorder %v1351, 0
        %v1353 = vsel %vm1352, %v1351, 0
        %v1354 = vshrl.u32 %v1353, 5
        %v1355 = vand.u32 %v1353, 31
        %v1356 = vsub.s32 32, %v1355
        %v1357 = vshrl.u32 683565275, %v1356
        %v1358 = vshll.u32 683565275, %v1355
        %v1359 = vshrl.u32 2475754826, %v1356
        %v1360 = vor.u32 %v1358, %v1359
        %v1361 = vshll.u32 2475754826, %v1355
        %v1362 = vshrl.u32 2131351028, %v1356
        %v1363 = vor.u32 %v1361, %v1362
        %v1364 = vshll.u32 2131351028, %v1355
        %v1365 = vshrl.u32 2102212464, %v1356
        %v1366 = vor.u32 %v1364, %v1365
        %v1367 = vshll.u32 2102212464, %v1355
        %v1368 = vshrl.u32 920167782, %v1356
        %v1369 = vor.u32 %v1367, %v1368
        %v1370 = vshll.u32 920167782, %v1355
        %v1371 = vshrl.u32 1326507024, %v1356
        %v1372 = vor.u32 %v1370, %v1371
        %vm1373 = vcmp.lt.s32.totalorder %v1354, 1
        %vm1374 = vcmp.lt.s32.totalorder %v1354, 2
        %vm1375 = vcmp.lt.s32.totalorder %v1354, 3
        %vm1376 = vcmp.lt.s32.totalorder %v1354, 4
        %v1377 = vsel %vm1373, %v1357, %v1360
        %v1378 = vsel %vm1376, %v1366, 2102212464
        %v1379 = vsel %vm1375, %v1363, %v1378
        %v1380 = vsel %vm1374, %v1377, %v1379
        %v1381 = vsel %vm1373, %v1360, %v1363
        %v1382 = vsel %vm1376, %v1369, 920167782
        %v1383 = vsel %vm1375, %v1366, %v1382
        %v1384 = vsel %vm1374, %v1381, %v1383
        %v1385 = vsel %vm1373, %v1363, %v1366
        %v1386 = vsel %vm1376, %v1372, 1326507024
        %v1387 = vsel %vm1375, %v1369, %v1386
        %v1388 = vsel %vm1374, %v1385, %v1387
        %v1389 = vshll.u32 %v1349, 8
        %v1390 = vand.u32 %v1389, 65535
        %v1391 = vshrl.u32 %v1389, 16
        %v1392 = vand.u32 %v1388, 65535
        %v1393 = vshrl.u32 %v1388, 16
        %v1394 = vmul.u32 %v1390, %v1392
        %v1395 = vmul.u32 %v1390, %v1393
        %v1396 = vmul.u32 %v1391, %v1392
        %v1397 = vmul.u32 %v1391, %v1393
        %v1398 = vshll.u32 %v1395, 16
        %v1399 = vshrl.u32 %v1395, 16
        %v1400 = vshll.u32 %v1396, 16
        %v1401 = vshrl.u32 %v1396, 16
        %vm1402 = vc.u32 %v1394, %v1398
        %v1403 = vsel %vm1402, 1, 0
        %v1404 = vadd.s32 %v1394, %v1398
        %v1405 = vadd.s32 %v1397, %v1403
        %vm1406 = vc.u32 %v1404, %v1400
        %v1407 = vsel %vm1406, 1, 0
        %v1408 = vadd.s32 %v1404, %v1400
        %v1409 = vadd.s32 %v1405, %v1407
        %v1410 = vadd.s32 %v1409, %v1399
        %v1411 = vadd.s32 %v1410, %v1401
        %v1412 = vand.u32 %v1389, 65535
        %v1413 = vshrl.u32 %v1389, 16
        %v1414 = vand.u32 %v1384, 65535
        %v1415 = vshrl.u32 %v1384, 16
        %v1416 = vmul.u32 %v1412, %v1414
        %v1417 = vmul.u32 %v1412, %v1415
        %v1418 = vmul.u32 %v1413, %v1414
        %v1419 = vmul.u32 %v1413, %v1415
        %v1420 = vshll.u32 %v1417, 16
        %v1421 = vshrl.u32 %v1417, 16
        %v1422 = vshll.u32 %v1418, 16
        %v1423 = vshrl.u32 %v1418, 16
        %vm1424 = vc.u32 %v1416, %v1420
        %v1425 = vsel %vm1424, 1, 0
        %v1426 = vadd.s32 %v1416, %v1420
        %v1427 = vadd.s32 %v1419, %v1425
        %vm1428 = vc.u32 %v1426, %v1422
        %v1429 = vsel %vm1428, 1, 0
        %v1430 = vadd.s32 %v1426, %v1422
        %v1431 = vadd.s32 %v1427, %v1429
        %v1432 = vadd.s32 %v1431, %v1421
        %v1433 = vadd.s32 %v1432, %v1423
        %v1434 = vmul.u32 %v1389, %v1380
        %v1435 = vadd.s32 %v1411, %v1430
        %vm1436 = vc.u32 %v1411, %v1430
        %v1437 = vadd.s32 %v1433, 1
        %v1438 = vsel %vm1436, %v1437, %v1433
        %v1439 = vadd.s32 %v1434, %v1438
        %v1440 = vadd.s32 %v1439, 536870912
        %v1441 = vshrl.u32 %v1440, 30
        %v1442 = vshll.u32 %v1441, 30
        %v1443 = vsub.s32 %v1439, %v1442
        %vm1444 = vcmp.lt.s32.totalorder %v1443, 0
        %v1445 = vsub.s32 0, %v1443
        %v1446 = vsel %vm1444, %v1445, %v1443
        %v1447 = vclz %v1446
        %v1448 = vsub.s32 %v1447, 2
        %vm1449 = vcmp.gt.s32.totalorder 0, %v1448
        %v1450 = vsel %vm1449, 0, %v1448
        %v1451 = vsub.s32 32, %v1450
        %v1452 = vshll.u32 %v1443, %v1450
        %v1453 = vshrl.u32 %v1435, %v1451
        %v1454 = vor.u32 %v1452, %v1453
        %v1455 = vsub.s32 4294967266, %v1450
        %v1456 = vadd.s32 %v1455, 127
        %v1457 = vshll.u32 %v1456, 23
        %v1458 = vor.u32 4788187, %v1457
        %v1459 = vand.u32 2147483647, %v1458
        %v1461 = vcvt.s32.f32 %v1454
        %v1462 = vmul.f32 %v1461, %v1459
        %v1463 = vxor.u32 %v1462, 2147483648
        %v1464 = vsel %vm1343, %v1463, %v1462
        %v1465 = vsub.s32 4, %v1441
        %v1466 = vsel %vm1343, %v1465, %v1441
        %v1467 = vsel %vm1342, %v1325, %v1464
        %v1468 = vsel %vm1342, 0, %v1466
        %v1469 = vmul.f32 %v1467, %v1467
        %v1470 = vmul.f32 %v1469, -0.001358992
        %v1471 = vadd.f32 %v1470, 0.041655596
        %v1472 = vmul.f32 %v1469, %v1471
        %v1473 = vadd.f32 %v1472, -0.4999988
        %v1474 = vmul.f32 %v1469, %v1473
        %v1475 = vadd.f32 1.0, %v1474
        %v1476 = vmul.f32 %v1467, %v1467
        %v1477 = vmul.f32 %v1476, -0.00019511016
        %v1478 = vadd.f32 %v1477, 0.008332121
        %v1479 = vmul.f32 %v1476, %v1478
        %v1480 = vadd.f32 %v1479, -0.16666654
        %v1481 = vmul.f32 %v1476, %v1480
        %v1482 = vadd.f32 %v1481, 1.0
        %v1483 = vmul.f32 %v1482, %v1467
        %vm1484 = vweird.f32 %v1325
        %v1485 = vadd.s32 %v1468, 3
        %v1486 = vand.u32 %v1485, 3
        %vm1487 = vcmp.lt.s32.totalorder %v1486, 2
        %vm1488 = vcmp.eq.s32.totalorder %v1486, 0
        %v1489 = vxor.u32 %v1483, 2147483648
        %v1490 = vsel %vm1488, %v1475, %v1489
        %vm1491 = vcmp.eq.s32.totalorder %v1486, 2
        %v1492 = vxor.u32 %v1475, 2147483648
        %v1493 = vsel %vm1491, %v1492, %v1483
        %v1494 = vsel %vm1487, %v1490, %v1493
        %v1495 = vsel %vm1484, nan, %v1494
        %v1496 = vand.u32 2147483647, %v1326
        %vm1497 = vcmp.le.f32.partialorder %v1496, 0.7853982
        %vm1498 = vcmp.lt.s32.totalorder %v1326, 0
        %v1499 = vand.u32 %v1326, 2139095040
        %v1500 = vshrl.u32 %v1499, 23
        %v1501 = vsub.s32 %v1500, 127
        %v1502 = vand.u32 2147483647, %v1326
        %v1503 = vand.u32 %v1502, 8388607
        %v1504 = vor.u32 %v1503, 8388608
        %v1505 = vsub.s32 0, %v1504
        %v1506 = vadd.s32 %v1501, 1
        %vm1507 = vcmp.gt.s32.totalorder %v1506, 0
        %v1508 = vsel %vm1507, %v1506, 0
        %v1509 = vshrl.u32 %v1508, 5
        %v1510 = vand.u32 %v1508, 31
        %v1511 = vsub.s32 32, %v1510
        %v1512 = vshrl.u32 683565275, %v1511
        %v1513 = vshll.u32 683565275, %v1510
        %v1514 = vshrl.u32 2475754826, %v1511
        %v1515 = vor.u32 %v1513, %v1514
        %v1516 = vshll.u32 2475754826, %v1510
        %v1517 = vshrl.u32 2131351028, %v1511
        %v1518 = vor.u32 %v1516, %v1517
        %v1519 = vshll.u32 2131351028, %v1510
        %v1520 = vshrl.u32 2102212464, %v1511
        %v1521 = vor.u32 %v1519, %v1520
        %v1522 = vshll.u32 2102212464, %v1510
        %v1523 = vshrl.u32 920167782, %v1511
        %v1524 = vor.u32 %v1522, %v1523
        %v1525 = vshll.u32 920167782, %v1510
        %v1526 = vshrl.u32 1326507024, %v1511
        %v1527 = vor.u32 %v1525, %v1526
        %vm1528 = vcmp.lt.s32.totalorder %v1509, 1
        %vm1529 = vcmp.lt.s32.totalorder %v1509, 2
        %vm1530 = vcmp.lt.s32.totalorder %v1509, 3
        %vm1531 = vcmp.lt.s32.totalorder %v1509, 4
        %v1532 = vsel %vm1528, %v1512, %v1515
        %v1533 = vsel %vm1531, %v1521, 2102212464
        %v1534 = vsel %vm1530, %v1518, %v1533
        %v1535 = vsel %vm1529, %v1532, %v1534
        %v1536 = vsel %vm1528, %v1515, %v1518
        %v1537 = vsel %vm1531, %v1524, 920167782
        %v1538 = vsel %vm1530, %v1521, %v1537
        %v1539 = vsel %vm1529, %v1536, %v1538
        %v1540 = vsel %vm1528, %v1518, %v1521
        %v1541 = vsel %vm1531, %v1527, 1326507024
        %v1542 = vsel %vm1530, %v1524, %v1541
        %v1543 = vsel %vm1529, %v1540, %v1542
        %v1544 = vshll.u32 %v1504, 8
        %v1545 = vand.u32 %v1544, 65535
        %v1546 = vshrl.u32 %v1544, 16
        %v1547 = vand.u32 %v1543, 65535
        %v1548 = vshrl.u32 %v1543, 16
        %v1549 = vmul.u32 %v1545, %v1547
        %v1550 = vmul.u32 %v1545, %v1548
        %v1551 = vmul.u32 %v1546, %v1547
        %v1552 = vmul.u32 %v1546, %v1548
        %v1553 = vshll.u32 %v1550, 16
        %v1554 = vshrl.u32 %v1550, 16
        %v1555 = vshll.u32 %v1551, 16
        %v1556 = vshrl.u32 %v1551, 16
        %vm1557 = vc.u32 %v1549, %v1553
        %v1558 = vsel %vm1557, 1, 0
        %v1559 = vadd.s32 %v1549, %v1553
        %v1560 = vadd.s32 %v1552, %v1558
        %vm1561 = vc.u32 %v1559, %v1555
        %v1562 = vsel %vm1561, 1, 0
        %v1563 = vadd.s32 %v1559, %v1555
        %v1564 = vadd.s32 %v1560, %v1562
        %v1565 = vadd.s32 %v1564, %v1554
        %v1566 = vadd.s32 %v1565, %v1556
        %v1567 = vand.u32 %v1544, 65535
        %v1568 = vshrl.u32 %v1544, 16
        %v1569 = vand.u32 %v1539, 65535
        %v1570 = vshrl.u32 %v1539, 16
        %v1571 = vmul.u32 %v1567, %v1569
        %v1572 = vmul.u32 %v1567, %v1570
        %v1573 = vmul.u32 %v1568, %v1569
        %v1574 = vmul.u32 %v1568, %v1570
        %v1575 = vshll.u32 %v1572, 16
        %v1576 = vshrl.u32 %v1572, 16
        %v1577 = vshll.u32 %v1573, 16
        %v1578 = vshrl.u32 %v1573, 16
        %vm1579 = vc.u32 %v1571, %v1575
        %v1580 = vsel %vm1579, 1, 0
        %v1581 = vadd.s32 %v1571, %v1575
        %v1582 = vadd.s32 %v1574, %v1580
        %vm1583 = vc.u32 %v1581, %v1577
        %v1584 = vsel %vm1583, 1, 0
        %v1585 = vadd.s32 %v1581, %v1577
        %v1586 = vadd.s32 %v1582, %v1584
        %v1587 = vadd.s32 %v1586, %v1576
        %v1588 = vadd.s32 %v1587, %v1578
        %v1589 = vmul.u32 %v1544, %v1535
        %v1590 = vadd.s32 %v1566, %v1585
        %vm1591 = vc.u32 %v1566, %v1585
        %v1592 = vadd.s32 %v1588, 1
        %v1593 = vsel %vm1591, %v1592, %v1588
        %v1594 = vadd.s32 %v1589, %v1593
        %v1595 = vadd.s32 %v1594, 536870912
        %v1596 = vshrl.u32 %v1595, 30
        %v1597 = vshll.u32 %v1596, 30
        %v1598 = vsub.s32 %v1594, %v1597
        %vm1599 = vcmp.lt.s32.totalorder %v1598, 0
        %v1600 = vsub.s32 0, %v1598
        %v1601 = vsel %vm1599, %v1600, %v1598
        %v1602 = vclz %v1601
        %v1603 = vsub.s32 %v1602, 2
        %vm1604 = vcmp.gt.s32.totalorder 0, %v1603
        %v1605 = vsel %vm1604, 0, %v1603
        %v1606 = vsub.s32 32, %v1605
        %v1607 = vshll.u32 %v1598, %v1605
        %v1608 = vshrl.u32 %v1590, %v1606
        %v1609 = vor.u32 %v1607, %v1608
        %v1610 = vsub.s32 4294967266, %v1605
        %v1611 = vadd.s32 %v1610, 127
        %v1612 = vshll.u32 %v1611, 23
        %v1613 = vor.u32 4788187, %v1612
        %v1614 = vand.u32 2147483647, %v1613
        %v1616 = vcvt.s32.f32 %v1609
        %v1617 = vmul.f32 %v1616, %v1614
        %v1618 = vxor.u32 %v1617, 2147483648
        %v1619 = vsel %vm1498, %v1618, %v1617
        %v1620 = vsub.s32 4, %v1596
        %v1621 = vsel %vm1498, %v1620, %v1596
        %v1622 = vsel %vm1497, %v1326, %v1619
        %v1623 = vsel %vm1497, 0, %v1621
        %v1624 = vmul.f32 %v1622, %v1622
        %v1625 = vmul.f32 %v1624, -0.001358992
        %v1626 = vadd.f32 %v1625, 0.041655596
        %v1627 = vmul.f32 %v1624, %v1626
        %v1628 = vadd.f32 %v1627, -0.4999988
        %v1629 = vmul.f32 %v1624, %v1628
        %v1630 = vadd.f32 1.0, %v1629
        %v1631 = vmul.f32 %v1622, %v1622
        %v1632 = vmul.f32 %v1631, -0.00019511016
        %v1633 = vadd.f32 %v1632, 0.008332121
        %v1634 = vmul.f32 %v1631, %v1633
        %v1635 = vadd.f32 %v1634, -0.16666654
        %v1636 = vmul.f32 %v1631, %v1635
        %v1637 = vadd.f32 %v1636, 1.0
        %v1638 = vmul.f32 %v1637, %v1622
        %vm1639 = vweird.f32 %v1326
        %v1640 = vadd.s32 %v1623, 3
        %v1641 = vand.u32 %v1640, 3
        %vm1642 = vcmp.lt.s32.totalorder %v1641, 2
        %vm1643 = vcmp.eq.s32.totalorder %v1641, 0
        %v1644 = vxor.u32 %v1638, 2147483648
        %v1645 = vsel %vm1643, %v1630, %v1644
        %vm1646 = vcmp.eq.s32.totalorder %v1641, 2
        %v1647 = vxor.u32 %v1630, 2147483648
        %v1648 = vsel %vm1646, %v1647, %v1638
        %v1649 = vsel %vm1642, %v1645, %v1648
        %v1650 = vsel %vm1639, nan, %v1649
        %v1651 = vand.u32 2147483647, %v1327
        %vm1652 = vcmp.le.f32.partialorder %v1651, 0.7853982
        %vm1653 = vcmp.lt.s32.totalorder %v1327, 0
        %v1654 = vand.u32 %v1327, 2139095040
        %v1655 = vshrl.u32 %v1654, 23
        %v1656 = vsub.s32 %v1655, 127
        %v1657 = vand.u32 2147483647, %v1327
        %v1658 = vand.u32 %v1657, 8388607
        %v1659 = vor.u32 %v1658, 8388608
        %v1660 = vsub.s32 0, %v1659
        %v1661 = vadd.s32 %v1656, 1
        %vm1662 = vcmp.gt.s32.totalorder %v1661, 0
        %v1663 = vsel %vm1662, %v1661, 0
        %v1664 = vshrl.u32 %v1663, 5
        %v1665 = vand.u32 %v1663, 31
        %v1666 = vsub.s32 32, %v1665
        %v1667 = vshrl.u32 683565275, %v1666
        %v1668 = vshll.u32 683565275, %v1665
        %v1669 = vshrl.u32 2475754826, %v1666
        %v1670 = vor.u32 %v1668, %v1669
        %v1671 = vshll.u32 2475754826, %v1665
        %v1672 = vshrl.u32 2131351028, %v1666
        %v1673 = vor.u32 %v1671, %v1672
        %v1674 = vshll.u32 2131351028, %v1665
        %v1675 = vshrl.u32 2102212464, %v1666
        %v1676 = vor.u32 %v1674, %v1675
        %v1677 = vshll.u32 2102212464, %v1665
        %v1678 = vshrl.u32 920167782, %v1666
        %v1679 = vor.u32 %v1677, %v1678
        %v1680 = vshll.u32 920167782, %v1665
        %v1681 = vshrl.u32 1326507024, %v1666
        %v1682 = vor.u32 %v1680, %v1681
        %vm1683 = vcmp.lt.s32.totalorder %v1664, 1
        %vm1684 = vcmp.lt.s32.totalorder %v1664, 2
        %vm1685 = vcmp.lt.s32.totalorder %v1664, 3
        %vm1686 = vcmp.lt.s32.totalorder %v1664, 4
        %v1687 = vsel %vm1683, %v1667, %v1670
        %v1688 = vsel %vm1686, %v1676, 2102212464
        %v1689 = vsel %vm1685, %v1673, %v1688
        %v1690 = vsel %vm1684, %v1687, %v1689
        %v1691 = vsel %vm1683, %v1670, %v1673
        %v1692 = vsel %vm1686, %v1679, 920167782
        %v1693 = vsel %vm1685, %v1676, %v1692
        %v1694 = vsel %vm1684, %v1691, %v1693
        %v1695 = vsel %vm1683, %v1673, %v1676
        %v1696 = vsel %vm1686, %v1682, 1326507024
        %v1697 = vsel %vm1685, %v1679, %v1696
        %v1698 = vsel %vm1684, %v1695, %v1697
        %v1699 = vshll.u32 %v1659, 8
        %v1700 = vand.u32 %v1699, 65535
        %v1701 = vshrl.u32 %v1699, 16
        %v1702 = vand.u32 %v1698, 65535
        %v1703 = vshrl.u32 %v1698, 16
        %v1704 = vmul.u32 %v1700, %v1702
        %v1705 = vmul.u32 %v1700, %v1703
        %v1706 = vmul.u32 %v1701, %v1702
        %v1707 = vmul.u32 %v1701, %v1703
        %v1708 = vshll.u32 %v1705, 16
        %v1709 = vshrl.u32 %v1705, 16
        %v1710 = vshll.u32 %v1706, 16
        %v1711 = vshrl.u32 %v1706, 16
        %vm1712 = vc.u32 %v1704, %v1708
        %v1713 = vsel %vm1712, 1, 0
        %v1714 = vadd.s32 %v1704, %v1708
        %v1715 = vadd.s32 %v1707, %v1713
        %vm1716 = vc.u32 %v1714, %v1710
        %v1717 = vsel %vm1716, 1, 0
        %v1718 = vadd.s32 %v1714, %v1710
        %v1719 = vadd.s32 %v1715, %v1717
        %v1720 = vadd.s32 %v1719, %v1709
        %v1721 = vadd.s32 %v1720, %v1711
        %v1722 = vand.u32 %v1699, 65535
        %v1723 = vshrl.u32 %v1699, 16
        %v1724 = vand.u32 %v1694, 65535
        %v1725 = vshrl.u32 %v1694, 16
        %v1726 = vmul.u32 %v1722, %v1724
        %v1727 = vmul.u32 %v1722, %v1725
        %v1728 = vmul.u32 %v1723, %v1724
        %v1729 = vmul.u32 %v1723, %v1725
        %v1730 = vshll.u32 %v1727, 16
        %v1731 = vshrl.u32 %v1727, 16
        %v1732 = vshll.u32 %v1728, 16
        %v1733 = vshrl.u32 %v1728, 16
        %vm1734 = vc.u32 %v1726, %v1730
        %v1735 = vsel %vm1734, 1, 0
        %v1736 = vadd.s32 %v1726, %v1730
        %v1737 = vadd.s32 %v1729, %v1735
        %vm1738 = vc.u32 %v1736, %v1732
        %v1739 = vsel %vm1738, 1, 0
        %v1740 = vadd.s32 %v1736, %v1732
        %v1741 = vadd.s32 %v1737, %v1739
        %v1742 = vadd.s32 %v1741, %v1731
        %v1743 = vadd.s32 %v1742, %v1733
        %v1744 = vmul.u32 %v1699, %v1690
        %v1745 = vadd.s32 %v1721, %v1740
        %vm1746 = vc.u32 %v1721, %v1740
        %v1747 = vadd.s32 %v1743, 1
        %v1748 = vsel %vm1746, %v1747, %v1743
        %v1749 = vadd.s32 %v1744, %v1748
        %v1750 = vadd.s32 %v1749, 536870912
        %v1751 = vshrl.u32 %v1750, 30
        %v1752 = vshll.u32 %v1751, 30
        %v1753 = vsub.s32 %v1749, %v1752
        %vm1754 = vcmp.lt.s32.totalorder %v1753, 0
        %v1755 = vsub.s32 0, %v1753
        %v1756 = vsel %vm1754, %v1755, %v1753
        %v1757 = vclz %v1756
        %v1758 = vsub.s32 %v1757, 2
        %vm1759 = vcmp.gt.s32.totalorder 0, %v1758
        %v1760 = vsel %vm1759, 0, %v1758
        %v1761 = vsub.s32 32, %v1760
        %v1762 = vshll.u32 %v1753, %v1760
        %v1763 = vshrl.u32 %v1745, %v1761
        %v1764 = vor.u32 %v1762, %v1763
        %v1765 = vsub.s32 4294967266, %v1760
        %v1766 = vadd.s32 %v1765, 127
        %v1767 = vshll.u32 %v1766, 23
        %v1768 = vor.u32 4788187, %v1767
        %v1769 = vand.u32 2147483647, %v1768
        %v1771 = vcvt.s32.f32 %v1764
        %v1772 = vmul.f32 %v1771, %v1769
        %v1773 = vxor.u32 %v1772, 2147483648
        %v1774 = vsel %vm1653, %v1773, %v1772
        %v1775 = vsub.s32 4, %v1751
        %v1776 = vsel %vm1653, %v1775, %v1751
        %v1777 = vsel %vm1652, %v1327, %v1774
        %v1778 = vsel %vm1652, 0, %v1776
        %v1779 = vmul.f32 %v1777, %v1777
        %v1780 = vmul.f32 %v1779, -0.001358992
        %v1781 = vadd.f32 %v1780, 0.041655596
        %v1782 = vmul.f32 %v1779, %v1781
        %v1783 = vadd.f32 %v1782, -0.4999988
        %v1784 = vmul.f32 %v1779, %v1783
        %v1785 = vadd.f32 1.0, %v1784
        %v1786 = vmul.f32 %v1777, %v1777
        %v1787 = vmul.f32 %v1786, -0.00019511016
        %v1788 = vadd.f32 %v1787, 0.008332121
        %v1789 = vmul.f32 %v1786, %v1788
        %v1790 = vadd.f32 %v1789, -0.16666654
        %v1791 = vmul.f32 %v1786, %v1790
        %v1792 = vadd.f32 %v1791, 1.0
        %v1793 = vmul.f32 %v1792, %v1777
        %vm1794 = vweird.f32 %v1327
        %v1795 = vadd.s32 %v1778, 3
        %v1796 = vand.u32 %v1795, 3
        %vm1797 = vcmp.lt.s32.totalorder %v1796, 2
        %vm1798 = vcmp.eq.s32.totalorder %v1796, 0
        %v1799 = vxor.u32 %v1793, 2147483648
        %v1800 = vsel %vm1798, %v1785, %v1799
        %vm1801 = vcmp.eq.s32.totalorder %v1796, 2
        %v1802 = vxor.u32 %v1785, 2147483648
        %v1803 = vsel %vm1801, %v1802, %v1793
        %v1804 = vsel %vm1797, %v1800, %v1803
        %v1805 = vsel %vm1794, nan, %v1804
        %v1806 = vand.u32 2147483647, %v1328
        %vm1807 = vcmp.le.f32.partialorder %v1806, 0.7853982
        %vm1808 = vcmp.lt.s32.totalorder %v1328, 0
        %v1809 = vand.u32 %v1328, 2139095040
        %v1810 = vshrl.u32 %v1809, 23
        %v1811 = vsub.s32 %v1810, 127
        %v1812 = vand.u32 2147483647, %v1328
        %v1813 = vand.u32 %v1812, 8388607
        %v1814 = vor.u32 %v1813, 8388608
        %v1815 = vsub.s32 0, %v1814
        %v1816 = vadd.s32 %v1811, 1
        %vm1817 = vcmp.gt.s32.totalorder %v1816, 0
        %v1818 = vsel %vm1817, %v1816, 0
        %v1819 = vshrl.u32 %v1818, 5
        %v1820 = vand.u32 %v1818, 31
        %v1821 = vsub.s32 32, %v1820
        %v1822 = vshrl.u32 683565275, %v1821
        %v1823 = vshll.u32 683565275, %v1820
        %v1824 = vshrl.u32 2475754826, %v1821
        %v1825 = vor.u32 %v1823, %v1824
        %v1826 = vshll.u32 2475754826, %v1820
        %v1827 = vshrl.u32 2131351028, %v1821
        %v1828 = vor.u32 %v1826, %v1827
        %v1829 = vshll.u32 2131351028, %v1820
        %v1830 = vshrl.u32 2102212464, %v1821
        %v1831 = vor.u32 %v1829, %v1830
        %v1832 = vshll.u32 2102212464, %v1820
        %v1833 = vshrl.u32 920167782, %v1821
        %v1834 = vor.u32 %v1832, %v1833
        %v1835 = vshll.u32 920167782, %v1820
        %v1836 = vshrl.u32 1326507024, %v1821
        %v1837 = vor.u32 %v1835, %v1836
        %vm1838 = vcmp.lt.s32.totalorder %v1819, 1
        %vm1839 = vcmp.lt.s32.totalorder %v1819, 2
        %vm1840 = vcmp.lt.s32.totalorder %v1819, 3
        %vm1841 = vcmp.lt.s32.totalorder %v1819, 4
        %v1842 = vsel %vm1838, %v1822, %v1825
        %v1843 = vsel %vm1841, %v1831, 2102212464
        %v1844 = vsel %vm1840, %v1828, %v1843
        %v1845 = vsel %vm1839, %v1842, %v1844
        %v1846 = vsel %vm1838, %v1825, %v1828
        %v1847 = vsel %vm1841, %v1834, 920167782
        %v1848 = vsel %vm1840, %v1831, %v1847
        %v1849 = vsel %vm1839, %v1846, %v1848
        %v1850 = vsel %vm1838, %v1828, %v1831
        %v1851 = vsel %vm1841, %v1837, 1326507024
        %v1852 = vsel %vm1840, %v1834, %v1851
        %v1853 = vsel %vm1839, %v1850, %v1852
        %v1854 = vshll.u32 %v1814, 8
        %v1855 = vand.u32 %v1854, 65535
        %v1856 = vshrl.u32 %v1854, 16
        %v1857 = vand.u32 %v1853, 65535
        %v1858 = vshrl.u32 %v1853, 16
        %v1859 = vmul.u32 %v1855, %v1857
        %v1860 = vmul.u32 %v1855, %v1858
        %v1861 = vmul.u32 %v1856, %v1857
        %v1862 = vmul.u32 %v1856, %v1858
        %v1863 = vshll.u32 %v1860, 16
        %v1864 = vshrl.u32 %v1860, 16
        %v1865 = vshll.u32 %v1861, 16
        %v1866 = vshrl.u32 %v1861, 16
        %vm1867 = vc.u32 %v1859, %v1863
        %v1868 = vsel %vm1867, 1, 0
        %v1869 = vadd.s32 %v1859, %v1863
        %v1870 = vadd.s32 %v1862, %v1868
        %vm1871 = vc.u32 %v1869, %v1865
        %v1872 = vsel %vm1871, 1, 0
        %v1873 = vadd.s32 %v1869, %v1865
        %v1874 = vadd.s32 %v1870, %v1872
        %v1875 = vadd.s32 %v1874, %v1864
        %v1876 = vadd.s32 %v1875, %v1866
        %v1877 = vand.u32 %v1854, 65535
        %v1878 = vshrl.u32 %v1854, 16
        %v1879 = vand.u32 %v1849, 65535
        %v1880 = vshrl.u32 %v1849, 16
        %v1881 = vmul.u32 %v1877, %v1879
        %v1882 = vmul.u32 %v1877, %v1880
        %v1883 = vmul.u32 %v1878, %v1879
        %v1884 = vmul.u32 %v1878, %v1880
        %v1885 = vshll.u32 %v1882, 16
        %v1886 = vshrl.u32 %v1882, 16
        %v1887 = vshll.u32 %v1883, 16
        %v1888 = vshrl.u32 %v1883, 16
        %vm1889 = vc.u32 %v1881, %v1885
        %v1890 = vsel %vm1889, 1, 0
        %v1891 = vadd.s32 %v1881, %v1885
        %v1892 = vadd.s32 %v1884, %v1890
        %vm1893 = vc.u32 %v1891, %v1887
        %v1894 = vsel %vm1893, 1, 0
        %v1895 = vadd.s32 %v1891, %v1887
        %v1896 = vadd.s32 %v1892, %v1894
        %v1897 = vadd.s32 %v1896, %v1886
        %v1898 = vadd.s32 %v1897, %v1888
        %v1899 = vmul.u32 %v1854, %v1845
        %v1900 = vadd.s32 %v1876, %v1895
        %vm1901 = vc.u32 %v1876, %v1895
        %v1902 = vadd.s32 %v1898, 1
        %v1903 = vsel %vm1901, %v1902, %v1898
        %v1904 = vadd.s32 %v1899, %v1903
        %v1905 = vadd.s32 %v1904, 536870912
        %v1906 = vshrl.u32 %v1905, 30
        %v1907 = vshll.u32 %v1906, 30
        %v1908 = vsub.s32 %v1904, %v1907
        %vm1909 = vcmp.lt.s32.totalorder %v1908, 0
        %v1910 = vsub.s32 0, %v1908
        %v1911 = vsel %vm1909, %v1910, %v1908
        %v1912 = vclz %v1911
        %v1913 = vsub.s32 %v1912, 2
        %vm1914 = vcmp.gt.s32.totalorder 0, %v1913
        %v1915 = vsel %vm1914, 0, %v1913
        %v1916 = vsub.s32 32, %v1915
        %v1917 = vshll.u32 %v1908, %v1915
        %v1918 = vshrl.u32 %v1900, %v1916
        %v1919 = vor.u32 %v1917, %v1918
        %v1920 = vsub.s32 4294967266, %v1915
        %v1921 = vadd.s32 %v1920, 127
        %v1922 = vshll.u32 %v1921, 23
        %v1923 = vor.u32 4788187, %v1922
        %v1924 = vand.u32 2147483647, %v1923
        %v1926 = vcvt.s32.f32 %v1919
        %v1927 = vmul.f32 %v1926, %v1924
        %v1928 = vxor.u32 %v1927, 2147483648
        %v1929 = vsel %vm1808, %v1928, %v1927
        %v1930 = vsub.s32 4, %v1906
        %v1931 = vsel %vm1808, %v1930, %v1906
        %v1932 = vsel %vm1807, %v1328, %v1929
        %v1933 = vsel %vm1807, 0, %v1931
        %v1934 = vmul.f32 %v1932, %v1932
        %v1935 = vmul.f32 %v1934, -0.001358992
        %v1936 = vadd.f32 %v1935, 0.041655596
        %v1937 = vmul.f32 %v1934, %v1936
        %v1938 = vadd.f32 %v1937, -0.4999988
        %v1939 = vmul.f32 %v1934, %v1938
        %v1940 = vadd.f32 1.0, %v1939
        %v1941 = vmul.f32 %v1932, %v1932
        %v1942 = vmul.f32 %v1941, -0.00019511016
        %v1943 = vadd.f32 %v1942, 0.008332121
        %v1944 = vmul.f32 %v1941, %v1943
        %v1945 = vadd.f32 %v1944, -0.16666654
        %v1946 = vmul.f32 %v1941, %v1945
        %v1947 = vadd.f32 %v1946, 1.0
        %v1948 = vmul.f32 %v1947, %v1932
        %vm1949 = vweird.f32 %v1328
        %v1950 = vadd.s32 %v1933, 3
        %v1951 = vand.u32 %v1950, 3
        %vm1952 = vcmp.lt.s32.totalorder %v1951, 2
        %vm1953 = vcmp.eq.s32.totalorder %v1951, 0
        %v1954 = vxor.u32 %v1948, 2147483648
        %v1955 = vsel %vm1953, %v1940, %v1954
        %vm1956 = vcmp.eq.s32.totalorder %v1951, 2
        %v1957 = vxor.u32 %v1940, 2147483648
        %v1958 = vsel %vm1956, %v1957, %v1948
        %v1959 = vsel %vm1952, %v1955, %v1958
        %v1960 = vsel %vm1949, nan, %v1959
        %v1961 = vand.u32 2147483647, %v1329
        %vm1962 = vcmp.le.f32.partialorder %v1961, 0.7853982
        %vm1963 = vcmp.lt.s32.totalorder %v1329, 0
        %v1964 = vand.u32 %v1329, 2139095040
        %v1965 = vshrl.u32 %v1964, 23
        %v1966 = vsub.s32 %v1965, 127
        %v1967 = vand.u32 2147483647, %v1329
        %v1968 = vand.u32 %v1967, 8388607
        %v1969 = vor.u32 %v1968, 8388608
        %v1970 = vsub.s32 0, %v1969
        %v1971 = vadd.s32 %v1966, 1
        %vm1972 = vcmp.gt.s32.totalorder %v1971, 0
        %v1973 = vsel %vm1972, %v1971, 0
        %v1974 = vshrl.u32 %v1973, 5
        %v1975 = vand.u32 %v1973, 31
        %v1976 = vsub.s32 32, %v1975
        %v1977 = vshrl.u32 683565275, %v1976
        %v1978 = vshll.u32 683565275, %v1975
        %v1979 = vshrl.u32 2475754826, %v1976
        %v1980 = vor.u32 %v1978, %v1979
        %v1981 = vshll.u32 2475754826, %v1975
        %v1982 = vshrl.u32 2131351028, %v1976
        %v1983 = vor.u32 %v1981, %v1982
        %v1984 = vshll.u32 2131351028, %v1975
        %v1985 = vshrl.u32 2102212464, %v1976
        %v1986 = vor.u32 %v1984, %v1985
        %v1987 = vshll.u32 2102212464, %v1975
        %v1988 = vshrl.u32 920167782, %v1976
        %v1989 = vor.u32 %v1987, %v1988
        %v1990 = vshll.u32 920167782, %v1975
        %v1991 = vshrl.u32 1326507024, %v1976
        %v1992 = vor.u32 %v1990, %v1991
        %vm1993 = vcmp.lt.s32.totalorder %v1974, 1
        %vm1994 = vcmp.lt.s32.totalorder %v1974, 2
        %vm1995 = vcmp.lt.s32.totalorder %v1974, 3
        %vm1996 = vcmp.lt.s32.totalorder %v1974, 4
        %v1997 = vsel %vm1993, %v1977, %v1980
        %v1998 = vsel %vm1996, %v1986, 2102212464
        %v1999 = vsel %vm1995, %v1983, %v1998
        %v2000 = vsel %vm1994, %v1997, %v1999
        %v2001 = vsel %vm1993, %v1980, %v1983
        %v2002 = vsel %vm1996, %v1989, 920167782
        %v2003 = vsel %vm1995, %v1986, %v2002
        %v2004 = vsel %vm1994, %v2001, %v2003
        %v2005 = vsel %vm1993, %v1983, %v1986
        %v2006 = vsel %vm1996, %v1992, 1326507024
        %v2007 = vsel %vm1995, %v1989, %v2006
        %v2008 = vsel %vm1994, %v2005, %v2007
        %v2009 = vshll.u32 %v1969, 8
        %v2010 = vand.u32 %v2009, 65535
        %v2011 = vshrl.u32 %v2009, 16
        %v2012 = vand.u32 %v2008, 65535
        %v2013 = vshrl.u32 %v2008, 16
        %v2014 = vmul.u32 %v2010, %v2012
        %v2015 = vmul.u32 %v2010, %v2013
        %v2016 = vmul.u32 %v2011, %v2012
        %v2017 = vmul.u32 %v2011, %v2013
        %v2018 = vshll.u32 %v2015, 16
        %v2019 = vshrl.u32 %v2015, 16
        %v2020 = vshll.u32 %v2016, 16
        %v2021 = vshrl.u32 %v2016, 16
        %vm2022 = vc.u32 %v2014, %v2018
        %v2023 = vsel %vm2022, 1, 0
        %v2024 = vadd.s32 %v2014, %v2018
        %v2025 = vadd.s32 %v2017, %v2023
        %vm2026 = vc.u32 %v2024, %v2020
        %v2027 = vsel %vm2026, 1, 0
        %v2028 = vadd.s32 %v2024, %v2020
        %v2029 = vadd.s32 %v2025, %v2027
        %v2030 = vadd.s32 %v2029, %v2019
        %v2031 = vadd.s32 %v2030, %v2021
        %v2032 = vand.u32 %v2009, 65535
        %v2033 = vshrl.u32 %v2009, 16
        %v2034 = vand.u32 %v2004, 65535
        %v2035 = vshrl.u32 %v2004, 16
        %v2036 = vmul.u32 %v2032, %v2034
        %v2037 = vmul.u32 %v2032, %v2035
        %v2038 = vmul.u32 %v2033, %v2034
        %v2039 = vmul.u32 %v2033, %v2035
        %v2040 = vshll.u32 %v2037, 16
        %v2041 = vshrl.u32 %v2037, 16
        %v2042 = vshll.u32 %v2038, 16
        %v2043 = vshrl.u32 %v2038, 16
        %vm2044 = vc.u32 %v2036, %v2040
        %v2045 = vsel %vm2044, 1, 0
        %v2046 = vadd.s32 %v2036, %v2040
        %v2047 = vadd.s32 %v2039, %v2045
        %vm2048 = vc.u32 %v2046, %v2042
        %v2049 = vsel %vm2048, 1, 0
        %v2050 = vadd.s32 %v2046, %v2042
        %v2051 = vadd.s32 %v2047, %v2049
        %v2052 = vadd.s32 %v2051, %v2041
        %v2053 = vadd.s32 %v2052, %v2043
        %v2054 = vmul.u32 %v2009, %v2000
        %v2055 = vadd.s32 %v2031, %v2050
        %vm2056 = vc.u32 %v2031, %v2050
        %v2057 = vadd.s32 %v2053, 1
        %v2058 = vsel %vm2056, %v2057, %v2053
        %v2059 = vadd.s32 %v2054, %v2058
        %v2060 = vadd.s32 %v2059, 536870912
        %v2061 = vshrl.u32 %v2060, 30
        %v2062 = vshll.u32 %v2061, 30
        %v2063 = vsub.s32 %v2059, %v2062
        %vm2064 = vcmp.lt.s32.totalorder %v2063, 0
        %v2065 = vsub.s32 0, %v2063
        %v2066 = vsel %vm2064, %v2065, %v2063
        %v2067 = vclz %v2066
        %v2068 = vsub.s32 %v2067, 2
        %vm2069 = vcmp.gt.s32.totalorder 0, %v2068
        %v2070 = vsel %vm2069, 0, %v2068
        %v2071 = vsub.s32 32, %v2070
        %v2072 = vshll.u32 %v2063, %v2070
        %v2073 = vshrl.u32 %v2055, %v2071
        %v2074 = vor.u32 %v2072, %v2073
        %v2075 = vsub.s32 4294967266, %v2070
        %v2076 = vadd.s32 %v2075, 127
        %v2077 = vshll.u32 %v2076, 23
        %v2078 = vor.u32 4788187, %v2077
        %v2079 = vand.u32 2147483647, %v2078
        %v2081 = vcvt.s32.f32 %v2074
        %v2082 = vmul.f32 %v2081, %v2079
        %v2083 = vxor.u32 %v2082, 2147483648
        %v2084 = vsel %vm1963, %v2083, %v2082
        %v2085 = vsub.s32 4, %v2061
        %v2086 = vsel %vm1963, %v2085, %v2061
        %v2087 = vsel %vm1962, %v1329, %v2084
        %v2088 = vsel %vm1962, 0, %v2086
        %v2089 = vmul.f32 %v2087, %v2087
        %v2090 = vmul.f32 %v2089, -0.001358992
        %v2091 = vadd.f32 %v2090, 0.041655596
        %v2092 = vmul.f32 %v2089, %v2091
        %v2093 = vadd.f32 %v2092, -0.4999988
        %v2094 = vmul.f32 %v2089, %v2093
        %v2095 = vadd.f32 1.0, %v2094
        %v2096 = vmul.f32 %v2087, %v2087
        %v2097 = vmul.f32 %v2096, -0.00019511016
        %v2098 = vadd.f32 %v2097, 0.008332121
        %v2099 = vmul.f32 %v2096, %v2098
        %v2100 = vadd.f32 %v2099, -0.16666654
        %v2101 = vmul.f32 %v2096, %v2100
        %v2102 = vadd.f32 %v2101, 1.0
        %v2103 = vmul.f32 %v2102, %v2087
        %vm2104 = vweird.f32 %v1329
        %v2105 = vadd.s32 %v2088, 3
        %v2106 = vand.u32 %v2105, 3
        %vm2107 = vcmp.lt.s32.totalorder %v2106, 2
        %vm2108 = vcmp.eq.s32.totalorder %v2106, 0
        %v2109 = vxor.u32 %v2103, 2147483648
        %v2110 = vsel %vm2108, %v2095, %v2109
        %vm2111 = vcmp.eq.s32.totalorder %v2106, 2
        %v2112 = vxor.u32 %v2095, 2147483648
        %v2113 = vsel %vm2111, %v2112, %v2103
        %v2114 = vsel %vm2107, %v2110, %v2113
        %v2115 = vsel %vm2104, nan, %v2114
        %v2116 = vand.u32 2147483647, %v1330
        %vm2117 = vcmp.le.f32.partialorder %v2116, 0.7853982
        %vm2118 = vcmp.lt.s32.totalorder %v1330, 0
        %v2119 = vand.u32 %v1330, 2139095040
        %v2120 = vshrl.u32 %v2119, 23
        %v2121 = vsub.s32 %v2120, 127
        %v2122 = vand.u32 2147483647, %v1330
        %v2123 = vand.u32 %v2122, 8388607
        %v2124 = vor.u32 %v2123, 8388608
        %v2125 = vsub.s32 0, %v2124
        %v2126 = vadd.s32 %v2121, 1
        %vm2127 = vcmp.gt.s32.totalorder %v2126, 0
        %v2128 = vsel %vm2127, %v2126, 0
        %v2129 = vshrl.u32 %v2128, 5
        %v2130 = vand.u32 %v2128, 31
        %v2131 = vsub.s32 32, %v2130
        %v2132 = vshrl.u32 683565275, %v2131
        %v2133 = vshll.u32 683565275, %v2130
        %v2134 = vshrl.u32 2475754826, %v2131
        %v2135 = vor.u32 %v2133, %v2134
        %v2136 = vshll.u32 2475754826, %v2130
        %v2137 = vshrl.u32 2131351028, %v2131
        %v2138 = vor.u32 %v2136, %v2137
        %v2139 = vshll.u32 2131351028, %v2130
        %v2140 = vshrl.u32 2102212464, %v2131
        %v2141 = vor.u32 %v2139, %v2140
        %v2142 = vshll.u32 2102212464, %v2130
        %v2143 = vshrl.u32 920167782, %v2131
        %v2144 = vor.u32 %v2142, %v2143
        %v2145 = vshll.u32 920167782, %v2130
        %v2146 = vshrl.u32 1326507024, %v2131
        %v2147 = vor.u32 %v2145, %v2146
        %vm2148 = vcmp.lt.s32.totalorder %v2129, 1
        %vm2149 = vcmp.lt.s32.totalorder %v2129, 2
        %vm2150 = vcmp.lt.s32.totalorder %v2129, 3
        %vm2151 = vcmp.lt.s32.totalorder %v2129, 4
        %v2152 = vsel %vm2148, %v2132, %v2135
        %v2153 = vsel %vm2151, %v2141, 2102212464
        %v2154 = vsel %vm2150, %v2138, %v2153
        %v2155 = vsel %vm2149, %v2152, %v2154
        %v2156 = vsel %vm2148, %v2135, %v2138
        %v2157 = vsel %vm2151, %v2144, 920167782
        %v2158 = vsel %vm2150, %v2141, %v2157
        %v2159 = vsel %vm2149, %v2156, %v2158
        %v2160 = vsel %vm2148, %v2138, %v2141
        %v2161 = vsel %vm2151, %v2147, 1326507024
        %v2162 = vsel %vm2150, %v2144, %v2161
        %v2163 = vsel %vm2149, %v2160, %v2162
        %v2164 = vshll.u32 %v2124, 8
        %v2165 = vand.u32 %v2164, 65535
        %v2166 = vshrl.u32 %v2164, 16
        %v2167 = vand.u32 %v2163, 65535
        %v2168 = vshrl.u32 %v2163, 16
        %v2169 = vmul.u32 %v2165, %v2167
        %v2170 = vmul.u32 %v2165, %v2168
        %v2171 = vmul.u32 %v2166, %v2167
        %v2172 = vmul.u32 %v2166, %v2168
        %v2173 = vshll.u32 %v2170, 16
        %v2174 = vshrl.u32 %v2170, 16
        %v2175 = vshll.u32 %v2171, 16
        %v2176 = vshrl.u32 %v2171, 16
        %vm2177 = vc.u32 %v2169, %v2173
        %v2178 = vsel %vm2177, 1, 0
        %v2179 = vadd.s32 %v2169, %v2173
        %v2180 = vadd.s32 %v2172, %v2178
        %vm2181 = vc.u32 %v2179, %v2175
        %v2182 = vsel %vm2181, 1, 0
        %v2183 = vadd.s32 %v2179, %v2175
        %v2184 = vadd.s32 %v2180, %v2182
        %v2185 = vadd.s32 %v2184, %v2174
        %v2186 = vadd.s32 %v2185, %v2176
        %v2187 = vand.u32 %v2164, 65535
        %v2188 = vshrl.u32 %v2164, 16
        %v2189 = vand.u32 %v2159, 65535
        %v2190 = vshrl.u32 %v2159, 16
        %v2191 = vmul.u32 %v2187, %v2189
        %v2192 = vmul.u32 %v2187, %v2190
        %v2193 = vmul.u32 %v2188, %v2189
        %v2194 = vmul.u32 %v2188, %v2190
        %v2195 = vshll.u32 %v2192, 16
        %v2196 = vshrl.u32 %v2192, 16
        %v2197 = vshll.u32 %v2193, 16
        %v2198 = vshrl.u32 %v2193, 16
        %vm2199 = vc.u32 %v2191, %v2195
        %v2200 = vsel %vm2199, 1, 0
        %v2201 = vadd.s32 %v2191, %v2195
        %v2202 = vadd.s32 %v2194, %v2200
        %vm2203 = vc.u32 %v2201, %v2197
        %v2204 = vsel %vm2203, 1, 0
        %v2205 = vadd.s32 %v2201, %v2197
        %v2206 = vadd.s32 %v2202, %v2204
        %v2207 = vadd.s32 %v2206, %v2196
        %v2208 = vadd.s32 %v2207, %v2198
        %v2209 = vmul.u32 %v2164, %v2155
        %v2210 = vadd.s32 %v2186, %v2205
        %vm2211 = vc.u32 %v2186, %v2205
        %v2212 = vadd.s32 %v2208, 1
        %v2213 = vsel %vm2211, %v2212, %v2208
        %v2214 = vadd.s32 %v2209, %v2213
        %v2215 = vadd.s32 %v2214, 536870912
        %v2216 = vshrl.u32 %v2215, 30
        %v2217 = vshll.u32 %v2216, 30
        %v2218 = vsub.s32 %v2214, %v2217
        %vm2219 = vcmp.lt.s32.totalorder %v2218, 0
        %v2220 = vsub.s32 0, %v2218
        %v2221 = vsel %vm2219, %v2220, %v2218
        %v2222 = vclz %v2221
        %v2223 = vsub.s32 %v2222, 2
        %vm2224 = vcmp.gt.s32.totalorder 0, %v2223
        %v2225 = vsel %vm2224, 0, %v2223
        %v2226 = vsub.s32 32, %v2225
        %v2227 = vshll.u32 %v2218, %v2225
        %v2228 = vshrl.u32 %v2210, %v2226
        %v2229 = vor.u32 %v2227, %v2228
        %v2230 = vsub.s32 4294967266, %v2225
        %v2231 = vadd.s32 %v2230, 127
        %v2232 = vshll.u32 %v2231, 23
        %v2233 = vor.u32 4788187, %v2232
        %v2234 = vand.u32 2147483647, %v2233
        %v2236 = vcvt.s32.f32 %v2229
        %v2237 = vmul.f32 %v2236, %v2234
        %v2238 = vxor.u32 %v2237, 2147483648
        %v2239 = vsel %vm2118, %v2238, %v2237
        %v2240 = vsub.s32 4, %v2216
        %v2241 = vsel %vm2118, %v2240, %v2216
        %v2242 = vsel %vm2117, %v1330, %v2239
        %v2243 = vsel %vm2117, 0, %v2241
        %v2244 = vmul.f32 %v2242, %v2242
        %v2245 = vmul.f32 %v2244, -0.001358992
        %v2246 = vadd.f32 %v2245, 0.041655596
        %v2247 = vmul.f32 %v2244, %v2246
        %v2248 = vadd.f32 %v2247, -0.4999988
        %v2249 = vmul.f32 %v2244, %v2248
        %v2250 = vadd.f32 1.0, %v2249
        %v2251 = vmul.f32 %v2242, %v2242
        %v2252 = vmul.f32 %v2251, -0.00019511016
        %v2253 = vadd.f32 %v2252, 0.008332121
        %v2254 = vmul.f32 %v2251, %v2253
        %v2255 = vadd.f32 %v2254, -0.16666654
        %v2256 = vmul.f32 %v2251, %v2255
        %v2257 = vadd.f32 %v2256, 1.0
        %v2258 = vmul.f32 %v2257, %v2242
        %vm2259 = vweird.f32 %v1330
        %v2260 = vadd.s32 %v2243, 3
        %v2261 = vand.u32 %v2260, 3
        %vm2262 = vcmp.lt.s32.totalorder %v2261, 2
        %vm2263 = vcmp.eq.s32.totalorder %v2261, 0
        %v2264 = vxor.u32 %v2258, 2147483648
        %v2265 = vsel %vm2263, %v2250, %v2264
        %vm2266 = vcmp.eq.s32.totalorder %v2261, 2
        %v2267 = vxor.u32 %v2250, 2147483648
        %v2268 = vsel %vm2266, %v2267, %v2258
        %v2269 = vsel %vm2262, %v2265, %v2268
        %v2270 = vsel %vm2259, nan, %v2269
        %v2271 = vand.u32 2147483647, %v1331
        %vm2272 = vcmp.le.f32.partialorder %v2271, 0.7853982
        %vm2273 = vcmp.lt.s32.totalorder %v1331, 0
        %v2274 = vand.u32 %v1331, 2139095040
        %v2275 = vshrl.u32 %v2274, 23
        %v2276 = vsub.s32 %v2275, 127
        %v2277 = vand.u32 2147483647, %v1331
        %v2278 = vand.u32 %v2277, 8388607
        %v2279 = vor.u32 %v2278, 8388608
        %v2280 = vsub.s32 0, %v2279
        %v2281 = vadd.s32 %v2276, 1
        %vm2282 = vcmp.gt.s32.totalorder %v2281, 0
        %v2283 = vsel %vm2282, %v2281, 0
        %v2284 = vshrl.u32 %v2283, 5
        %v2285 = vand.u32 %v2283, 31
        %v2286 = vsub.s32 32, %v2285
        %v2287 = vshrl.u32 683565275, %v2286
        %v2288 = vshll.u32 683565275, %v2285
        %v2289 = vshrl.u32 2475754826, %v2286
        %v2290 = vor.u32 %v2288, %v2289
        %v2291 = vshll.u32 2475754826, %v2285
        %v2292 = vshrl.u32 2131351028, %v2286
        %v2293 = vor.u32 %v2291, %v2292
        %v2294 = vshll.u32 2131351028, %v2285
        %v2295 = vshrl.u32 2102212464, %v2286
        %v2296 = vor.u32 %v2294, %v2295
        %v2297 = vshll.u32 2102212464, %v2285
        %v2298 = vshrl.u32 920167782, %v2286
        %v2299 = vor.u32 %v2297, %v2298
        %v2300 = vshll.u32 920167782, %v2285
        %v2301 = vshrl.u32 1326507024, %v2286
        %v2302 = vor.u32 %v2300, %v2301
        %vm2303 = vcmp.lt.s32.totalorder %v2284, 1
        %vm2304 = vcmp.lt.s32.totalorder %v2284, 2
        %vm2305 = vcmp.lt.s32.totalorder %v2284, 3
        %vm2306 = vcmp.lt.s32.totalorder %v2284, 4
        %v2307 = vsel %vm2303, %v2287, %v2290
        %v2308 = vsel %vm2306, %v2296, 2102212464
        %v2309 = vsel %vm2305, %v2293, %v2308
        %v2310 = vsel %vm2304, %v2307, %v2309
        %v2311 = vsel %vm2303, %v2290, %v2293
        %v2312 = vsel %vm2306, %v2299, 920167782
        %v2313 = vsel %vm2305, %v2296, %v2312
        %v2314 = vsel %vm2304, %v2311, %v2313
        %v2315 = vsel %vm2303, %v2293, %v2296
        %v2316 = vsel %vm2306, %v2302, 1326507024
        %v2317 = vsel %vm2305, %v2299, %v2316
        %v2318 = vsel %vm2304, %v2315, %v2317
        %v2319 = vshll.u32 %v2279, 8
        %v2320 = vand.u32 %v2319, 65535
        %v2321 = vshrl.u32 %v2319, 16
        %v2322 = vand.u32 %v2318, 65535
        %v2323 = vshrl.u32 %v2318, 16
        %v2324 = vmul.u32 %v2320, %v2322
        %v2325 = vmul.u32 %v2320, %v2323
        %v2326 = vmul.u32 %v2321, %v2322
        %v2327 = vmul.u32 %v2321, %v2323
        %v2328 = vshll.u32 %v2325, 16
        %v2329 = vshrl.u32 %v2325, 16
        %v2330 = vshll.u32 %v2326, 16
        %v2331 = vshrl.u32 %v2326, 16
        %vm2332 = vc.u32 %v2324, %v2328
        %v2333 = vsel %vm2332, 1, 0
        %v2334 = vadd.s32 %v2324, %v2328
        %v2335 = vadd.s32 %v2327, %v2333
        %vm2336 = vc.u32 %v2334, %v2330
        %v2337 = vsel %vm2336, 1, 0
        %v2338 = vadd.s32 %v2334, %v2330
        %v2339 = vadd.s32 %v2335, %v2337
        %v2340 = vadd.s32 %v2339, %v2329
        %v2341 = vadd.s32 %v2340, %v2331
        %v2342 = vand.u32 %v2319, 65535
        %v2343 = vshrl.u32 %v2319, 16
        %v2344 = vand.u32 %v2314, 65535
        %v2345 = vshrl.u32 %v2314, 16
        %v2346 = vmul.u32 %v2342, %v2344
        %v2347 = vmul.u32 %v2342, %v2345
        %v2348 = vmul.u32 %v2343, %v2344
        %v2349 = vmul.u32 %v2343, %v2345
        %v2350 = vshll.u32 %v2347, 16
        %v2351 = vshrl.u32 %v2347, 16
        %v2352 = vshll.u32 %v2348, 16
        %v2353 = vshrl.u32 %v2348, 16
        %vm2354 = vc.u32 %v2346, %v2350
        %v2355 = vsel %vm2354, 1, 0
        %v2356 = vadd.s32 %v2346, %v2350
        %v2357 = vadd.s32 %v2349, %v2355
        %vm2358 = vc.u32 %v2356, %v2352
        %v2359 = vsel %vm2358, 1, 0
        %v2360 = vadd.s32 %v2356, %v2352
        %v2361 = vadd.s32 %v2357, %v2359
        %v2362 = vadd.s32 %v2361, %v2351
        %v2363 = vadd.s32 %v2362, %v2353
        %v2364 = vmul.u32 %v2319, %v2310
        %v2365 = vadd.s32 %v2341, %v2360
        %vm2366 = vc.u32 %v2341, %v2360
        %v2367 = vadd.s32 %v2363, 1
        %v2368 = vsel %vm2366, %v2367, %v2363
        %v2369 = vadd.s32 %v2364, %v2368
        %v2370 = vadd.s32 %v2369, 536870912
        %v2371 = vshrl.u32 %v2370, 30
        %v2372 = vshll.u32 %v2371, 30
        %v2373 = vsub.s32 %v2369, %v2372
        %vm2374 = vcmp.lt.s32.totalorder %v2373, 0
        %v2375 = vsub.s32 0, %v2373
        %v2376 = vsel %vm2374, %v2375, %v2373
        %v2377 = vclz %v2376
        %v2378 = vsub.s32 %v2377, 2
        %vm2379 = vcmp.gt.s32.totalorder 0, %v2378
        %v2380 = vsel %vm2379, 0, %v2378
        %v2381 = vsub.s32 32, %v2380
        %v2382 = vshll.u32 %v2373, %v2380
        %v2383 = vshrl.u32 %v2365, %v2381
        %v2384 = vor.u32 %v2382, %v2383
        %v2385 = vsub.s32 4294967266, %v2380
        %v2386 = vadd.s32 %v2385, 127
        %v2387 = vshll.u32 %v2386, 23
        %v2388 = vor.u32 4788187, %v2387
        %v2389 = vand.u32 2147483647, %v2388
        %v2391 = vcvt.s32.f32 %v2384
        %v2392 = vmul.f32 %v2391, %v2389
        %v2393 = vxor.u32 %v2392, 2147483648
        %v2394 = vsel %vm2273, %v2393, %v2392
        %v2395 = vsub.s32 4, %v2371
        %v2396 = vsel %vm2273, %v2395, %v2371
        %v2397 = vsel %vm2272, %v1331, %v2394
        %v2398 = vsel %vm2272, 0, %v2396
        %v2399 = vmul.f32 %v2397, %v2397
        %v2400 = vmul.f32 %v2399, -0.001358992
        %v2401 = vadd.f32 %v2400, 0.041655596
        %v2402 = vmul.f32 %v2399, %v2401
        %v2403 = vadd.f32 %v2402, -0.4999988
        %v2404 = vmul.f32 %v2399, %v2403
        %v2405 = vadd.f32 1.0, %v2404
        %v2406 = vmul.f32 %v2397, %v2397
        %v2407 = vmul.f32 %v2406, -0.00019511016
        %v2408 = vadd.f32 %v2407, 0.008332121
        %v2409 = vmul.f32 %v2406, %v2408
        %v2410 = vadd.f32 %v2409, -0.16666654
        %v2411 = vmul.f32 %v2406, %v2410
        %v2412 = vadd.f32 %v2411, 1.0
        %v2413 = vmul.f32 %v2412, %v2397
        %vm2414 = vweird.f32 %v1331
        %v2415 = vadd.s32 %v2398, 3
        %v2416 = vand.u32 %v2415, 3
        %vm2417 = vcmp.lt.s32.totalorder %v2416, 2
        %vm2418 = vcmp.eq.s32.totalorder %v2416, 0
        %v2419 = vxor.u32 %v2413, 2147483648
        %v2420 = vsel %vm2418, %v2405, %v2419
        %vm2421 = vcmp.eq.s32.totalorder %v2416, 2
        %v2422 = vxor.u32 %v2405, 2147483648
        %v2423 = vsel %vm2421, %v2422, %v2413
        %v2424 = vsel %vm2417, %v2420, %v2423
        %v2425 = vsel %vm2414, nan, %v2424
        %v2426 = vand.u32 2147483647, %v1332
        %vm2427 = vcmp.le.f32.partialorder %v2426, 0.7853982
        %vm2428 = vcmp.lt.s32.totalorder %v1332, 0
        %v2429 = vand.u32 %v1332, 2139095040
        %v2430 = vshrl.u32 %v2429, 23
        %v2431 = vsub.s32 %v2430, 127
        %v2432 = vand.u32 2147483647, %v1332
        %v2433 = vand.u32 %v2432, 8388607
        %v2434 = vor.u32 %v2433, 8388608
        %v2435 = vsub.s32 0, %v2434
        %v2436 = vadd.s32 %v2431, 1
        %vm2437 = vcmp.gt.s32.totalorder %v2436, 0
        %v2438 = vsel %vm2437, %v2436, 0
        %v2439 = vshrl.u32 %v2438, 5
        %v2440 = vand.u32 %v2438, 31
        %v2441 = vsub.s32 32, %v2440
        %v2442 = vshrl.u32 683565275, %v2441
        %v2443 = vshll.u32 683565275, %v2440
        %v2444 = vshrl.u32 2475754826, %v2441
        %v2445 = vor.u32 %v2443, %v2444
        %v2446 = vshll.u32 2475754826, %v2440
        %v2447 = vshrl.u32 2131351028, %v2441
        %v2448 = vor.u32 %v2446, %v2447
        %v2449 = vshll.u32 2131351028, %v2440
        %v2450 = vshrl.u32 2102212464, %v2441
        %v2451 = vor.u32 %v2449, %v2450
        %v2452 = vshll.u32 2102212464, %v2440
        %v2453 = vshrl.u32 920167782, %v2441
        %v2454 = vor.u32 %v2452, %v2453
        %v2455 = vshll.u32 920167782, %v2440
        %v2456 = vshrl.u32 1326507024, %v2441
        %v2457 = vor.u32 %v2455, %v2456
        %vm2458 = vcmp.lt.s32.totalorder %v2439, 1
        %vm2459 = vcmp.lt.s32.totalorder %v2439, 2
        %vm2460 = vcmp.lt.s32.totalorder %v2439, 3
        %vm2461 = vcmp.lt.s32.totalorder %v2439, 4
        %v2462 = vsel %vm2458, %v2442, %v2445
        %v2463 = vsel %vm2461, %v2451, 2102212464
        %v2464 = vsel %vm2460, %v2448, %v2463
        %v2465 = vsel %vm2459, %v2462, %v2464
        %v2466 = vsel %vm2458, %v2445, %v2448
        %v2467 = vsel %vm2461, %v2454, 920167782
        %v2468 = vsel %vm2460, %v2451, %v2467
        %v2469 = vsel %vm2459, %v2466, %v2468
        %v2470 = vsel %vm2458, %v2448, %v2451
        %v2471 = vsel %vm2461, %v2457, 1326507024
        %v2472 = vsel %vm2460, %v2454, %v2471
        %v2473 = vsel %vm2459, %v2470, %v2472
        %v2474 = vshll.u32 %v2434, 8
        %v2475 = vand.u32 %v2474, 65535
        %v2476 = vshrl.u32 %v2474, 16
        %v2477 = vand.u32 %v2473, 65535
        %v2478 = vshrl.u32 %v2473, 16
        %v2479 = vmul.u32 %v2475, %v2477
        %v2480 = vmul.u32 %v2475, %v2478
        %v2481 = vmul.u32 %v2476, %v2477
        %v2482 = vmul.u32 %v2476, %v2478
        %v2483 = vshll.u32 %v2480, 16
        %v2484 = vshrl.u32 %v2480, 16
        %v2485 = vshll.u32 %v2481, 16
        %v2486 = vshrl.u32 %v2481, 16
        %vm2487 = vc.u32 %v2479, %v2483
        %v2488 = vsel %vm2487, 1, 0
        %v2489 = vadd.s32 %v2479, %v2483
        %v2490 = vadd.s32 %v2482, %v2488
        %vm2491 = vc.u32 %v2489, %v2485
        %v2492 = vsel %vm2491, 1, 0
        %v2493 = vadd.s32 %v2489, %v2485
        %v2494 = vadd.s32 %v2490, %v2492
        %v2495 = vadd.s32 %v2494, %v2484
        %v2496 = vadd.s32 %v2495, %v2486
        %v2497 = vand.u32 %v2474, 65535
        %v2498 = vshrl.u32 %v2474, 16
        %v2499 = vand.u32 %v2469, 65535
        %v2500 = vshrl.u32 %v2469, 16
        %v2501 = vmul.u32 %v2497, %v2499
        %v2502 = vmul.u32 %v2497, %v2500
        %v2503 = vmul.u32 %v2498, %v2499
        %v2504 = vmul.u32 %v2498, %v2500
        %v2505 = vshll.u32 %v2502, 16
        %v2506 = vshrl.u32 %v2502, 16
        %v2507 = vshll.u32 %v2503, 16
        %v2508 = vshrl.u32 %v2503, 16
        %vm2509 = vc.u32 %v2501, %v2505
        %v2510 = vsel %vm2509, 1, 0
        %v2511 = vadd.s32 %v2501, %v2505
        %v2512 = vadd.s32 %v2504, %v2510
        %vm2513 = vc.u32 %v2511, %v2507
        %v2514 = vsel %vm2513, 1, 0
        %v2515 = vadd.s32 %v2511, %v2507
        %v2516 = vadd.s32 %v2512, %v2514
        %v2517 = vadd.s32 %v2516, %v2506
        %v2518 = vadd.s32 %v2517, %v2508
        %v2519 = vmul.u32 %v2474, %v2465
        %v2520 = vadd.s32 %v2496, %v2515
        %vm2521 = vc.u32 %v2496, %v2515
        %v2522 = vadd.s32 %v2518, 1
        %v2523 = vsel %vm2521, %v2522, %v2518
        %v2524 = vadd.s32 %v2519, %v2523
        %v2525 = vadd.s32 %v2524, 536870912
        %v2526 = vshrl.u32 %v2525, 30
        %v2527 = vshll.u32 %v2526, 30
        %v2528 = vsub.s32 %v2524, %v2527
        %vm2529 = vcmp.lt.s32.totalorder %v2528, 0
        %v2530 = vsub.s32 0, %v2528
        %v2531 = vsel %vm2529, %v2530, %v2528
        %v2532 = vclz %v2531
        %v2533 = vsub.s32 %v2532, 2
        %vm2534 = vcmp.gt.s32.totalorder 0, %v2533
        %v2535 = vsel %vm2534, 0, %v2533
        %v2536 = vsub.s32 32, %v2535
        %v2537 = vshll.u32 %v2528, %v2535
        %v2538 = vshrl.u32 %v2520, %v2536
        %v2539 = vor.u32 %v2537, %v2538
        %v2540 = vsub.s32 4294967266, %v2535
        %v2541 = vadd.s32 %v2540, 127
        %v2542 = vshll.u32 %v2541, 23
        %v2543 = vor.u32 4788187, %v2542
        %v2544 = vand.u32 2147483647, %v2543
        %v2546 = vcvt.s32.f32 %v2539
        %v2547 = vmul.f32 %v2546, %v2544
        %v2548 = vxor.u32 %v2547, 2147483648
        %v2549 = vsel %vm2428, %v2548, %v2547
        %v2550 = vsub.s32 4, %v2526
        %v2551 = vsel %vm2428, %v2550, %v2526
        %v2552 = vsel %vm2427, %v1332, %v2549
        %v2553 = vsel %vm2427, 0, %v2551
        %v2554 = vmul.f32 %v2552, %v2552
        %v2555 = vmul.f32 %v2554, -0.001358992
        %v2556 = vadd.f32 %v2555, 0.041655596
        %v2557 = vmul.f32 %v2554, %v2556
        %v2558 = vadd.f32 %v2557, -0.4999988
        %v2559 = vmul.f32 %v2554, %v2558
        %v2560 = vadd.f32 1.0, %v2559
        %v2561 = vmul.f32 %v2552, %v2552
        %v2562 = vmul.f32 %v2561, -0.00019511016
        %v2563 = vadd.f32 %v2562, 0.008332121
        %v2564 = vmul.f32 %v2561, %v2563
        %v2565 = vadd.f32 %v2564, -0.16666654
        %v2566 = vmul.f32 %v2561, %v2565
        %v2567 = vadd.f32 %v2566, 1.0
        %v2568 = vmul.f32 %v2567, %v2552
        %vm2569 = vweird.f32 %v1332
        %v2570 = vadd.s32 %v2553, 3
        %v2571 = vand.u32 %v2570, 3
        %vm2572 = vcmp.lt.s32.totalorder %v2571, 2
        %vm2573 = vcmp.eq.s32.totalorder %v2571, 0
        %v2574 = vxor.u32 %v2568, 2147483648
        %v2575 = vsel %vm2573, %v2560, %v2574
        %vm2576 = vcmp.eq.s32.totalorder %v2571, 2
        %v2577 = vxor.u32 %v2560, 2147483648
        %v2578 = vsel %vm2576, %v2577, %v2568
        %v2579 = vsel %vm2572, %v2575, %v2578
        %v2580 = vsel %vm2569, nan, %v2579
        %v2581 = vand.u32 2147483647, %v1333
        %vm2582 = vcmp.le.f32.partialorder %v2581, 0.7853982
        %vm2583 = vcmp.lt.s32.totalorder %v1333, 0
        %v2584 = vand.u32 %v1333, 2139095040
        %v2585 = vshrl.u32 %v2584, 23
        %v2586 = vsub.s32 %v2585, 127
        %v2587 = vand.u32 2147483647, %v1333
        %v2588 = vand.u32 %v2587, 8388607
        %v2589 = vor.u32 %v2588, 8388608
        %v2590 = vsub.s32 0, %v2589
        %v2591 = vadd.s32 %v2586, 1
        %vm2592 = vcmp.gt.s32.totalorder %v2591, 0
        %v2593 = vsel %vm2592, %v2591, 0
        %v2594 = vshrl.u32 %v2593, 5
        %v2595 = vand.u32 %v2593, 31
        %v2596 = vsub.s32 32, %v2595
        %v2597 = vshrl.u32 683565275, %v2596
        %v2598 = vshll.u32 683565275, %v2595
        %v2599 = vshrl.u32 2475754826, %v2596
        %v2600 = vor.u32 %v2598, %v2599
        %v2601 = vshll.u32 2475754826, %v2595
        %v2602 = vshrl.u32 2131351028, %v2596
        %v2603 = vor.u32 %v2601, %v2602
        %v2604 = vshll.u32 2131351028, %v2595
        %v2605 = vshrl.u32 2102212464, %v2596
        %v2606 = vor.u32 %v2604, %v2605
        %v2607 = vshll.u32 2102212464, %v2595
        %v2608 = vshrl.u32 920167782, %v2596
        %v2609 = vor.u32 %v2607, %v2608
        %v2610 = vshll.u32 920167782, %v2595
        %v2611 = vshrl.u32 1326507024, %v2596
        %v2612 = vor.u32 %v2610, %v2611
        %vm2613 = vcmp.lt.s32.totalorder %v2594, 1
        %vm2614 = vcmp.lt.s32.totalorder %v2594, 2
        %vm2615 = vcmp.lt.s32.totalorder %v2594, 3
        %vm2616 = vcmp.lt.s32.totalorder %v2594, 4
        %v2617 = vsel %vm2613, %v2597, %v2600
        %v2618 = vsel %vm2616, %v2606, 2102212464
        %v2619 = vsel %vm2615, %v2603, %v2618
        %v2620 = vsel %vm2614, %v2617, %v2619
        %v2621 = vsel %vm2613, %v2600, %v2603
        %v2622 = vsel %vm2616, %v2609, 920167782
        %v2623 = vsel %vm2615, %v2606, %v2622
        %v2624 = vsel %vm2614, %v2621, %v2623
        %v2625 = vsel %vm2613, %v2603, %v2606
        %v2626 = vsel %vm2616, %v2612, 1326507024
        %v2627 = vsel %vm2615, %v2609, %v2626
        %v2628 = vsel %vm2614, %v2625, %v2627
        %v2629 = vshll.u32 %v2589, 8
        %v2630 = vand.u32 %v2629, 65535
        %v2631 = vshrl.u32 %v2629, 16
        %v2632 = vand.u32 %v2628, 65535
        %v2633 = vshrl.u32 %v2628, 16
        %v2634 = vmul.u32 %v2630, %v2632
        %v2635 = vmul.u32 %v2630, %v2633
        %v2636 = vmul.u32 %v2631, %v2632
        %v2637 = vmul.u32 %v2631, %v2633
        %v2638 = vshll.u32 %v2635, 16
        %v2639 = vshrl.u32 %v2635, 16
        %v2640 = vshll.u32 %v2636, 16
        %v2641 = vshrl.u32 %v2636, 16
        %vm2642 = vc.u32 %v2634, %v2638
        %v2643 = vsel %vm2642, 1, 0
        %v2644 = vadd.s32 %v2634, %v2638
        %v2645 = vadd.s32 %v2637, %v2643
        %vm2646 = vc.u32 %v2644, %v2640
        %v2647 = vsel %vm2646, 1, 0
        %v2648 = vadd.s32 %v2644, %v2640
        %v2649 = vadd.s32 %v2645, %v2647
        %v2650 = vadd.s32 %v2649, %v2639
        %v2651 = vadd.s32 %v2650, %v2641
        %v2652 = vand.u32 %v2629, 65535
        %v2653 = vshrl.u32 %v2629, 16
        %v2654 = vand.u32 %v2624, 65535
        %v2655 = vshrl.u32 %v2624, 16
        %v2656 = vmul.u32 %v2652, %v2654
        %v2657 = vmul.u32 %v2652, %v2655
        %v2658 = vmul.u32 %v2653, %v2654
        %v2659 = vmul.u32 %v2653, %v2655
        %v2660 = vshll.u32 %v2657, 16
        %v2661 = vshrl.u32 %v2657, 16
        %v2662 = vshll.u32 %v2658, 16
        %v2663 = vshrl.u32 %v2658, 16
        %vm2664 = vc.u32 %v2656, %v2660
        %v2665 = vsel %vm2664, 1, 0
        %v2666 = vadd.s32 %v2656, %v2660
        %v2667 = vadd.s32 %v2659, %v2665
        %vm2668 = vc.u32 %v2666, %v2662
        %v2669 = vsel %vm2668, 1, 0
        %v2670 = vadd.s32 %v2666, %v2662
        %v2671 = vadd.s32 %v2667, %v2669
        %v2672 = vadd.s32 %v2671, %v2661
        %v2673 = vadd.s32 %v2672, %v2663
        %v2674 = vmul.u32 %v2629, %v2620
        %v2675 = vadd.s32 %v2651, %v2670
        %vm2676 = vc.u32 %v2651, %v2670
        %v2677 = vadd.s32 %v2673, 1
        %v2678 = vsel %vm2676, %v2677, %v2673
        %v2679 = vadd.s32 %v2674, %v2678
        %v2680 = vadd.s32 %v2679, 536870912
        %v2681 = vshrl.u32 %v2680, 30
        %v2682 = vshll.u32 %v2681, 30
        %v2683 = vsub.s32 %v2679, %v2682
        %vm2684 = vcmp.lt.s32.totalorder %v2683, 0
        %v2685 = vsub.s32 0, %v2683
        %v2686 = vsel %vm2684, %v2685, %v2683
        %v2687 = vclz %v2686
        %v2688 = vsub.s32 %v2687, 2
        %vm2689 = vcmp.gt.s32.totalorder 0, %v2688
        %v2690 = vsel %vm2689, 0, %v2688
        %v2691 = vsub.s32 32, %v2690
        %v2692 = vshll.u32 %v2683, %v2690
        %v2693 = vshrl.u32 %v2675, %v2691
        %v2694 = vor.u32 %v2692, %v2693
        %v2695 = vsub.s32 4294967266, %v2690
        %v2696 = vadd.s32 %v2695, 127
        %v2697 = vshll.u32 %v2696, 23
        %v2698 = vor.u32 4788187, %v2697
        %v2699 = vand.u32 2147483647, %v2698
        %v2701 = vcvt.s32.f32 %v2694
        %v2702 = vmul.f32 %v2701, %v2699
        %v2703 = vxor.u32 %v2702, 2147483648
        %v2704 = vsel %vm2583, %v2703, %v2702
        %v2705 = vsub.s32 4, %v2681
        %v2706 = vsel %vm2583, %v2705, %v2681
        %v2707 = vsel %vm2582, %v1333, %v2704
        %v2708 = vsel %vm2582, 0, %v2706
        %v2709 = vmul.f32 %v2707, %v2707
        %v2710 = vmul.f32 %v2709, -0.001358992
        %v2711 = vadd.f32 %v2710, 0.041655596
        %v2712 = vmul.f32 %v2709, %v2711
        %v2713 = vadd.f32 %v2712, -0.4999988
        %v2714 = vmul.f32 %v2709, %v2713
        %v2715 = vadd.f32 1.0, %v2714
        %v2716 = vmul.f32 %v2707, %v2707
        %v2717 = vmul.f32 %v2716, -0.00019511016
        %v2718 = vadd.f32 %v2717, 0.008332121
        %v2719 = vmul.f32 %v2716, %v2718
        %v2720 = vadd.f32 %v2719, -0.16666654
        %v2721 = vmul.f32 %v2716, %v2720
        %v2722 = vadd.f32 %v2721, 1.0
        %v2723 = vmul.f32 %v2722, %v2707
        %vm2724 = vweird.f32 %v1333
        %v2725 = vadd.s32 %v2708, 3
        %v2726 = vand.u32 %v2725, 3
        %vm2727 = vcmp.lt.s32.totalorder %v2726, 2
        %vm2728 = vcmp.eq.s32.totalorder %v2726, 0
        %v2729 = vxor.u32 %v2723, 2147483648
        %v2730 = vsel %vm2728, %v2715, %v2729
        %vm2731 = vcmp.eq.s32.totalorder %v2726, 2
        %v2732 = vxor.u32 %v2715, 2147483648
        %v2733 = vsel %vm2731, %v2732, %v2723
        %v2734 = vsel %vm2727, %v2730, %v2733
        %v2735 = vsel %vm2724, nan, %v2734
        %v2736 = vand.u32 2147483647, %v1334
        %vm2737 = vcmp.le.f32.partialorder %v2736, 0.7853982
        %vm2738 = vcmp.lt.s32.totalorder %v1334, 0
        %v2739 = vand.u32 %v1334, 2139095040
        %v2740 = vshrl.u32 %v2739, 23
        %v2741 = vsub.s32 %v2740, 127
        %v2742 = vand.u32 2147483647, %v1334
        %v2743 = vand.u32 %v2742, 8388607
        %v2744 = vor.u32 %v2743, 8388608
        %v2745 = vsub.s32 0, %v2744
        %v2746 = vadd.s32 %v2741, 1
        %vm2747 = vcmp.gt.s32.totalorder %v2746, 0
        %v2748 = vsel %vm2747, %v2746, 0
        %v2749 = vshrl.u32 %v2748, 5
        %v2750 = vand.u32 %v2748, 31
        %v2751 = vsub.s32 32, %v2750
        %v2752 = vshrl.u32 683565275, %v2751
        %v2753 = vshll.u32 683565275, %v2750
        %v2754 = vshrl.u32 2475754826, %v2751
        %v2755 = vor.u32 %v2753, %v2754
        %v2756 = vshll.u32 2475754826, %v2750
        %v2757 = vshrl.u32 2131351028, %v2751
        %v2758 = vor.u32 %v2756, %v2757
        %v2759 = vshll.u32 2131351028, %v2750
        %v2760 = vshrl.u32 2102212464, %v2751
        %v2761 = vor.u32 %v2759, %v2760
        %v2762 = vshll.u32 2102212464, %v2750
        %v2763 = vshrl.u32 920167782, %v2751
        %v2764 = vor.u32 %v2762, %v2763
        %v2765 = vshll.u32 920167782, %v2750
        %v2766 = vshrl.u32 1326507024, %v2751
        %v2767 = vor.u32 %v2765, %v2766
        %vm2768 = vcmp.lt.s32.totalorder %v2749, 1
        %vm2769 = vcmp.lt.s32.totalorder %v2749, 2
        %vm2770 = vcmp.lt.s32.totalorder %v2749, 3
        %vm2771 = vcmp.lt.s32.totalorder %v2749, 4
        %v2772 = vsel %vm2768, %v2752, %v2755
        %v2773 = vsel %vm2771, %v2761, 2102212464
        %v2774 = vsel %vm2770, %v2758, %v2773
        %v2775 = vsel %vm2769, %v2772, %v2774
        %v2776 = vsel %vm2768, %v2755, %v2758
        %v2777 = vsel %vm2771, %v2764, 920167782
        %v2778 = vsel %vm2770, %v2761, %v2777
        %v2779 = vsel %vm2769, %v2776, %v2778
        %v2780 = vsel %vm2768, %v2758, %v2761
        %v2781 = vsel %vm2771, %v2767, 1326507024
        %v2782 = vsel %vm2770, %v2764, %v2781
        %v2783 = vsel %vm2769, %v2780, %v2782
        %v2784 = vshll.u32 %v2744, 8
        %v2785 = vand.u32 %v2784, 65535
        %v2786 = vshrl.u32 %v2784, 16
        %v2787 = vand.u32 %v2783, 65535
        %v2788 = vshrl.u32 %v2783, 16
        %v2789 = vmul.u32 %v2785, %v2787
        %v2790 = vmul.u32 %v2785, %v2788
        %v2791 = vmul.u32 %v2786, %v2787
        %v2792 = vmul.u32 %v2786, %v2788
        %v2793 = vshll.u32 %v2790, 16
        %v2794 = vshrl.u32 %v2790, 16
        %v2795 = vshll.u32 %v2791, 16
        %v2796 = vshrl.u32 %v2791, 16
        %vm2797 = vc.u32 %v2789, %v2793
        %v2798 = vsel %vm2797, 1, 0
        %v2799 = vadd.s32 %v2789, %v2793
        %v2800 = vadd.s32 %v2792, %v2798
        %vm2801 = vc.u32 %v2799, %v2795
        %v2802 = vsel %vm2801, 1, 0
        %v2803 = vadd.s32 %v2799, %v2795
        %v2804 = vadd.s32 %v2800, %v2802
        %v2805 = vadd.s32 %v2804, %v2794
        %v2806 = vadd.s32 %v2805, %v2796
        %v2807 = vand.u32 %v2784, 65535
        %v2808 = vshrl.u32 %v2784, 16
        %v2809 = vand.u32 %v2779, 65535
        %v2810 = vshrl.u32 %v2779, 16
        %v2811 = vmul.u32 %v2807, %v2809
        %v2812 = vmul.u32 %v2807, %v2810
        %v2813 = vmul.u32 %v2808, %v2809
        %v2814 = vmul.u32 %v2808, %v2810
        %v2815 = vshll.u32 %v2812, 16
        %v2816 = vshrl.u32 %v2812, 16
        %v2817 = vshll.u32 %v2813, 16
        %v2818 = vshrl.u32 %v2813, 16
        %vm2819 = vc.u32 %v2811, %v2815
        %v2820 = vsel %vm2819, 1, 0
        %v2821 = vadd.s32 %v2811, %v2815
        %v2822 = vadd.s32 %v2814, %v2820
        %vm2823 = vc.u32 %v2821, %v2817
        %v2824 = vsel %vm2823, 1, 0
        %v2825 = vadd.s32 %v2821, %v2817
        %v2826 = vadd.s32 %v2822, %v2824
        %v2827 = vadd.s32 %v2826, %v2816
        %v2828 = vadd.s32 %v2827, %v2818
        %v2829 = vmul.u32 %v2784, %v2775
        %v2830 = vadd.s32 %v2806, %v2825
        %vm2831 = vc.u32 %v2806, %v2825
        %v2832 = vadd.s32 %v2828, 1
        %v2833 = vsel %vm2831, %v2832, %v2828
        %v2834 = vadd.s32 %v2829, %v2833
        %v2835 = vadd.s32 %v2834, 536870912
        %v2836 = vshrl.u32 %v2835, 30
        %v2837 = vshll.u32 %v2836, 30
        %v2838 = vsub.s32 %v2834, %v2837
        %vm2839 = vcmp.lt.s32.totalorder %v2838, 0
        %v2840 = vsub.s32 0, %v2838
        %v2841 = vsel %vm2839, %v2840, %v2838
        %v2842 = vclz %v2841
        %v2843 = vsub.s32 %v2842, 2
        %vm2844 = vcmp.gt.s32.totalorder 0, %v2843
        %v2845 = vsel %vm2844, 0, %v2843
        %v2846 = vsub.s32 32, %v2845
        %v2847 = vshll.u32 %v2838, %v2845
        %v2848 = vshrl.u32 %v2830, %v2846
        %v2849 = vor.u32 %v2847, %v2848
        %v2850 = vsub.s32 4294967266, %v2845
        %v2851 = vadd.s32 %v2850, 127
        %v2852 = vshll.u32 %v2851, 23
        %v2853 = vor.u32 4788187, %v2852
        %v2854 = vand.u32 2147483647, %v2853
        %v2856 = vcvt.s32.f32 %v2849
        %v2857 = vmul.f32 %v2856, %v2854
        %v2858 = vxor.u32 %v2857, 2147483648
        %v2859 = vsel %vm2738, %v2858, %v2857
        %v2860 = vsub.s32 4, %v2836
        %v2861 = vsel %vm2738, %v2860, %v2836
        %v2862 = vsel %vm2737, %v1334, %v2859
        %v2863 = vsel %vm2737, 0, %v2861
        %v2864 = vmul.f32 %v2862, %v2862
        %v2865 = vmul.f32 %v2864, -0.001358992
        %v2866 = vadd.f32 %v2865, 0.041655596
        %v2867 = vmul.f32 %v2864, %v2866
        %v2868 = vadd.f32 %v2867, -0.4999988
        %v2869 = vmul.f32 %v2864, %v2868
        %v2870 = vadd.f32 1.0, %v2869
        %v2871 = vmul.f32 %v2862, %v2862
        %v2872 = vmul.f32 %v2871, -0.00019511016
        %v2873 = vadd.f32 %v2872, 0.008332121
        %v2874 = vmul.f32 %v2871, %v2873
        %v2875 = vadd.f32 %v2874, -0.16666654
        %v2876 = vmul.f32 %v2871, %v2875
        %v2877 = vadd.f32 %v2876, 1.0
        %v2878 = vmul.f32 %v2877, %v2862
        %vm2879 = vweird.f32 %v1334
        %v2880 = vadd.s32 %v2863, 3
        %v2881 = vand.u32 %v2880, 3
        %vm2882 = vcmp.lt.s32.totalorder %v2881, 2
        %vm2883 = vcmp.eq.s32.totalorder %v2881, 0
        %v2884 = vxor.u32 %v2878, 2147483648
        %v2885 = vsel %vm2883, %v2870, %v2884
        %vm2886 = vcmp.eq.s32.totalorder %v2881, 2
        %v2887 = vxor.u32 %v2870, 2147483648
        %v2888 = vsel %vm2886, %v2887, %v2878
        %v2889 = vsel %vm2882, %v2885, %v2888
        %v2890 = vsel %vm2879, nan, %v2889
        %v2891 = vand.u32 2147483647, %v1335
        %vm2892 = vcmp.le.f32.partialorder %v2891, 0.7853982
        %vm2893 = vcmp.lt.s32.totalorder %v1335, 0
        %v2894 = vand.u32 %v1335, 2139095040
        %v2895 = vshrl.u32 %v2894, 23
        %v2896 = vsub.s32 %v2895, 127
        %v2897 = vand.u32 2147483647, %v1335
        %v2898 = vand.u32 %v2897, 8388607
        %v2899 = vor.u32 %v2898, 8388608
        %v2900 = vsub.s32 0, %v2899
        %v2901 = vadd.s32 %v2896, 1
        %vm2902 = vcmp.gt.s32.totalorder %v2901, 0
        %v2903 = vsel %vm2902, %v2901, 0
        %v2904 = vshrl.u32 %v2903, 5
        %v2905 = vand.u32 %v2903, 31
        %v2906 = vsub.s32 32, %v2905
        %v2907 = vshrl.u32 683565275, %v2906
        %v2908 = vshll.u32 683565275, %v2905
        %v2909 = vshrl.u32 2475754826, %v2906
        %v2910 = vor.u32 %v2908, %v2909
        %v2911 = vshll.u32 2475754826, %v2905
        %v2912 = vshrl.u32 2131351028, %v2906
        %v2913 = vor.u32 %v2911, %v2912
        %v2914 = vshll.u32 2131351028, %v2905
        %v2915 = vshrl.u32 2102212464, %v2906
        %v2916 = vor.u32 %v2914, %v2915
        %v2917 = vshll.u32 2102212464, %v2905
        %v2918 = vshrl.u32 920167782, %v2906
        %v2919 = vor.u32 %v2917, %v2918
        %v2920 = vshll.u32 920167782, %v2905
        %v2921 = vshrl.u32 1326507024, %v2906
        %v2922 = vor.u32 %v2920, %v2921
        %vm2923 = vcmp.lt.s32.totalorder %v2904, 1
        %vm2924 = vcmp.lt.s32.totalorder %v2904, 2
        %vm2925 = vcmp.lt.s32.totalorder %v2904, 3
        %vm2926 = vcmp.lt.s32.totalorder %v2904, 4
        %v2927 = vsel %vm2923, %v2907, %v2910
        %v2928 = vsel %vm2926, %v2916, 2102212464
        %v2929 = vsel %vm2925, %v2913, %v2928
        %v2930 = vsel %vm2924, %v2927, %v2929
        %v2931 = vsel %vm2923, %v2910, %v2913
        %v2932 = vsel %vm2926, %v2919, 920167782
        %v2933 = vsel %vm2925, %v2916, %v2932
        %v2934 = vsel %vm2924, %v2931, %v2933
        %v2935 = vsel %vm2923, %v2913, %v2916
        %v2936 = vsel %vm2926, %v2922, 1326507024
        %v2937 = vsel %vm2925, %v2919, %v2936
        %v2938 = vsel %vm2924, %v2935, %v2937
        %v2939 = vshll.u32 %v2899, 8
        %v2940 = vand.u32 %v2939, 65535
        %v2941 = vshrl.u32 %v2939, 16
        %v2942 = vand.u32 %v2938, 65535
        %v2943 = vshrl.u32 %v2938, 16
        %v2944 = vmul.u32 %v2940, %v2942
        %v2945 = vmul.u32 %v2940, %v2943
        %v2946 = vmul.u32 %v2941, %v2942
        %v2947 = vmul.u32 %v2941, %v2943
        %v2948 = vshll.u32 %v2945, 16
        %v2949 = vshrl.u32 %v2945, 16
        %v2950 = vshll.u32 %v2946, 16
        %v2951 = vshrl.u32 %v2946, 16
        %vm2952 = vc.u32 %v2944, %v2948
        %v2953 = vsel %vm2952, 1, 0
        %v2954 = vadd.s32 %v2944, %v2948
        %v2955 = vadd.s32 %v2947, %v2953
        %vm2956 = vc.u32 %v2954, %v2950
        %v2957 = vsel %vm2956, 1, 0
        %v2958 = vadd.s32 %v2954, %v2950
        %v2959 = vadd.s32 %v2955, %v2957
        %v2960 = vadd.s32 %v2959, %v2949
        %v2961 = vadd.s32 %v2960, %v2951
        %v2962 = vand.u32 %v2939, 65535
        %v2963 = vshrl.u32 %v2939, 16
        %v2964 = vand.u32 %v2934, 65535
        %v2965 = vshrl.u32 %v2934, 16
        %v2966 = vmul.u32 %v2962, %v2964
        %v2967 = vmul.u32 %v2962, %v2965
        %v2968 = vmul.u32 %v2963, %v2964
        %v2969 = vmul.u32 %v2963, %v2965
        %v2970 = vshll.u32 %v2967, 16
        %v2971 = vshrl.u32 %v2967, 16
        %v2972 = vshll.u32 %v2968, 16
        %v2973 = vshrl.u32 %v2968, 16
        %vm2974 = vc.u32 %v2966, %v2970
        %v2975 = vsel %vm2974, 1, 0
        %v2976 = vadd.s32 %v2966, %v2970
        %v2977 = vadd.s32 %v2969, %v2975
        %vm2978 = vc.u32 %v2976, %v2972
        %v2979 = vsel %vm2978, 1, 0
        %v2980 = vadd.s32 %v2976, %v2972
        %v2981 = vadd.s32 %v2977, %v2979
        %v2982 = vadd.s32 %v2981, %v2971
        %v2983 = vadd.s32 %v2982, %v2973
        %v2984 = vmul.u32 %v2939, %v2930
        %v2985 = vadd.s32 %v2961, %v2980
        %vm2986 = vc.u32 %v2961, %v2980
        %v2987 = vadd.s32 %v2983, 1
        %v2988 = vsel %vm2986, %v2987, %v2983
        %v2989 = vadd.s32 %v2984, %v2988
        %v2990 = vadd.s32 %v2989, 536870912
        %v2991 = vshrl.u32 %v2990, 30
        %v2992 = vshll.u32 %v2991, 30
        %v2993 = vsub.s32 %v2989, %v2992
        %vm2994 = vcmp.lt.s32.totalorder %v2993, 0
        %v2995 = vsub.s32 0, %v2993
        %v2996 = vsel %vm2994, %v2995, %v2993
        %v2997 = vclz %v2996
        %v2998 = vsub.s32 %v2997, 2
        %vm2999 = vcmp.gt.s32.totalorder 0, %v2998
        %v3000 = vsel %vm2999, 0, %v2998
        %v3001 = vsub.s32 32, %v3000
        %v3002 = vshll.u32 %v2993, %v3000
        %v3003 = vshrl.u32 %v2985, %v3001
        %v3004 = vor.u32 %v3002, %v3003
        %v3005 = vsub.s32 4294967266, %v3000
        %v3006 = vadd.s32 %v3005, 127
        %v3007 = vshll.u32 %v3006, 23
        %v3008 = vor.u32 4788187, %v3007
        %v3009 = vand.u32 2147483647, %v3008
        %v3011 = vcvt.s32.f32 %v3004
        %v3012 = vmul.f32 %v3011, %v3009
        %v3013 = vxor.u32 %v3012, 2147483648
        %v3014 = vsel %vm2893, %v3013, %v3012
        %v3015 = vsub.s32 4, %v2991
        %v3016 = vsel %vm2893, %v3015, %v2991
        %v3017 = vsel %vm2892, %v1335, %v3014
        %v3018 = vsel %vm2892, 0, %v3016
        %v3019 = vmul.f32 %v3017, %v3017
        %v3020 = vmul.f32 %v3019, -0.001358992
        %v3021 = vadd.f32 %v3020, 0.041655596
        %v3022 = vmul.f32 %v3019, %v3021
        %v3023 = vadd.f32 %v3022, -0.4999988
        %v3024 = vmul.f32 %v3019, %v3023
        %v3025 = vadd.f32 1.0, %v3024
        %v3026 = vmul.f32 %v3017, %v3017
        %v3027 = vmul.f32 %v3026, -0.00019511016
        %v3028 = vadd.f32 %v3027, 0.008332121
        %v3029 = vmul.f32 %v3026, %v3028
        %v3030 = vadd.f32 %v3029, -0.16666654
        %v3031 = vmul.f32 %v3026, %v3030
        %v3032 = vadd.f32 %v3031, 1.0
        %v3033 = vmul.f32 %v3032, %v3017
        %vm3034 = vweird.f32 %v1335
        %v3035 = vadd.s32 %v3018, 3
        %v3036 = vand.u32 %v3035, 3
        %vm3037 = vcmp.lt.s32.totalorder %v3036, 2
        %vm3038 = vcmp.eq.s32.totalorder %v3036, 0
        %v3039 = vxor.u32 %v3033, 2147483648
        %v3040 = vsel %vm3038, %v3025, %v3039
        %vm3041 = vcmp.eq.s32.totalorder %v3036, 2
        %v3042 = vxor.u32 %v3025, 2147483648
        %v3043 = vsel %vm3041, %v3042, %v3033
        %v3044 = vsel %vm3037, %v3040, %v3043
        %v3045 = vsel %vm3034, nan, %v3044
        %v3046 = vand.u32 2147483647, %v1336
        %vm3047 = vcmp.le.f32.partialorder %v3046, 0.7853982
        %vm3048 = vcmp.lt.s32.totalorder %v1336, 0
        %v3049 = vand.u32 %v1336, 2139095040
        %v3050 = vshrl.u32 %v3049, 23
        %v3051 = vsub.s32 %v3050, 127
        %v3052 = vand.u32 2147483647, %v1336
        %v3053 = vand.u32 %v3052, 8388607
        %v3054 = vor.u32 %v3053, 8388608
        %v3055 = vsub.s32 0, %v3054
        %v3056 = vadd.s32 %v3051, 1
        %vm3057 = vcmp.gt.s32.totalorder %v3056, 0
        %v3058 = vsel %vm3057, %v3056, 0
        %v3059 = vshrl.u32 %v3058, 5
        %v3060 = vand.u32 %v3058, 31
        %v3061 = vsub.s32 32, %v3060
        %v3062 = vshrl.u32 683565275, %v3061
        %v3063 = vshll.u32 683565275, %v3060
        %v3064 = vshrl.u32 2475754826, %v3061
        %v3065 = vor.u32 %v3063, %v3064
        %v3066 = vshll.u32 2475754826, %v3060
        %v3067 = vshrl.u32 2131351028, %v3061
        %v3068 = vor.u32 %v3066, %v3067
        %v3069 = vshll.u32 2131351028, %v3060
        %v3070 = vshrl.u32 2102212464, %v3061
        %v3071 = vor.u32 %v3069, %v3070
        %v3072 = vshll.u32 2102212464, %v3060
        %v3073 = vshrl.u32 920167782, %v3061
        %v3074 = vor.u32 %v3072, %v3073
        %v3075 = vshll.u32 920167782, %v3060
        %v3076 = vshrl.u32 1326507024, %v3061
        %v3077 = vor.u32 %v3075, %v3076
        %vm3078 = vcmp.lt.s32.totalorder %v3059, 1
        %vm3079 = vcmp.lt.s32.totalorder %v3059, 2
        %vm3080 = vcmp.lt.s32.totalorder %v3059, 3
        %vm3081 = vcmp.lt.s32.totalorder %v3059, 4
        %v3082 = vsel %vm3078, %v3062, %v3065
        %v3083 = vsel %vm3081, %v3071, 2102212464
        %v3084 = vsel %vm3080, %v3068, %v3083
        %v3085 = vsel %vm3079, %v3082, %v3084
        %v3086 = vsel %vm3078, %v3065, %v3068
        %v3087 = vsel %vm3081, %v3074, 920167782
        %v3088 = vsel %vm3080, %v3071, %v3087
        %v3089 = vsel %vm3079, %v3086, %v3088
        %v3090 = vsel %vm3078, %v3068, %v3071
        %v3091 = vsel %vm3081, %v3077, 1326507024
        %v3092 = vsel %vm3080, %v3074, %v3091
        %v3093 = vsel %vm3079, %v3090, %v3092
        %v3094 = vshll.u32 %v3054, 8
        %v3095 = vand.u32 %v3094, 65535
        %v3096 = vshrl.u32 %v3094, 16
        %v3097 = vand.u32 %v3093, 65535
        %v3098 = vshrl.u32 %v3093, 16
        %v3099 = vmul.u32 %v3095, %v3097
        %v3100 = vmul.u32 %v3095, %v3098
        %v3101 = vmul.u32 %v3096, %v3097
        %v3102 = vmul.u32 %v3096, %v3098
        %v3103 = vshll.u32 %v3100, 16
        %v3104 = vshrl.u32 %v3100, 16
        %v3105 = vshll.u32 %v3101, 16
        %v3106 = vshrl.u32 %v3101, 16
        %vm3107 = vc.u32 %v3099, %v3103
        %v3108 = vsel %vm3107, 1, 0
        %v3109 = vadd.s32 %v3099, %v3103
        %v3110 = vadd.s32 %v3102, %v3108
        %vm3111 = vc.u32 %v3109, %v3105
        %v3112 = vsel %vm3111, 1, 0
        %v3113 = vadd.s32 %v3109, %v3105
        %v3114 = vadd.s32 %v3110, %v3112
        %v3115 = vadd.s32 %v3114, %v3104
        %v3116 = vadd.s32 %v3115, %v3106
        %v3117 = vand.u32 %v3094, 65535
        %v3118 = vshrl.u32 %v3094, 16
        %v3119 = vand.u32 %v3089, 65535
        %v3120 = vshrl.u32 %v3089, 16
        %v3121 = vmul.u32 %v3117, %v3119
        %v3122 = vmul.u32 %v3117, %v3120
        %v3123 = vmul.u32 %v3118, %v3119
        %v3124 = vmul.u32 %v3118, %v3120
        %v3125 = vshll.u32 %v3122, 16
        %v3126 = vshrl.u32 %v3122, 16
        %v3127 = vshll.u32 %v3123, 16
        %v3128 = vshrl.u32 %v3123, 16
        %vm3129 = vc.u32 %v3121, %v3125
        %v3130 = vsel %vm3129, 1, 0
        %v3131 = vadd.s32 %v3121, %v3125
        %v3132 = vadd.s32 %v3124, %v3130
        %vm3133 = vc.u32 %v3131, %v3127
        %v3134 = vsel %vm3133, 1, 0
        %v3135 = vadd.s32 %v3131, %v3127
        %v3136 = vadd.s32 %v3132, %v3134
        %v3137 = vadd.s32 %v3136, %v3126
        %v3138 = vadd.s32 %v3137, %v3128
        %v3139 = vmul.u32 %v3094, %v3085
        %v3140 = vadd.s32 %v3116, %v3135
        %vm3141 = vc.u32 %v3116, %v3135
        %v3142 = vadd.s32 %v3138, 1
        %v3143 = vsel %vm3141, %v3142, %v3138
        %v3144 = vadd.s32 %v3139, %v3143
        %v3145 = vadd.s32 %v3144, 536870912
        %v3146 = vshrl.u32 %v3145, 30
        %v3147 = vshll.u32 %v3146, 30
        %v3148 = vsub.s32 %v3144, %v3147
        %vm3149 = vcmp.lt.s32.totalorder %v3148, 0
        %v3150 = vsub.s32 0, %v3148
        %v3151 = vsel %vm3149, %v3150, %v3148
        %v3152 = vclz %v3151
        %v3153 = vsub.s32 %v3152, 2
        %vm3154 = vcmp.gt.s32.totalorder 0, %v3153
        %v3155 = vsel %vm3154, 0, %v3153
        %v3156 = vsub.s32 32, %v3155
        %v3157 = vshll.u32 %v3148, %v3155
        %v3158 = vshrl.u32 %v3140, %v3156
        %v3159 = vor.u32 %v3157, %v3158
        %v3160 = vsub.s32 4294967266, %v3155
        %v3161 = vadd.s32 %v3160, 127
        %v3162 = vshll.u32 %v3161, 23
        %v3163 = vor.u32 4788187, %v3162
        %v3164 = vand.u32 2147483647, %v3163
        %v3166 = vcvt.s32.f32 %v3159
        %v3167 = vmul.f32 %v3166, %v3164
        %v3168 = vxor.u32 %v3167, 2147483648
        %v3169 = vsel %vm3048, %v3168, %v3167
        %v3170 = vsub.s32 4, %v3146
        %v3171 = vsel %vm3048, %v3170, %v3146
        %v3172 = vsel %vm3047, %v1336, %v3169
        %v3173 = vsel %vm3047, 0, %v3171
        %v3174 = vmul.f32 %v3172, %v3172
        %v3175 = vmul.f32 %v3174, -0.001358992
        %v3176 = vadd.f32 %v3175, 0.041655596
        %v3177 = vmul.f32 %v3174, %v3176
        %v3178 = vadd.f32 %v3177, -0.4999988
        %v3179 = vmul.f32 %v3174, %v3178
        %v3180 = vadd.f32 1.0, %v3179
        %v3181 = vmul.f32 %v3172, %v3172
        %v3182 = vmul.f32 %v3181, -0.00019511016
        %v3183 = vadd.f32 %v3182, 0.008332121
        %v3184 = vmul.f32 %v3181, %v3183
        %v3185 = vadd.f32 %v3184, -0.16666654
        %v3186 = vmul.f32 %v3181, %v3185
        %v3187 = vadd.f32 %v3186, 1.0
        %v3188 = vmul.f32 %v3187, %v3172
        %vm3189 = vweird.f32 %v1336
        %v3190 = vadd.s32 %v3173, 3
        %v3191 = vand.u32 %v3190, 3
        %vm3192 = vcmp.lt.s32.totalorder %v3191, 2
        %vm3193 = vcmp.eq.s32.totalorder %v3191, 0
        %v3194 = vxor.u32 %v3188, 2147483648
        %v3195 = vsel %vm3193, %v3180, %v3194
        %vm3196 = vcmp.eq.s32.totalorder %v3191, 2
        %v3197 = vxor.u32 %v3180, 2147483648
        %v3198 = vsel %vm3196, %v3197, %v3188
        %v3199 = vsel %vm3192, %v3195, %v3198
        %v3200 = vsel %vm3189, nan, %v3199
        %v3201 = vand.u32 2147483647, %v1337
        %vm3202 = vcmp.le.f32.partialorder %v3201, 0.7853982
        %vm3203 = vcmp.lt.s32.totalorder %v1337, 0
        %v3204 = vand.u32 %v1337, 2139095040
        %v3205 = vshrl.u32 %v3204, 23
        %v3206 = vsub.s32 %v3205, 127
        %v3207 = vand.u32 2147483647, %v1337
        %v3208 = vand.u32 %v3207, 8388607
        %v3209 = vor.u32 %v3208, 8388608
        %v3210 = vsub.s32 0, %v3209
        %v3211 = vadd.s32 %v3206, 1
        %vm3212 = vcmp.gt.s32.totalorder %v3211, 0
        %v3213 = vsel %vm3212, %v3211, 0
        %v3214 = vshrl.u32 %v3213, 5
        %v3215 = vand.u32 %v3213, 31
        %v3216 = vsub.s32 32, %v3215
        %v3217 = vshrl.u32 683565275, %v3216
        %v3218 = vshll.u32 683565275, %v3215
        %v3219 = vshrl.u32 2475754826, %v3216
        %v3220 = vor.u32 %v3218, %v3219
        %v3221 = vshll.u32 2475754826, %v3215
        %v3222 = vshrl.u32 2131351028, %v3216
        %v3223 = vor.u32 %v3221, %v3222
        %v3224 = vshll.u32 2131351028, %v3215
        %v3225 = vshrl.u32 2102212464, %v3216
        %v3226 = vor.u32 %v3224, %v3225
        %v3227 = vshll.u32 2102212464, %v3215
        %v3228 = vshrl.u32 920167782, %v3216
        %v3229 = vor.u32 %v3227, %v3228
        %v3230 = vshll.u32 920167782, %v3215
        %v3231 = vshrl.u32 1326507024, %v3216
        %v3232 = vor.u32 %v3230, %v3231
        %vm3233 = vcmp.lt.s32.totalorder %v3214, 1
        %vm3234 = vcmp.lt.s32.totalorder %v3214, 2
        %vm3235 = vcmp.lt.s32.totalorder %v3214, 3
        %vm3236 = vcmp.lt.s32.totalorder %v3214, 4
        %v3237 = vsel %vm3233, %v3217, %v3220
        %v3238 = vsel %vm3236, %v3226, 2102212464
        %v3239 = vsel %vm3235, %v3223, %v3238
        %v3240 = vsel %vm3234, %v3237, %v3239
        %v3241 = vsel %vm3233, %v3220, %v3223
        %v3242 = vsel %vm3236, %v3229, 920167782
        %v3243 = vsel %vm3235, %v3226, %v3242
        %v3244 = vsel %vm3234, %v3241, %v3243
        %v3245 = vsel %vm3233, %v3223, %v3226
        %v3246 = vsel %vm3236, %v3232, 1326507024
        %v3247 = vsel %vm3235, %v3229, %v3246
        %v3248 = vsel %vm3234, %v3245, %v3247
        %v3249 = vshll.u32 %v3209, 8
        %v3250 = vand.u32 %v3249, 65535
        %v3251 = vshrl.u32 %v3249, 16
        %v3252 = vand.u32 %v3248, 65535
        %v3253 = vshrl.u32 %v3248, 16
        %v3254 = vmul.u32 %v3250, %v3252
        %v3255 = vmul.u32 %v3250, %v3253
        %v3256 = vmul.u32 %v3251, %v3252
        %v3257 = vmul.u32 %v3251, %v3253
        %v3258 = vshll.u32 %v3255, 16
        %v3259 = vshrl.u32 %v3255, 16
        %v3260 = vshll.u32 %v3256, 16
        %v3261 = vshrl.u32 %v3256, 16
        %vm3262 = vc.u32 %v3254, %v3258
        %v3263 = vsel %vm3262, 1, 0
        %v3264 = vadd.s32 %v3254, %v3258
        %v3265 = vadd.s32 %v3257, %v3263
        %vm3266 = vc.u32 %v3264, %v3260
        %v3267 = vsel %vm3266, 1, 0
        %v3268 = vadd.s32 %v3264, %v3260
        %v3269 = vadd.s32 %v3265, %v3267
        %v3270 = vadd.s32 %v3269, %v3259
        %v3271 = vadd.s32 %v3270, %v3261
        %v3272 = vand.u32 %v3249, 65535
        %v3273 = vshrl.u32 %v3249, 16
        %v3274 = vand.u32 %v3244, 65535
        %v3275 = vshrl.u32 %v3244, 16
        %v3276 = vmul.u32 %v3272, %v3274
        %v3277 = vmul.u32 %v3272, %v3275
        %v3278 = vmul.u32 %v3273, %v3274
        %v3279 = vmul.u32 %v3273, %v3275
        %v3280 = vshll.u32 %v3277, 16
        %v3281 = vshrl.u32 %v3277, 16
        %v3282 = vshll.u32 %v3278, 16
        %v3283 = vshrl.u32 %v3278, 16
        %vm3284 = vc.u32 %v3276, %v3280
        %v3285 = vsel %vm3284, 1, 0
        %v3286 = vadd.s32 %v3276, %v3280
        %v3287 = vadd.s32 %v3279, %v3285
        %vm3288 = vc.u32 %v3286, %v3282
        %v3289 = vsel %vm3288, 1, 0
        %v3290 = vadd.s32 %v3286, %v3282
        %v3291 = vadd.s32 %v3287, %v3289
        %v3292 = vadd.s32 %v3291, %v3281
        %v3293 = vadd.s32 %v3292, %v3283
        %v3294 = vmul.u32 %v3249, %v3240
        %v3295 = vadd.s32 %v3271, %v3290
        %vm3296 = vc.u32 %v3271, %v3290
        %v3297 = vadd.s32 %v3293, 1
        %v3298 = vsel %vm3296, %v3297, %v3293
        %v3299 = vadd.s32 %v3294, %v3298
        %v3300 = vadd.s32 %v3299, 536870912
        %v3301 = vshrl.u32 %v3300, 30
        %v3302 = vshll.u32 %v3301, 30
        %v3303 = vsub.s32 %v3299, %v3302
        %vm3304 = vcmp.lt.s32.totalorder %v3303, 0
        %v3305 = vsub.s32 0, %v3303
        %v3306 = vsel %vm3304, %v3305, %v3303
        %v3307 = vclz %v3306
        %v3308 = vsub.s32 %v3307, 2
        %vm3309 = vcmp.gt.s32.totalorder 0, %v3308
        %v3310 = vsel %vm3309, 0, %v3308
        %v3311 = vsub.s32 32, %v3310
        %v3312 = vshll.u32 %v3303, %v3310
        %v3313 = vshrl.u32 %v3295, %v3311
        %v3314 = vor.u32 %v3312, %v3313
        %v3315 = vsub.s32 4294967266, %v3310
        %v3316 = vadd.s32 %v3315, 127
        %v3317 = vshll.u32 %v3316, 23
        %v3318 = vor.u32 4788187, %v3317
        %v3319 = vand.u32 2147483647, %v3318
        %v3321 = vcvt.s32.f32 %v3314
        %v3322 = vmul.f32 %v3321, %v3319
        %v3323 = vxor.u32 %v3322, 2147483648
        %v3324 = vsel %vm3203, %v3323, %v3322
        %v3325 = vsub.s32 4, %v3301
        %v3326 = vsel %vm3203, %v3325, %v3301
        %v3327 = vsel %vm3202, %v1337, %v3324
        %v3328 = vsel %vm3202, 0, %v3326
        %v3329 = vmul.f32 %v3327, %v3327
        %v3330 = vmul.f32 %v3329, -0.001358992
        %v3331 = vadd.f32 %v3330, 0.041655596
        %v3332 = vmul.f32 %v3329, %v3331
        %v3333 = vadd.f32 %v3332, -0.4999988
        %v3334 = vmul.f32 %v3329, %v3333
        %v3335 = vadd.f32 1.0, %v3334
        %v3336 = vmul.f32 %v3327, %v3327
        %v3337 = vmul.f32 %v3336, -0.00019511016
        %v3338 = vadd.f32 %v3337, 0.008332121
        %v3339 = vmul.f32 %v3336, %v3338
        %v3340 = vadd.f32 %v3339, -0.16666654
        %v3341 = vmul.f32 %v3336, %v3340
        %v3342 = vadd.f32 %v3341, 1.0
        %v3343 = vmul.f32 %v3342, %v3327
        %vm3344 = vweird.f32 %v1337
        %v3345 = vadd.s32 %v3328, 3
        %v3346 = vand.u32 %v3345, 3
        %vm3347 = vcmp.lt.s32.totalorder %v3346, 2
        %vm3348 = vcmp.eq.s32.totalorder %v3346, 0
        %v3349 = vxor.u32 %v3343, 2147483648
        %v3350 = vsel %vm3348, %v3335, %v3349
        %vm3351 = vcmp.eq.s32.totalorder %v3346, 2
        %v3352 = vxor.u32 %v3335, 2147483648
        %v3353 = vsel %vm3351, %v3352, %v3343
        %v3354 = vsel %vm3347, %v3350, %v3353
        %v3355 = vsel %vm3344, nan, %v3354
        %v3356 = vand.u32 2147483647, %v1338
        %vm3357 = vcmp.le.f32.partialorder %v3356, 0.7853982
        %vm3358 = vcmp.lt.s32.totalorder %v1338, 0
        %v3359 = vand.u32 %v1338, 2139095040
        %v3360 = vshrl.u32 %v3359, 23
        %v3361 = vsub.s32 %v3360, 127
        %v3362 = vand.u32 2147483647, %v1338
        %v3363 = vand.u32 %v3362, 8388607
        %v3364 = vor.u32 %v3363, 8388608
        %v3365 = vsub.s32 0, %v3364
        %v3366 = vadd.s32 %v3361, 1
        %vm3367 = vcmp.gt.s32.totalorder %v3366, 0
        %v3368 = vsel %vm3367, %v3366, 0
        %v3369 = vshrl.u32 %v3368, 5
        %v3370 = vand.u32 %v3368, 31
        %v3371 = vsub.s32 32, %v3370
        %v3372 = vshrl.u32 683565275, %v3371
        %v3373 = vshll.u32 683565275, %v3370
        %v3374 = vshrl.u32 2475754826, %v3371
        %v3375 = vor.u32 %v3373, %v3374
        %v3376 = vshll.u32 2475754826, %v3370
        %v3377 = vshrl.u32 2131351028, %v3371
        %v3378 = vor.u32 %v3376, %v3377
        %v3379 = vshll.u32 2131351028, %v3370
        %v3380 = vshrl.u32 2102212464, %v3371
        %v3381 = vor.u32 %v3379, %v3380
        %v3382 = vshll.u32 2102212464, %v3370
        %v3383 = vshrl.u32 920167782, %v3371
        %v3384 = vor.u32 %v3382, %v3383
        %v3385 = vshll.u32 920167782, %v3370
        %v3386 = vshrl.u32 1326507024, %v3371
        %v3387 = vor.u32 %v3385, %v3386
        %vm3388 = vcmp.lt.s32.totalorder %v3369, 1
        %vm3389 = vcmp.lt.s32.totalorder %v3369, 2
        %vm3390 = vcmp.lt.s32.totalorder %v3369, 3
        %vm3391 = vcmp.lt.s32.totalorder %v3369, 4
        %v3392 = vsel %vm3388, %v3372, %v3375
        %v3393 = vsel %vm3391, %v3381, 2102212464
        %v3394 = vsel %vm3390, %v3378, %v3393
        %v3395 = vsel %vm3389, %v3392, %v3394
        %v3396 = vsel %vm3388, %v3375, %v3378
        %v3397 = vsel %vm3391, %v3384, 920167782
        %v3398 = vsel %vm3390, %v3381, %v3397
        %v3399 = vsel %vm3389, %v3396, %v3398
        %v3400 = vsel %vm3388, %v3378, %v3381
        %v3401 = vsel %vm3391, %v3387, 1326507024
        %v3402 = vsel %vm3390, %v3384, %v3401
        %v3403 = vsel %vm3389, %v3400, %v3402
        %v3404 = vshll.u32 %v3364, 8
        %v3405 = vand.u32 %v3404, 65535
        %v3406 = vshrl.u32 %v3404, 16
        %v3407 = vand.u32 %v3403, 65535
        %v3408 = vshrl.u32 %v3403, 16
        %v3409 = vmul.u32 %v3405, %v3407
        %v3410 = vmul.u32 %v3405, %v3408
        %v3411 = vmul.u32 %v3406, %v3407
        %v3412 = vmul.u32 %v3406, %v3408
        %v3413 = vshll.u32 %v3410, 16
        %v3414 = vshrl.u32 %v3410, 16
        %v3415 = vshll.u32 %v3411, 16
        %v3416 = vshrl.u32 %v3411, 16
        %vm3417 = vc.u32 %v3409, %v3413
        %v3418 = vsel %vm3417, 1, 0
        %v3419 = vadd.s32 %v3409, %v3413
        %v3420 = vadd.s32 %v3412, %v3418
        %vm3421 = vc.u32 %v3419, %v3415
        %v3422 = vsel %vm3421, 1, 0
        %v3423 = vadd.s32 %v3419, %v3415
        %v3424 = vadd.s32 %v3420, %v3422
        %v3425 = vadd.s32 %v3424, %v3414
        %v3426 = vadd.s32 %v3425, %v3416
        %v3427 = vand.u32 %v3404, 65535
        %v3428 = vshrl.u32 %v3404, 16
        %v3429 = vand.u32 %v3399, 65535
        %v3430 = vshrl.u32 %v3399, 16
        %v3431 = vmul.u32 %v3427, %v3429
        %v3432 = vmul.u32 %v3427, %v3430
        %v3433 = vmul.u32 %v3428, %v3429
        %v3434 = vmul.u32 %v3428, %v3430
        %v3435 = vshll.u32 %v3432, 16
        %v3436 = vshrl.u32 %v3432, 16
        %v3437 = vshll.u32 %v3433, 16
        %v3438 = vshrl.u32 %v3433, 16
        %vm3439 = vc.u32 %v3431, %v3435
        %v3440 = vsel %vm3439, 1, 0
        %v3441 = vadd.s32 %v3431, %v3435
        %v3442 = vadd.s32 %v3434, %v3440
        %vm3443 = vc.u32 %v3441, %v3437
        %v3444 = vsel %vm3443, 1, 0
        %v3445 = vadd.s32 %v3441, %v3437
        %v3446 = vadd.s32 %v3442, %v3444
        %v3447 = vadd.s32 %v3446, %v3436
        %v3448 = vadd.s32 %v3447, %v3438
        %v3449 = vmul.u32 %v3404, %v3395
        %v3450 = vadd.s32 %v3426, %v3445
        %vm3451 = vc.u32 %v3426, %v3445
        %v3452 = vadd.s32 %v3448, 1
        %v3453 = vsel %vm3451, %v3452, %v3448
        %v3454 = vadd.s32 %v3449, %v3453
        %v3455 = vadd.s32 %v3454, 536870912
        %v3456 = vshrl.u32 %v3455, 30
        %v3457 = vshll.u32 %v3456, 30
        %v3458 = vsub.s32 %v3454, %v3457
        %vm3459 = vcmp.lt.s32.totalorder %v3458, 0
        %v3460 = vsub.s32 0, %v3458
        %v3461 = vsel %vm3459, %v3460, %v3458
        %v3462 = vclz %v3461
        %v3463 = vsub.s32 %v3462, 2
        %vm3464 = vcmp.gt.s32.totalorder 0, %v3463
        %v3465 = vsel %vm3464, 0, %v3463
        %v3466 = vsub.s32 32, %v3465
        %v3467 = vshll.u32 %v3458, %v3465
        %v3468 = vshrl.u32 %v3450, %v3466
        %v3469 = vor.u32 %v3467, %v3468
        %v3470 = vsub.s32 4294967266, %v3465
        %v3471 = vadd.s32 %v3470, 127
        %v3472 = vshll.u32 %v3471, 23
        %v3473 = vor.u32 4788187, %v3472
        %v3474 = vand.u32 2147483647, %v3473
        %v3476 = vcvt.s32.f32 %v3469
        %v3477 = vmul.f32 %v3476, %v3474
        %v3478 = vxor.u32 %v3477, 2147483648
        %v3479 = vsel %vm3358, %v3478, %v3477
        %v3480 = vsub.s32 4, %v3456
        %v3481 = vsel %vm3358, %v3480, %v3456
        %v3482 = vsel %vm3357, %v1338, %v3479
        %v3483 = vsel %vm3357, 0, %v3481
        %v3484 = vmul.f32 %v3482, %v3482
        %v3485 = vmul.f32 %v3484, -0.001358992
        %v3486 = vadd.f32 %v3485, 0.041655596
        %v3487 = vmul.f32 %v3484, %v3486
        %v3488 = vadd.f32 %v3487, -0.4999988
        %v3489 = vmul.f32 %v3484, %v3488
        %v3490 = vadd.f32 1.0, %v3489
        %v3491 = vmul.f32 %v3482, %v3482
        %v3492 = vmul.f32 %v3491, -0.00019511016
        %v3493 = vadd.f32 %v3492, 0.008332121
        %v3494 = vmul.f32 %v3491, %v3493
        %v3495 = vadd.f32 %v3494, -0.16666654
        %v3496 = vmul.f32 %v3491, %v3495
        %v3497 = vadd.f32 %v3496, 1.0
        %v3498 = vmul.f32 %v3497, %v3482
        %vm3499 = vweird.f32 %v1338
        %v3500 = vadd.s32 %v3483, 3
        %v3501 = vand.u32 %v3500, 3
        %vm3502 = vcmp.lt.s32.totalorder %v3501, 2
        %vm3503 = vcmp.eq.s32.totalorder %v3501, 0
        %v3504 = vxor.u32 %v3498, 2147483648
        %v3505 = vsel %vm3503, %v3490, %v3504
        %vm3506 = vcmp.eq.s32.totalorder %v3501, 2
        %v3507 = vxor.u32 %v3490, 2147483648
        %v3508 = vsel %vm3506, %v3507, %v3498
        %v3509 = vsel %vm3502, %v3505, %v3508
        %v3510 = vsel %vm3499, nan, %v3509
        %v3511 = vand.u32 2147483647, %v1339
        %vm3512 = vcmp.le.f32.partialorder %v3511, 0.7853982
        %vm3513 = vcmp.lt.s32.totalorder %v1339, 0
        %v3514 = vand.u32 %v1339, 2139095040
        %v3515 = vshrl.u32 %v3514, 23
        %v3516 = vsub.s32 %v3515, 127
        %v3517 = vand.u32 2147483647, %v1339
        %v3518 = vand.u32 %v3517, 8388607
        %v3519 = vor.u32 %v3518, 8388608
        %v3520 = vsub.s32 0, %v3519
        %v3521 = vadd.s32 %v3516, 1
        %vm3522 = vcmp.gt.s32.totalorder %v3521, 0
        %v3523 = vsel %vm3522, %v3521, 0
        %v3524 = vshrl.u32 %v3523, 5
        %v3525 = vand.u32 %v3523, 31
        %v3526 = vsub.s32 32, %v3525
        %v3527 = vshrl.u32 683565275, %v3526
        %v3528 = vshll.u32 683565275, %v3525
        %v3529 = vshrl.u32 2475754826, %v3526
        %v3530 = vor.u32 %v3528, %v3529
        %v3531 = vshll.u32 2475754826, %v3525
        %v3532 = vshrl.u32 2131351028, %v3526
        %v3533 = vor.u32 %v3531, %v3532
        %v3534 = vshll.u32 2131351028, %v3525
        %v3535 = vshrl.u32 2102212464, %v3526
        %v3536 = vor.u32 %v3534, %v3535
        %v3537 = vshll.u32 2102212464, %v3525
        %v3538 = vshrl.u32 920167782, %v3526
        %v3539 = vor.u32 %v3537, %v3538
        %v3540 = vshll.u32 920167782, %v3525
        %v3541 = vshrl.u32 1326507024, %v3526
        %v3542 = vor.u32 %v3540, %v3541
        %vm3543 = vcmp.lt.s32.totalorder %v3524, 1
        %vm3544 = vcmp.lt.s32.totalorder %v3524, 2
        %vm3545 = vcmp.lt.s32.totalorder %v3524, 3
        %vm3546 = vcmp.lt.s32.totalorder %v3524, 4
        %v3547 = vsel %vm3543, %v3527, %v3530
        %v3548 = vsel %vm3546, %v3536, 2102212464
        %v3549 = vsel %vm3545, %v3533, %v3548
        %v3550 = vsel %vm3544, %v3547, %v3549
        %v3551 = vsel %vm3543, %v3530, %v3533
        %v3552 = vsel %vm3546, %v3539, 920167782
        %v3553 = vsel %vm3545, %v3536, %v3552
        %v3554 = vsel %vm3544, %v3551, %v3553
        %v3555 = vsel %vm3543, %v3533, %v3536
        %v3556 = vsel %vm3546, %v3542, 1326507024
        %v3557 = vsel %vm3545, %v3539, %v3556
        %v3558 = vsel %vm3544, %v3555, %v3557
        %v3559 = vshll.u32 %v3519, 8
        %v3560 = vand.u32 %v3559, 65535
        %v3561 = vshrl.u32 %v3559, 16
        %v3562 = vand.u32 %v3558, 65535
        %v3563 = vshrl.u32 %v3558, 16
        %v3564 = vmul.u32 %v3560, %v3562
        %v3565 = vmul.u32 %v3560, %v3563
        %v3566 = vmul.u32 %v3561, %v3562
        %v3567 = vmul.u32 %v3561, %v3563
        %v3568 = vshll.u32 %v3565, 16
        %v3569 = vshrl.u32 %v3565, 16
        %v3570 = vshll.u32 %v3566, 16
        %v3571 = vshrl.u32 %v3566, 16
        %vm3572 = vc.u32 %v3564, %v3568
        %v3573 = vsel %vm3572, 1, 0
        %v3574 = vadd.s32 %v3564, %v3568
        %v3575 = vadd.s32 %v3567, %v3573
        %vm3576 = vc.u32 %v3574, %v3570
        %v3577 = vsel %vm3576, 1, 0
        %v3578 = vadd.s32 %v3574, %v3570
        %v3579 = vadd.s32 %v3575, %v3577
        %v3580 = vadd.s32 %v3579, %v3569
        %v3581 = vadd.s32 %v3580, %v3571
        %v3582 = vand.u32 %v3559, 65535
        %v3583 = vshrl.u32 %v3559, 16
        %v3584 = vand.u32 %v3554, 65535
        %v3585 = vshrl.u32 %v3554, 16
        %v3586 = vmul.u32 %v3582, %v3584
        %v3587 = vmul.u32 %v3582, %v3585
        %v3588 = vmul.u32 %v3583, %v3584
        %v3589 = vmul.u32 %v3583, %v3585
        %v3590 = vshll.u32 %v3587, 16
        %v3591 = vshrl.u32 %v3587, 16
        %v3592 = vshll.u32 %v3588, 16
        %v3593 = vshrl.u32 %v3588, 16
        %vm3594 = vc.u32 %v3586, %v3590
        %v3595 = vsel %vm3594, 1, 0
        %v3596 = vadd.s32 %v3586, %v3590
        %v3597 = vadd.s32 %v3589, %v3595
        %vm3598 = vc.u32 %v3596, %v3592
        %v3599 = vsel %vm3598, 1, 0
        %v3600 = vadd.s32 %v3596, %v3592
        %v3601 = vadd.s32 %v3597, %v3599
        %v3602 = vadd.s32 %v3601, %v3591
        %v3603 = vadd.s32 %v3602, %v3593
        %v3604 = vmul.u32 %v3559, %v3550
        %v3605 = vadd.s32 %v3581, %v3600
        %vm3606 = vc.u32 %v3581, %v3600
        %v3607 = vadd.s32 %v3603, 1
        %v3608 = vsel %vm3606, %v3607, %v3603
        %v3609 = vadd.s32 %v3604, %v3608
        %v3610 = vadd.s32 %v3609, 536870912
        %v3611 = vshrl.u32 %v3610, 30
        %v3612 = vshll.u32 %v3611, 30
        %v3613 = vsub.s32 %v3609, %v3612
        %vm3614 = vcmp.lt.s32.totalorder %v3613, 0
        %v3615 = vsub.s32 0, %v3613
        %v3616 = vsel %vm3614, %v3615, %v3613
        %v3617 = vclz %v3616
        %v3618 = vsub.s32 %v3617, 2
        %vm3619 = vcmp.gt.s32.totalorder 0, %v3618
        %v3620 = vsel %vm3619, 0, %v3618
        %v3621 = vsub.s32 32, %v3620
        %v3622 = vshll.u32 %v3613, %v3620
        %v3623 = vshrl.u32 %v3605, %v3621
        %v3624 = vor.u32 %v3622, %v3623
        %v3625 = vsub.s32 4294967266, %v3620
        %v3626 = vadd.s32 %v3625, 127
        %v3627 = vshll.u32 %v3626, 23
        %v3628 = vor.u32 4788187, %v3627
        %v3629 = vand.u32 2147483647, %v3628
        %v3631 = vcvt.s32.f32 %v3624
        %v3632 = vmul.f32 %v3631, %v3629
        %v3633 = vxor.u32 %v3632, 2147483648
        %v3634 = vsel %vm3513, %v3633, %v3632
        %v3635 = vsub.s32 4, %v3611
        %v3636 = vsel %vm3513, %v3635, %v3611
        %v3637 = vsel %vm3512, %v1339, %v3634
        %v3638 = vsel %vm3512, 0, %v3636
        %v3639 = vmul.f32 %v3637, %v3637
        %v3640 = vmul.f32 %v3639, -0.001358992
        %v3641 = vadd.f32 %v3640, 0.041655596
        %v3642 = vmul.f32 %v3639, %v3641
        %v3643 = vadd.f32 %v3642, -0.4999988
        %v3644 = vmul.f32 %v3639, %v3643
        %v3645 = vadd.f32 1.0, %v3644
        %v3646 = vmul.f32 %v3637, %v3637
        %v3647 = vmul.f32 %v3646, -0.00019511016
        %v3648 = vadd.f32 %v3647, 0.008332121
        %v3649 = vmul.f32 %v3646, %v3648
        %v3650 = vadd.f32 %v3649, -0.16666654
        %v3651 = vmul.f32 %v3646, %v3650
        %v3652 = vadd.f32 %v3651, 1.0
        %v3653 = vmul.f32 %v3652, %v3637
        %vm3654 = vweird.f32 %v1339
        %v3655 = vadd.s32 %v3638, 3
        %v3656 = vand.u32 %v3655, 3
        %vm3657 = vcmp.lt.s32.totalorder %v3656, 2
        %vm3658 = vcmp.eq.s32.totalorder %v3656, 0
        %v3659 = vxor.u32 %v3653, 2147483648
        %v3660 = vsel %vm3658, %v3645, %v3659
        %vm3661 = vcmp.eq.s32.totalorder %v3656, 2
        %v3662 = vxor.u32 %v3645, 2147483648
        %v3663 = vsel %vm3661, %v3662, %v3653
        %v3664 = vsel %vm3657, %v3660, %v3663
        %v3665 = vsel %vm3654, nan, %v3664
        %v3666 = vand.u32 2147483647, %v1340
        %vm3667 = vcmp.le.f32.partialorder %v3666, 0.7853982
        %vm3668 = vcmp.lt.s32.totalorder %v1340, 0
        %v3669 = vand.u32 %v1340, 2139095040
        %v3670 = vshrl.u32 %v3669, 23
        %v3671 = vsub.s32 %v3670, 127
        %v3672 = vand.u32 2147483647, %v1340
        %v3673 = vand.u32 %v3672, 8388607
        %v3674 = vor.u32 %v3673, 8388608
        %v3675 = vsub.s32 0, %v3674
        %v3676 = vadd.s32 %v3671, 1
        %vm3677 = vcmp.gt.s32.totalorder %v3676, 0
        %v3678 = vsel %vm3677, %v3676, 0
        %v3679 = vshrl.u32 %v3678, 5
        %v3680 = vand.u32 %v3678, 31
        %v3681 = vsub.s32 32, %v3680
        %v3682 = vshrl.u32 683565275, %v3681
        %v3683 = vshll.u32 683565275, %v3680
        %v3684 = vshrl.u32 2475754826, %v3681
        %v3685 = vor.u32 %v3683, %v3684
        %v3686 = vshll.u32 2475754826, %v3680
        %v3687 = vshrl.u32 2131351028, %v3681
        %v3688 = vor.u32 %v3686, %v3687
        %v3689 = vshll.u32 2131351028, %v3680
        %v3690 = vshrl.u32 2102212464, %v3681
        %v3691 = vor.u32 %v3689, %v3690
        %v3692 = vshll.u32 2102212464, %v3680
        %v3693 = vshrl.u32 920167782, %v3681
        %v3694 = vor.u32 %v3692, %v3693
        %v3695 = vshll.u32 920167782, %v3680
        %v3696 = vshrl.u32 1326507024, %v3681
        %v3697 = vor.u32 %v3695, %v3696
        %vm3698 = vcmp.lt.s32.totalorder %v3679, 1
        %vm3699 = vcmp.lt.s32.totalorder %v3679, 2
        %vm3700 = vcmp.lt.s32.totalorder %v3679, 3
        %vm3701 = vcmp.lt.s32.totalorder %v3679, 4
        %v3702 = vsel %vm3698, %v3682, %v3685
        %v3703 = vsel %vm3701, %v3691, 2102212464
        %v3704 = vsel %vm3700, %v3688, %v3703
        %v3705 = vsel %vm3699, %v3702, %v3704
        %v3706 = vsel %vm3698, %v3685, %v3688
        %v3707 = vsel %vm3701, %v3694, 920167782
        %v3708 = vsel %vm3700, %v3691, %v3707
        %v3709 = vsel %vm3699, %v3706, %v3708
        %v3710 = vsel %vm3698, %v3688, %v3691
        %v3711 = vsel %vm3701, %v3697, 1326507024
        %v3712 = vsel %vm3700, %v3694, %v3711
        %v3713 = vsel %vm3699, %v3710, %v3712
        %v3714 = vshll.u32 %v3674, 8
        %v3715 = vand.u32 %v3714, 65535
        %v3716 = vshrl.u32 %v3714, 16
        %v3717 = vand.u32 %v3713, 65535
        %v3718 = vshrl.u32 %v3713, 16
        %v3719 = vmul.u32 %v3715, %v3717
        %v3720 = vmul.u32 %v3715, %v3718
        %v3721 = vmul.u32 %v3716, %v3717
        %v3722 = vmul.u32 %v3716, %v3718
        %v3723 = vshll.u32 %v3720, 16
        %v3724 = vshrl.u32 %v3720, 16
        %v3725 = vshll.u32 %v3721, 16
        %v3726 = vshrl.u32 %v3721, 16
        %vm3727 = vc.u32 %v3719, %v3723
        %v3728 = vsel %vm3727, 1, 0
        %v3729 = vadd.s32 %v3719, %v3723
        %v3730 = vadd.s32 %v3722, %v3728
        %vm3731 = vc.u32 %v3729, %v3725
        %v3732 = vsel %vm3731, 1, 0
        %v3733 = vadd.s32 %v3729, %v3725
        %v3734 = vadd.s32 %v3730, %v3732
        %v3735 = vadd.s32 %v3734, %v3724
        %v3736 = vadd.s32 %v3735, %v3726
        %v3737 = vand.u32 %v3714, 65535
        %v3738 = vshrl.u32 %v3714, 16
        %v3739 = vand.u32 %v3709, 65535
        %v3740 = vshrl.u32 %v3709, 16
        %v3741 = vmul.u32 %v3737, %v3739
        %v3742 = vmul.u32 %v3737, %v3740
        %v3743 = vmul.u32 %v3738, %v3739
        %v3744 = vmul.u32 %v3738, %v3740
        %v3745 = vshll.u32 %v3742, 16
        %v3746 = vshrl.u32 %v3742, 16
        %v3747 = vshll.u32 %v3743, 16
        %v3748 = vshrl.u32 %v3743, 16
        %vm3749 = vc.u32 %v3741, %v3745
        %v3750 = vsel %vm3749, 1, 0
        %v3751 = vadd.s32 %v3741, %v3745
        %v3752 = vadd.s32 %v3744, %v3750
        %vm3753 = vc.u32 %v3751, %v3747
        %v3754 = vsel %vm3753, 1, 0
        %v3755 = vadd.s32 %v3751, %v3747
        %v3756 = vadd.s32 %v3752, %v3754
        %v3757 = vadd.s32 %v3756, %v3746
        %v3758 = vadd.s32 %v3757, %v3748
        %v3759 = vmul.u32 %v3714, %v3705
        %v3760 = vadd.s32 %v3736, %v3755
        %vm3761 = vc.u32 %v3736, %v3755
        %v3762 = vadd.s32 %v3758, 1
        %v3763 = vsel %vm3761, %v3762, %v3758
        %v3764 = vadd.s32 %v3759, %v3763
        %v3765 = vadd.s32 %v3764, 536870912
        %v3766 = vshrl.u32 %v3765, 30
        %v3767 = vshll.u32 %v3766, 30
        %v3768 = vsub.s32 %v3764, %v3767
        %vm3769 = vcmp.lt.s32.totalorder %v3768, 0
        %v3770 = vsub.s32 0, %v3768
        %v3771 = vsel %vm3769, %v3770, %v3768
        %v3772 = vclz %v3771
        %v3773 = vsub.s32 %v3772, 2
        %vm3774 = vcmp.gt.s32.totalorder 0, %v3773
        %v3775 = vsel %vm3774, 0, %v3773
        %v3776 = vsub.s32 32, %v3775
        %v3777 = vshll.u32 %v3768, %v3775
        %v3778 = vshrl.u32 %v3760, %v3776
        %v3779 = vor.u32 %v3777, %v3778
        %v3780 = vsub.s32 4294967266, %v3775
        %v3781 = vadd.s32 %v3780, 127
        %v3782 = vshll.u32 %v3781, 23
        %v3783 = vor.u32 4788187, %v3782
        %v3784 = vand.u32 2147483647, %v3783
        %v3786 = vcvt.s32.f32 %v3779
        %v3787 = vmul.f32 %v3786, %v3784
        %v3788 = vxor.u32 %v3787, 2147483648
        %v3789 = vsel %vm3668, %v3788, %v3787
        %v3790 = vsub.s32 4, %v3766
        %v3791 = vsel %vm3668, %v3790, %v3766
        %v3792 = vsel %vm3667, %v1340, %v3789
        %v3793 = vsel %vm3667, 0, %v3791
        %v3794 = vmul.f32 %v3792, %v3792
        %v3795 = vmul.f32 %v3794, -0.001358992
        %v3796 = vadd.f32 %v3795, 0.041655596
        %v3797 = vmul.f32 %v3794, %v3796
        %v3798 = vadd.f32 %v3797, -0.4999988
        %v3799 = vmul.f32 %v3794, %v3798
        %v3800 = vadd.f32 1.0, %v3799
        %v3801 = vmul.f32 %v3792, %v3792
        %v3802 = vmul.f32 %v3801, -0.00019511016
        %v3803 = vadd.f32 %v3802, 0.008332121
        %v3804 = vmul.f32 %v3801, %v3803
        %v3805 = vadd.f32 %v3804, -0.16666654
        %v3806 = vmul.f32 %v3801, %v3805
        %v3807 = vadd.f32 %v3806, 1.0
        %v3808 = vmul.f32 %v3807, %v3792
        %vm3809 = vweird.f32 %v1340
        %v3810 = vadd.s32 %v3793, 3
        %v3811 = vand.u32 %v3810, 3
        %vm3812 = vcmp.lt.s32.totalorder %v3811, 2
        %vm3813 = vcmp.eq.s32.totalorder %v3811, 0
        %v3814 = vxor.u32 %v3808, 2147483648
        %v3815 = vsel %vm3813, %v3800, %v3814
        %vm3816 = vcmp.eq.s32.totalorder %v3811, 2
        %v3817 = vxor.u32 %v3800, 2147483648
        %v3818 = vsel %vm3816, %v3817, %v3808
        %v3819 = vsel %vm3812, %v3815, %v3818
        %v3820 = vsel %vm3809, nan, %v3819
        %v3821 = vpack.c.bf16 %v1650, %v1495
        %v3822 = vpack.c.bf16 %v1960, %v1805
        %v3823 = vpack.c.bf16 %v2270, %v2115
        %v3824 = vpack.c.bf16 %v2580, %v2425
        %v3825 = vpack.c.bf16 %v2890, %v2735
        %v3826 = vpack.c.bf16 %v3200, %v3045
        %v3827 = vpack.c.bf16 %v3510, %v3355
        %v3828 = vpack.c.bf16 %v3820, %v3665
        %v3829 = vld [vmem:[%s5] sm:$0xf]
        %v3830 = vld [vmem:[%s5 + $0x4] sm:$0xf]
        %v3831 = vld [vmem:[%s5 + $0x8] sm:$0xf]
        %v3832 = vld [vmem:[%s5 + $0xc] sm:$0xf]
        %v3837 = vunpack.c.l.b16 %v3829
        %v3838 = vunpack.c.l.b16 %v3830
        %v3839 = vunpack.c.l.b16 %v3831
        %v3840 = vunpack.c.l.b16 %v3832
        %v3841 = vpack.c.b16 %v3838, %v3837
        %v3842 = vpack.c.b16 %v3840, %v3839
        %vm3845 = vcmask 261120
        %v3847 = vsel %vm3845, %v3821, 0
        %v3850 = vsel %vm3845, %v3822, 0
        %v3853 = vsel %vm3845, %v3823, 0
        %v3856 = vsel %vm3845, %v3824, 0
        %v3859 = vsel %vm3845, %v3825, 0
        %v3862 = vsel %vm3845, %v3826, 0
        %v3865 = vsel %vm3845, %v3827, 0
        %v3868 = vsel %vm3845, %v3828, 0
        %3870 = vmatpush.bf16.msra.mxu0 0
        %3871 = vmatpush.bf16.msra.mxu0 0
        %3872 = vmatpush.bf16.msra.mxu0 0
        %3873 = vmatpush.bf16.msra.mxu0 0
        %3874 = vmatpush.bf16.msra.mxu0 0
        %3875 = vmatpush.bf16.msra.mxu0 0
        %3876 = vmatpush.bf16.msra.mxu0 %v3842
        %3877 = vmatpush.bf16.msra.mxu0 %v3841
        %3878 = vmatmul.bf16.gmra.mxu0 %v3847
        %v3879 = vpop.f32.mrf.mxu0
        %v3880 = vadd.f32 0.0, %v3879
        %v3881 = vpop.f32.mrf.mxu0
        %v3882 = vadd.f32 0.0, %v3881
        %3883 = vmatmul.bf16.gmra.mxu0 %v3850
        %v3884 = vpop.f32.mrf.mxu0
        %v3885 = vadd.f32 0.0, %v3884
        %v3886 = vpop.f32.mrf.mxu0
        %v3887 = vadd.f32 0.0, %v3886
        %3888 = vmatmul.bf16.gmra.mxu0 %v3853
        %v3889 = vpop.f32.mrf.mxu0
        %v3890 = vadd.f32 0.0, %v3889
        %v3891 = vpop.f32.mrf.mxu0
        %v3892 = vadd.f32 0.0, %v3891
        %3893 = vmatmul.bf16.gmra.mxu0 %v3856
        %v3894 = vpop.f32.mrf.mxu0
        %v3895 = vadd.f32 0.0, %v3894
        %v3896 = vpop.f32.mrf.mxu0
        %v3897 = vadd.f32 0.0, %v3896
        %3898 = vmatmul.bf16.gmra.mxu0 %v3859
        %v3899 = vpop.f32.mrf.mxu0
        %v3900 = vadd.f32 0.0, %v3899
        %v3901 = vpop.f32.mrf.mxu0
        %v3902 = vadd.f32 0.0, %v3901
        %3903 = vmatmul.bf16.gmra.mxu0 %v3862
        %v3904 = vpop.f32.mrf.mxu0
        %v3905 = vadd.f32 0.0, %v3904
        %v3906 = vpop.f32.mrf.mxu0
        %v3907 = vadd.f32 0.0, %v3906
        %3908 = vmatmul.bf16.gmra.mxu0 %v3865
        %v3909 = vpop.f32.mrf.mxu0
        %v3910 = vadd.f32 0.0, %v3909
        %v3911 = vpop.f32.mrf.mxu0
        %v3912 = vadd.f32 0.0, %v3911
        %3913 = vmatmul.bf16.gmra.mxu0 %v3868
        %v3914 = vpop.f32.mrf.mxu0
        %v3915 = vadd.f32 0.0, %v3914
        %v3916 = vpop.f32.mrf.mxu0
        %v3917 = vadd.f32 0.0, %v3916
        %3918 = vdwg.mxu0
        %v3935 = vunpack.c.l.b16 %v1189
        %v3936 = vunpack.c.l.b16 %v1190
        %v3937 = vunpack.c.l.b16 %v1191
        %v3938 = vunpack.c.l.b16 %v1192
        %v3939 = vunpack.c.l.b16 %v1193
        %v3940 = vunpack.c.l.b16 %v1194
        %v3941 = vunpack.c.l.b16 %v1195
        %v3942 = vunpack.c.l.b16 %v1196
        %v3943 = vunpack.c.l.b16 %v1197
        %v3944 = vunpack.c.l.b16 %v1198
        %v3945 = vunpack.c.l.b16 %v1199
        %v3946 = vunpack.c.l.b16 %v1200
        %v3947 = vunpack.c.l.b16 %v1201
        %v3948 = vunpack.c.l.b16 %v1202
        %v3949 = vunpack.c.l.b16 %v1203
        %v3950 = vunpack.c.l.b16 %v1204
        %v3951 = vpack.c.b16 %v3936, %v3935
        %v3952 = vpack.c.b16 %v3938, %v3937
        %v3953 = vpack.c.b16 %v3940, %v3939
        %v3954 = vpack.c.b16 %v3942, %v3941
        %v3955 = vpack.c.b16 %v3944, %v3943
        %v3956 = vpack.c.b16 %v3946, %v3945
        %v3957 = vpack.c.b16 %v3948, %v3947
        %v3958 = vpack.c.b16 %v3950, %v3949
        %3967 = vmatpush.bf16.msra.mxu0 %v3958
        %3968 = vmatpush.bf16.msra.mxu0 %v3957
        %3969 = vmatpush.bf16.msra.mxu0 %v3956
        %3970 = vmatpush.bf16.msra.mxu0 %v3955
        %3971 = vmatpush.bf16.msra.mxu0 %v3954
        %3972 = vmatpush.bf16.msra.mxu0 %v3953
        %3973 = vmatpush.bf16.msra.mxu0 %v3952
        %3974 = vmatpush.bf16.msra.mxu0 %v3951
        %3975 = vmatmul.bf16.gmra.mxu0 %v1181
        %v3976 = vpop.f32.mrf.mxu0
        %v3977 = vadd.f32 %v3880, %v3976
        %v3978 = vpop.f32.mrf.mxu0
        %v3979 = vadd.f32 %v3882, %v3978
        %3980 = vmatmul.bf16.gmra.mxu0 %v1182
        %v3981 = vpop.f32.mrf.mxu0
        %v3982 = vadd.f32 %v3885, %v3981
        %v3983 = vpop.f32.mrf.mxu0
        %v3984 = vadd.f32 %v3887, %v3983
        %3985 = vmatmul.bf16.gmra.mxu0 %v1183
        %v3986 = vpop.f32.mrf.mxu0
        %v3987 = vadd.f32 %v3890, %v3986
        %v3988 = vpop.f32.mrf.mxu0
        %v3989 = vadd.f32 %v3892, %v3988
        %3990 = vmatmul.bf16.gmra.mxu0 %v1184
        %v3991 = vpop.f32.mrf.mxu0
        %v3992 = vadd.f32 %v3895, %v3991
        %v3993 = vpop.f32.mrf.mxu0
        %v3994 = vadd.f32 %v3897, %v3993
        %3995 = vmatmul.bf16.gmra.mxu0 %v1185
        %v3996 = vpop.f32.mrf.mxu0
        %v3997 = vadd.f32 %v3900, %v3996
        %v3998 = vpop.f32.mrf.mxu0
        %v3999 = vadd.f32 %v3902, %v3998
        %4000 = vmatmul.bf16.gmra.mxu0 %v1186
        %v4001 = vpop.f32.mrf.mxu0
        %v4002 = vadd.f32 %v3905, %v4001
        %v4003 = vpop.f32.mrf.mxu0
        %v4004 = vadd.f32 %v3907, %v4003
        %4005 = vmatmul.bf16.gmra.mxu0 %v1187
        %v4006 = vpop.f32.mrf.mxu0
        %v4007 = vadd.f32 %v3910, %v4006
        %v4008 = vpop.f32.mrf.mxu0
        %v4009 = vadd.f32 %v3912, %v4008
        %4010 = vmatmul.bf16.gmra.mxu0 %v1188
        %v4011 = vpop.f32.mrf.mxu0
        %v4012 = vadd.f32 %v3915, %v4011
        %v4013 = vpop.f32.mrf.mxu0
        %v4014 = vadd.f32 %v3917, %v4013
        %4015 = vdwg.mxu0
        %v4016 = vld [vmem:[%s6] sm:$0x1]
        %v4018 = vperm.slane %v4016, 0
        %v4020 = vadd.f32 %v3977, %v4018
        %v4021 = vadd.f32 %v3979, %v4018
        %v4022 = vadd.f32 %v3982, %v4018
        %v4023 = vadd.f32 %v3984, %v4018
        %v4024 = vadd.f32 %v3987, %v4018
        %v4025 = vadd.f32 %v3989, %v4018
        %v4026 = vadd.f32 %v3992, %v4018
        %v4027 = vadd.f32 %v3994, %v4018
        %v4028 = vadd.f32 %v3997, %v4018
        %v4029 = vadd.f32 %v3999, %v4018
        %v4030 = vadd.f32 %v4002, %v4018
        %v4031 = vadd.f32 %v4004, %v4018
        %v4032 = vadd.f32 %v4007, %v4018
        %v4033 = vadd.f32 %v4009, %v4018
        %v4034 = vadd.f32 %v4012, %v4018
        %v4035 = vadd.f32 %v4014, %v4018
        %v4036 = vmax.f32 %v4020, 0.0
        %v4037 = vmax.f32 %v4021, 0.0
        %v4038 = vmax.f32 %v4022, 0.0
        %v4039 = vmax.f32 %v4023, 0.0
        %v4040 = vmax.f32 %v4024, 0.0
        %v4041 = vmax.f32 %v4025, 0.0
        %v4042 = vmax.f32 %v4026, 0.0
        %v4043 = vmax.f32 %v4027, 0.0
        %v4044 = vmax.f32 %v4028, 0.0
        %v4045 = vmax.f32 %v4029, 0.0
        %v4046 = vmax.f32 %v4030, 0.0
        %v4047 = vmax.f32 %v4031, 0.0
        %v4048 = vmax.f32 %v4032, 0.0
        %v4049 = vmax.f32 %v4033, 0.0
        %v4050 = vmax.f32 %v4034, 0.0
        %v4051 = vmax.f32 %v4035, 0.0
        %v4052 = vpack.c.bf16 %v4037, %v4036
        %v4053 = vpack.c.bf16 %v4039, %v4038
        %v4054 = vpack.c.bf16 %v4041, %v4040
        %v4055 = vpack.c.bf16 %v4043, %v4042
        %v4056 = vpack.c.bf16 %v4045, %v4044
        %v4057 = vpack.c.bf16 %v4047, %v4046
        %v4058 = vpack.c.bf16 %v4049, %v4048
        %v4059 = vpack.c.bf16 %v4051, %v4050
        %v4060 = vld [vmem:[%s7] sm:$0xf]
        %v4061 = vld [vmem:[%s7 + $0x4] sm:$0xf]
        %v4062 = vld [vmem:[%s7 + $0x8] sm:$0xf]
        %v4063 = vld [vmem:[%s7 + $0xc] sm:$0xf]
        %v4064 = vld [vmem:[%s7 + $0x10] sm:$0xf]
        %v4065 = vld [vmem:[%s7 + $0x14] sm:$0xf]
        %v4066 = vld [vmem:[%s7 + $0x18] sm:$0xf]
        %v4067 = vld [vmem:[%s7 + $0x1c] sm:$0xf]
        %v4068 = vld [vmem:[%s7 + $0x20] sm:$0xf]
        %v4069 = vld [vmem:[%s7 + $0x24] sm:$0xf]
        %v4070 = vld [vmem:[%s7 + $0x28] sm:$0xf]
        %v4071 = vld [vmem:[%s7 + $0x2c] sm:$0xf]
        %v4072 = vld [vmem:[%s7 + $0x30] sm:$0xf]
        %v4073 = vld [vmem:[%s7 + $0x34] sm:$0xf]
        %v4074 = vld [vmem:[%s7 + $0x38] sm:$0xf]
        %v4075 = vld [vmem:[%s7 + $0x3c] sm:$0xf]
        %v4076 = vld [vmem:[%s8] sm:$0x1]
        %v4078 = vperm.slane %v4076, 0
        %v4096 = vunpack.c.l.b16 %v4060
        %v4097 = vunpack.c.l.b16 %v4061
        %v4098 = vunpack.c.l.b16 %v4062
        %v4099 = vunpack.c.l.b16 %v4063
        %v4100 = vunpack.c.l.b16 %v4064
        %v4101 = vunpack.c.l.b16 %v4065
        %v4102 = vunpack.c.l.b16 %v4066
        %v4103 = vunpack.c.l.b16 %v4067
        %v4104 = vunpack.c.l.b16 %v4068
        %v4105 = vunpack.c.l.b16 %v4069
        %v4106 = vunpack.c.l.b16 %v4070
        %v4107 = vunpack.c.l.b16 %v4071
        %v4108 = vunpack.c.l.b16 %v4072
        %v4109 = vunpack.c.l.b16 %v4073
        %v4110 = vunpack.c.l.b16 %v4074
        %v4111 = vunpack.c.l.b16 %v4075
        %v4112 = vpack.c.b16 %v4097, %v4096
        %v4113 = vpack.c.b16 %v4099, %v4098
        %v4114 = vpack.c.b16 %v4101, %v4100
        %v4115 = vpack.c.b16 %v4103, %v4102
        %v4116 = vpack.c.b16 %v4105, %v4104
        %v4117 = vpack.c.b16 %v4107, %v4106
        %v4118 = vpack.c.b16 %v4109, %v4108
        %v4119 = vpack.c.b16 %v4111, %v4110
        %4128 = vmatpush.bf16.msra.mxu0 %v4119
        %4129 = vmatpush.bf16.msra.mxu0 %v4118
        %4130 = vmatpush.bf16.msra.mxu0 %v4117
        %4131 = vmatpush.bf16.msra.mxu0 %v4116
        %4132 = vmatpush.bf16.msra.mxu0 %v4115
        %4133 = vmatpush.bf16.msra.mxu0 %v4114
        %4134 = vmatpush.bf16.msra.mxu0 %v4113
        %4135 = vmatpush.bf16.msra.mxu0 %v4112
        %4136 = vmatmul.bf16.gmra.mxu0 %v4052
        %v4137 = vpop.f32.mrf.mxu0
        %v4138 = vadd.f32 %v4078, %v4137
        %v4139 = vpop.f32.mrf.mxu0
        %v4140 = vadd.f32 %v4078, %v4139
        %4141 = vmatmul.bf16.gmra.mxu0 %v4053
        %v4142 = vpop.f32.mrf.mxu0
        %v4143 = vadd.f32 %v4078, %v4142
        %v4144 = vpop.f32.mrf.mxu0
        %v4145 = vadd.f32 %v4078, %v4144
        %4146 = vmatmul.bf16.gmra.mxu0 %v4054
        %v4147 = vpop.f32.mrf.mxu0
        %v4148 = vadd.f32 %v4078, %v4147
        %v4149 = vpop.f32.mrf.mxu0
        %v4150 = vadd.f32 %v4078, %v4149
        %4151 = vmatmul.bf16.gmra.mxu0 %v4055
        %v4152 = vpop.f32.mrf.mxu0
        %v4153 = vadd.f32 %v4078, %v4152
        %v4154 = vpop.f32.mrf.mxu0
        %v4155 = vadd.f32 %v4078, %v4154
        %4156 = vmatmul.bf16.gmra.mxu0 %v4056
        %v4157 = vpop.f32.mrf.mxu0
        %v4158 = vadd.f32 %v4078, %v4157
        %v4159 = vpop.f32.mrf.mxu0
        %v4160 = vadd.f32 %v4078, %v4159
        %4161 = vmatmul.bf16.gmra.mxu0 %v4057
        %v4162 = vpop.f32.mrf.mxu0
        %v4163 = vadd.f32 %v4078, %v4162
        %v4164 = vpop.f32.mrf.mxu0
        %v4165 = vadd.f32 %v4078, %v4164
        %4166 = vmatmul.bf16.gmra.mxu0 %v4058
        %v4167 = vpop.f32.mrf.mxu0
        %v4168 = vadd.f32 %v4078, %v4167
        %v4169 = vpop.f32.mrf.mxu0
        %v4170 = vadd.f32 %v4078, %v4169
        %4171 = vmatmul.bf16.gmra.mxu0 %v4059
        %v4172 = vpop.f32.mrf.mxu0
        %v4173 = vadd.f32 %v4078, %v4172
        %v4174 = vpop.f32.mrf.mxu0
        %v4175 = vadd.f32 %v4078, %v4174
        %4176 = vdwg.mxu0
        %v4177 = vmax.f32 %v4138, 0.0
        %v4178 = vmax.f32 %v4140, 0.0
        %v4179 = vmax.f32 %v4143, 0.0
        %v4180 = vmax.f32 %v4145, 0.0
        %v4181 = vmax.f32 %v4148, 0.0
        %v4182 = vmax.f32 %v4150, 0.0
        %v4183 = vmax.f32 %v4153, 0.0
        %v4184 = vmax.f32 %v4155, 0.0
        %v4185 = vmax.f32 %v4158, 0.0
        %v4186 = vmax.f32 %v4160, 0.0
        %v4187 = vmax.f32 %v4163, 0.0
        %v4188 = vmax.f32 %v4165, 0.0
        %v4189 = vmax.f32 %v4168, 0.0
        %v4190 = vmax.f32 %v4170, 0.0
        %v4191 = vmax.f32 %v4173, 0.0
        %v4192 = vmax.f32 %v4175, 0.0
        %v4193 = vpack.c.bf16 %v4178, %v4177
        %v4194 = vpack.c.bf16 %v4180, %v4179
        %v4195 = vpack.c.bf16 %v4182, %v4181
        %v4196 = vpack.c.bf16 %v4184, %v4183
        %v4197 = vpack.c.bf16 %v4186, %v4185
        %v4198 = vpack.c.bf16 %v4188, %v4187
        %v4199 = vpack.c.bf16 %v4190, %v4189
        %v4200 = vpack.c.bf16 %v4192, %v4191
        %v4201 = vld [vmem:[%s9] sm:$0xf]
        %v4202 = vld [vmem:[%s9 + $0x4] sm:$0xf]
        %v4203 = vld [vmem:[%s9 + $0x8] sm:$0xf]
        %v4204 = vld [vmem:[%s9 + $0xc] sm:$0xf]
        %v4205 = vld [vmem:[%s9 + $0x10] sm:$0xf]
        %v4206 = vld [vmem:[%s9 + $0x14] sm:$0xf]
        %v4207 = vld [vmem:[%s9 + $0x18] sm:$0xf]
        %v4208 = vld [vmem:[%s9 + $0x1c] sm:$0xf]
        %v4209 = vld [vmem:[%s9 + $0x20] sm:$0xf]
        %v4210 = vld [vmem:[%s9 + $0x24] sm:$0xf]
        %v4211 = vld [vmem:[%s9 + $0x28] sm:$0xf]
        %v4212 = vld [vmem:[%s9 + $0x2c] sm:$0xf]
        %v4213 = vld [vmem:[%s9 + $0x30] sm:$0xf]
        %v4214 = vld [vmem:[%s9 + $0x34] sm:$0xf]
        %v4215 = vld [vmem:[%s9 + $0x38] sm:$0xf]
        %v4216 = vld [vmem:[%s9 + $0x3c] sm:$0xf]
        %v4217 = vld [vmem:[%s10] sm:$0x1]
        %v4219 = vperm.slane %v4217, 0
        %v4237 = vunpack.c.l.b16 %v4201
        %v4238 = vunpack.c.l.b16 %v4202
        %v4239 = vunpack.c.l.b16 %v4203
        %v4240 = vunpack.c.l.b16 %v4204
        %v4241 = vunpack.c.l.b16 %v4205
        %v4242 = vunpack.c.l.b16 %v4206
        %v4243 = vunpack.c.l.b16 %v4207
        %v4244 = vunpack.c.l.b16 %v4208
        %v4245 = vunpack.c.l.b16 %v4209
        %v4246 = vunpack.c.l.b16 %v4210
        %v4247 = vunpack.c.l.b16 %v4211
        %v4248 = vunpack.c.l.b16 %v4212
        %v4249 = vunpack.c.l.b16 %v4213
        %v4250 = vunpack.c.l.b16 %v4214
        %v4251 = vunpack.c.l.b16 %v4215
        %v4252 = vunpack.c.l.b16 %v4216
        %v4253 = vpack.c.b16 %v4238, %v4237
        %v4254 = vpack.c.b16 %v4240, %v4239
        %v4255 = vpack.c.b16 %v4242, %v4241
        %v4256 = vpack.c.b16 %v4244, %v4243
        %v4257 = vpack.c.b16 %v4246, %v4245
        %v4258 = vpack.c.b16 %v4248, %v4247
        %v4259 = vpack.c.b16 %v4250, %v4249
        %v4260 = vpack.c.b16 %v4252, %v4251
        %4269 = vmatpush.bf16.msra.mxu0 %v4260
        %4270 = vmatpush.bf16.msra.mxu0 %v4259
        %4271 = vmatpush.bf16.msra.mxu0 %v4258
        %4272 = vmatpush.bf16.msra.mxu0 %v4257
        %4273 = vmatpush.bf16.msra.mxu0 %v4256
        %4274 = vmatpush.bf16.msra.mxu0 %v4255
        %4275 = vmatpush.bf16.msra.mxu0 %v4254
        %4276 = vmatpush.bf16.msra.mxu0 %v4253
        %4277 = vmatmul.bf16.gmra.mxu0 %v4193
        %v4278 = vpop.f32.mrf.mxu0
        %v4279 = vadd.f32 %v4219, %v4278
        %v4280 = vpop.f32.mrf.mxu0
        %v4281 = vadd.f32 %v4219, %v4280
        %4282 = vmatmul.bf16.gmra.mxu0 %v4194
        %v4283 = vpop.f32.mrf.mxu0
        %v4284 = vadd.f32 %v4219, %v4283
        %v4285 = vpop.f32.mrf.mxu0
        %v4286 = vadd.f32 %v4219, %v4285
        %4287 = vmatmul.bf16.gmra.mxu0 %v4195
        %v4288 = vpop.f32.mrf.mxu0
        %v4289 = vadd.f32 %v4219, %v4288
        %v4290 = vpop.f32.mrf.mxu0
        %v4291 = vadd.f32 %v4219, %v4290
        %4292 = vmatmul.bf16.gmra.mxu0 %v4196
        %v4293 = vpop.f32.mrf.mxu0
        %v4294 = vadd.f32 %v4219, %v4293
        %v4295 = vpop.f32.mrf.mxu0
        %v4296 = vadd.f32 %v4219, %v4295
        %4297 = vmatmul.bf16.gmra.mxu0 %v4197
        %v4298 = vpop.f32.mrf.mxu0
        %v4299 = vadd.f32 %v4219, %v4298
        %v4300 = vpop.f32.mrf.mxu0
        %v4301 = vadd.f32 %v4219, %v4300
        %4302 = vmatmul.bf16.gmra.mxu0 %v4198
        %v4303 = vpop.f32.mrf.mxu0
        %v4304 = vadd.f32 %v4219, %v4303
        %v4305 = vpop.f32.mrf.mxu0
        %v4306 = vadd.f32 %v4219, %v4305
        %4307 = vmatmul.bf16.gmra.mxu0 %v4199
        %v4308 = vpop.f32.mrf.mxu0
        %v4309 = vadd.f32 %v4219, %v4308
        %v4310 = vpop.f32.mrf.mxu0
        %v4311 = vadd.f32 %v4219, %v4310
        %4312 = vmatmul.bf16.gmra.mxu0 %v4200
        %v4313 = vpop.f32.mrf.mxu0
        %v4314 = vadd.f32 %v4219, %v4313
        %v4315 = vpop.f32.mrf.mxu0
        %v4316 = vadd.f32 %v4219, %v4315
        %4317 = vdwg.mxu0
        %4318 = vst [vmem:[%s396] sm:$0xff] %v4279
        %4319 = vst [vmem:[%s396 + $0x8] sm:$0xff] %v4281
        %4320 = vst [vmem:[%s396 + $0x10] sm:$0xff] %v4284
        %4321 = vst [vmem:[%s396 + $0x18] sm:$0xff] %v4286
        %4322 = vst [vmem:[%s396 + $0x20] sm:$0xff] %v4289
        %4323 = vst [vmem:[%s396 + $0x28] sm:$0xff] %v4291
        %4324 = vst [vmem:[%s396 + $0x30] sm:$0xff] %v4294
        %4325 = vst [vmem:[%s396 + $0x38] sm:$0xff] %v4296
        %4326 = vst [vmem:[%s396 + $0x40] sm:$0xff] %v4299
        %4327 = vst [vmem:[%s396 + $0x48] sm:$0xff] %v4301
        %4328 = vst [vmem:[%s396 + $0x50] sm:$0xff] %v4304
        %4329 = vst [vmem:[%s396 + $0x58] sm:$0xff] %v4306
        %4330 = vst [vmem:[%s396 + $0x60] sm:$0xff] %v4309
        %4331 = vst [vmem:[%s396 + $0x68] sm:$0xff] %v4311
        %4332 = vst [vmem:[%s396 + $0x70] sm:$0xff] %v4314
        %4333 = vst [vmem:[%s396 + $0x78] sm:$0xff] %v4316
        %s4334 = sand.u32 %s274, 1
        %s4335 = scalar_lea.sflag [#allocation3], %s4334
        %s4336 = sand.u32 %s274, 1
        %s4337 = smul.addr %s4336, 128
        %s4338 = scalar_lea.vmem [#allocation2], %s4337
        // Predicated region
        $region65: #{tpu_custom_call.1} parent=63 // pred_check
          %p4339 = pneg %p284
        $region66: #{tpu_custom_call.1} parent=63 // pred_check_branch
          %4341 = sbr.rel (%p4339) target = $region68
        $region67: #{tpu_custom_call.1} parent=63 // pred_region
          %s4342 = smul.u32 16, %s25
          %4344 = vsyncadd %s4335, 0
          %s4345 = smul.addr %s4342, 8
          %s4346 = scalar_lea.hbm %s11, %s4345
          %s4347 = sshll.u32 %s4338, 4
          %s4348 = int_to_ptr.vmem [resolvable:$true] %s4347
          %s4349 = sshll.u32 %s4346, 4
          %s4350 = int_to_ptr.hbm [resolvable:$true] %s4349
          %4355 = dma.vmem_to_hbm [thread:$0]  %s4348, 2048, %s4350, %s4335, 128, 128, 8
        $region68: #{tpu_custom_call.1} parent=63 // pred_fallthru
          _
      $region64: #{tpu_custom_call.1} parent=5 // pred_fallthru
        _
      %p4356 = scmp.le.s32.totalorder 2, %s20
      // Predicated region
      $region69: #{tpu_custom_call.1} parent=5 // pred_check
        %p4357 = pneg %p4356
      $region70: #{tpu_custom_call.1} parent=5 // pred_check_branch
        %4359 = sbr.rel (%p4357) target = $region72
      $region71: #{tpu_custom_call.1} parent=5 // pred_region
        %s4360 = ssub.s32 %s20, 2
        // Predicated region
        $region73: #{tpu_custom_call.1} parent=71 // pred_check
          %p4361 = pneg %p290
        $region74: #{tpu_custom_call.1} parent=71 // pred_check_branch
          %4363 = sbr.rel (%p4361) target = $region76
        $region75: #{tpu_custom_call.1} parent=71 // pred_region
          %s4364 = sand.u32 %s275, 1
          %s4365 = scalar_lea.sflag [#allocation3], %s4364
          %s4366 = sand.u32 %s275, 1
          %s4367 = smul.addr %s4366, 128
          %s4368 = scalar_lea.vmem [#allocation2], %s4367
          %4370 = dma.done %s4365, 2048
        $region76: #{tpu_custom_call.1} parent=71 // pred_fallthru
          _
      $region72: #{tpu_custom_call.1} parent=5 // pred_fallthru
        _
    $region6: #{tpu_custom_call.1} parent=1 // loop_footer
      %s24 = sadd.s32 1, %s20
    $region7: #{tpu_custom_call.1} parent=1 // loop_footer_branch
      %19 = sbr.rel target = $region3
    $region8: #{tpu_custom_call.1} parent=1 // loop_exit
      _
    %4371 = vsyncpa [#allocation3], 1
    %s4372 = scalar_lea.sflag [#allocation3], 1
    %4373 = vsyncpa %s4372, 1

</llo_original>
